<compile_context>
chip_gen: v6e
topology: v6e:2x2x1
jax: 0.10.0
libtpu: 0.0.40
codegen_flags: <defaults>
</compile_context>

<pallas_src>
import functools

import jax
import jax.numpy as jnp
from jax.experimental import pallas as pl
from jax.experimental.pallas import tpu as pltpu


# ----------------------------- Pallas kernels ------------------------------ #

def _stable_sigmoid(y):
    e = jnp.exp(-jnp.abs(y))
    return jnp.where(y >= 0, 1.0 / (1.0 + e), e / (1.0 + e))


def _conv_leaky_kernel(w_ref, p_ref, o_ref, *, slope):
    """Conv-as-matmul + LeakyReLU.  Output tile (Cout, tm) is lane-dense."""
    y = jnp.dot(w_ref[...], p_ref[...], preferred_element_type=jnp.float32)
    o_ref[...] = jnp.where(y >= 0, y, slope * y).astype(o_ref.dtype)


def _conv_bn_leaky_kernel(w_ref, p_ref, g_ref, b_ref, o_ref, *,
                          inv_m, eps, slope):
    """Fused conv matmul + training-mode BatchNorm + LeakyReLU, single block."""
    y = jnp.dot(w_ref[...], p_ref[...], preferred_element_type=jnp.float32)  # (C, M)
    mean = jnp.sum(y, axis=1, keepdims=True) * inv_m                          # (C, 1)
    d = y - mean
    var = jnp.sum(d * d, axis=1, keepdims=True) * inv_m     # centered, biased var
    scale = g_ref[...] * jax.lax.rsqrt(var + eps)            # EUP rsqrt
    z = d * scale + b_ref[...]
    o_ref[...] = jnp.where(z >= 0, z, slope * z).astype(o_ref.dtype)


def _conv_bn_leaky_head_kernel(w_ref, p_ref, g_ref, b_ref, w5_ref, seg_ref,
                               o_ref, *, inv_m, eps, slope):
    """Layer 4 (conv+BN+LeakyReLU) fused with layer 5 (4x4 valid conv + sigmoid).

    The layer-4 activation z (C, M=N*16) never leaves the kernel.  The 1-channel
    4x4 valid conv is z * w5_tiled reduced over channels and spatial positions:
    a VPU multiply, one tiny (C,M)@(M,N) matmul against a 0/1 segment matrix,
    and a sublane reduce.
    """
    y = jnp.dot(w_ref[...], p_ref[...], preferred_element_type=jnp.float32)  # (C, M)
    mean = jnp.sum(y, axis=1, keepdims=True) * inv_m
    d = y - mean
    var = jnp.sum(d * d, axis=1, keepdims=True) * inv_m
    scale = g_ref[...] * jax.lax.rsqrt(var + eps)
    z = d * scale + b_ref[...]
    z = jnp.where(z >= 0, z, slope * z)                       # layer-4 activation

    prod = z * w5_ref[...]                                    # (C, M), w5 tiled over batch
    per_chan = jnp.dot(prod, seg_ref[...],
                       preferred_element_type=jnp.float32)    # (C, N) spatial-summed
    logits = jnp.sum(per_chan, axis=0, keepdims=True)         # (1, N) channel-summed
    o_ref[...] = _stable_sigmoid(logits).astype(o_ref.dtype)


# ------------------------------ Pallas wrappers ----------------------------- #

_LANE = 128


def _pick_tm(m, k, c, budget_bytes=8 * 1024 * 1024):
    """Largest lane-aligned M tile that keeps the double-buffered working set
    within `budget_bytes`; returns M itself (single block) when it all fits."""
    per_col = 2 * (k * 2 + c * 2)          # bf16 patches + bf16 out, double-buffered
    fixed = 2 * (c * k * 2)                # revisited bf16 weights
    fit = max(_LANE, (budget_bytes - fixed) // max(per_col, 1))
    if m <= fit:
        return m
    tm = (fit // _LANE) * _LANE
    while tm >= _LANE and m % tm:
        tm -= _LANE
    # Fallback: single block (relies on vmem_limit_bytes headroom).
    return tm if tm >= _LANE else m


def _compiler_params(nbytes, semantics):
    """Explicit, generation-safe VMEM limit (<= 32 MiB fits v5e/v6e/v7x)."""
    limit = int(min(32 * 1024 * 1024, max(8 * 1024 * 1024, 2 * nbytes)))
    return pltpu.CompilerParams(dimension_semantics=semantics,
                                vmem_limit_bytes=limit)


def conv_leaky(patches_t, w2d, out_dtype, slope=0.2):
    """Layer-1 style fused conv matmul + LeakyReLU (optionally tiled over M)."""
    K, M = patches_t.shape
    C = w2d.shape[0]
    tm = _pick_tm(M, K, C)
    nbytes = (patches_t.size + w2d.size) * 2 + C * M * 2
    return pl.pallas_call(
        functools.partial(_conv_leaky_kernel, slope=slope),
        out_shape=jax.ShapeDtypeStruct((C, M), out_dtype),
        grid_spec=pltpu.PrefetchScalarGridSpec(
            num_scalar_prefetch=0,
            grid=(M // tm,),
            in_specs=[pl.BlockSpec((C, K), lambda i: (0, 0)),
                      pl.BlockSpec((K, tm), lambda i: (0, i))],
            out_specs=pl.BlockSpec((C, tm), lambda i: (0, i)),
        ),
        compiler_params=_compiler_params(nbytes, ("parallel",)),
    )(w2d, patches_t)


def conv_bn_leaky(patches_t, w2d, gamma, beta, out_dtype, eps=1e-5, slope=0.2):
    """Fused conv + BatchNorm(batch stats) + LeakyReLU in ONE pallas_call."""
    K, M = patches_t.shape
    C = w2d.shape[0]
    nbytes = (patches_t.size + w2d.size) * 2 + C * M * (4 + 2) + 2 * C * 4
    assert nbytes < 24 * 1024 * 1024, (
        "fused BN block too large for single-block VMEM; see TODO(synk) above")
    kern = functools.partial(_conv_bn_leaky_kernel,
                             inv_m=1.0 / float(M), eps=eps, slope=slope)
    chan = pl.BlockSpec((C, 1), lambda i: (0, 0))
    return pl.pallas_call(
        kern,
        out_shape=jax.ShapeDtypeStruct((C, M), out_dtype),
        grid_spec=pltpu.PrefetchScalarGridSpec(
            num_scalar_prefetch=0,
            grid=(1,),
            in_specs=[pl.BlockSpec((C, K), lambda i: (0, 0)),
                      pl.BlockSpec((K, M), lambda i: (0, 0)),
                      chan, chan],
            out_specs=pl.BlockSpec((C, M), lambda i: (0, 0)),
        ),
        compiler_params=_compiler_params(nbytes, ("arbitrary",)),
    )(w2d, patches_t, gamma, beta)


def conv_bn_leaky_head(patches_t, w2d, gamma, beta, w5_tiled, seg,
                       eps=1e-5, slope=0.2):
    """Layer-4 conv+BN+LeakyReLU fused with the layer-5 conv + sigmoid head."""
    K, M = patches_t.shape
    C = w2d.shape[0]
    N = seg.shape[1]
    nbytes = ((patches_t.size + w2d.size) * 2 + (w5_tiled.size + seg.size) * 4
              + C * M * 4 + 2 * C * 4)
    assert nbytes < 24 * 1024 * 1024
    kern = functools.partial(_conv_bn_leaky_head_kernel,
                             inv_m=1.0 / float(M), eps=eps, slope=slope)
    chan = pl.BlockSpec((C, 1), lambda i: (0, 0))
    return pl.pallas_call(
        kern,
        out_shape=jax.ShapeDtypeStruct((1, N), jnp.float32),
        grid_spec=pltpu.PrefetchScalarGridSpec(
            num_scalar_prefetch=0,
            grid=(1,),
            in_specs=[pl.BlockSpec((C, K), lambda i: (0, 0)),
                      pl.BlockSpec((K, M), lambda i: (0, 0)),
                      chan, chan,
                      pl.BlockSpec((C, M), lambda i: (0, 0)),
                      pl.BlockSpec((M, N), lambda i: (0, 0))],
            out_specs=pl.BlockSpec((1, N), lambda i: (0, 0)),
        ),
        compiler_params=_compiler_params(nbytes, ("arbitrary",)),
    )(w2d, patches_t, gamma, beta, w5_tiled, seg)


# ------------------------------- JAX glue ---------------------------------- #

def im2col_t(x_cnhw, ksize, stride, pad):
    """Transposed patch matrix (K, M): K ordered (kh, kw, cin), M = n*ho*wo.

    TODO(synk): replace with in-kernel patch assembly via manual strided DMA so
    the patch matrix is never written to / re-read from HBM.
    """
    C, N, H, W = x_cnhw.shape
    xp = jnp.pad(x_cnhw, ((0, 0), (0, 0), (pad, pad), (pad, pad)))
    Ho = (H + 2 * pad - ksize) // stride + 1
    Wo = (W + 2 * pad - ksize) // stride + 1
    rows = []
    for kh in range(ksize):
        for kw in range(ksize):
            rows.append(xp[:, :, kh:kh + stride * Ho:stride,
                              kw:kw + stride * Wo:stride])
    pt = jnp.stack(rows, axis=0)                      # (KH*KW, C, N, Ho, Wo)
    return pt.reshape(ksize * ksize * C, N * Ho * Wo), N, Ho, Wo


def _w2d(w):
    """PyTorch (Cout, Cin, KH, KW) -> (Cout, KH*KW*Cin) matching im2col_t rows."""
    cout = w.shape[0]
    return jnp.transpose(w, (0, 2, 3, 1)).reshape(cout, -1).astype(jnp.bfloat16)


def init_params(key, num_classes, ndf):
    """Deterministic synthetic parameters (PyTorch Conv2d weight layout)."""
    conv_shapes = [
        (ndf,     num_classes, 4, 4),
        (ndf * 2, ndf,         4, 4),
        (ndf * 4, ndf * 2,     4, 4),
        (ndf * 8, ndf * 4,     4, 4),
        (1,       ndf * 8,     4, 4),
    ]
    keys = jax.random.split(key, len(conv_shapes))
    params = {"conv": [jax.random.normal(k, s, jnp.float32) * 0.02
                       for k, s in zip(keys, conv_shapes)]}
    # BatchNorm2d defaults (weight=1, bias=0), stored as (C, 1) channel columns.
    params["gamma"] = [jnp.ones((ndf * 2, 1), jnp.float32),
                       jnp.ones((ndf * 4, 1), jnp.float32),
                       jnp.ones((ndf * 8, 1), jnp.float32)]
    params["beta"] = [jnp.zeros((ndf * 2, 1), jnp.float32),
                      jnp.zeros((ndf * 4, 1), jnp.float32),
                      jnp.zeros((ndf * 8, 1), jnp.float32)]
    return params


def discriminator_forward(params, x_nchw):
    """Forward semantics of the PyTorch Discriminator (training-mode BN).

    Note: inter-layer activations / matmul inputs are bf16 (reference is f32),
    so small tolerance differences vs PyTorch are expected.
    """
    convs = params["conv"]
    # NCHW -> channels-leading (C, N, H, W); bf16 for MXU inputs / DMA traffic.
    x = jnp.transpose(x_nchw, (1, 0, 2, 3)).astype(jnp.bfloat16)

    # ---- layer 1: conv(4,2,1) + LeakyReLU(0.2), fused ----
    p, N, Ho, Wo = im2col_t(x, 4, 2, 1)
    y = conv_leaky(p, _w2d(convs[0]), jnp.bfloat16)
    x = y.reshape(convs[0].shape[0], N, Ho, Wo)

    # ---- layers 2, 3: conv(4,2,1) + BatchNorm + LeakyReLU, one call each ----
    for li, bn_i in ((1, 0), (2, 1)):
        p, N, Ho, Wo = im2col_t(x, 4, 2, 1)
        y = conv_bn_leaky(p, _w2d(convs[li]),
                          params["gamma"][bn_i], params["beta"][bn_i],
                          jnp.bfloat16)
        x = y.reshape(convs[li].shape[0], N, Ho, Wo)

    # ---- layers 4 + 5: conv + BN + LeakyReLU + 4x4 valid conv + sigmoid ----
    p, N, Ho, Wo = im2col_t(x, 4, 2, 1)
    hw = Ho * Wo
    c4 = convs[3].shape[0]
    assert (Ho, Wo) == (4, 4), "final 4x4 valid conv requires 64x64 input"
    w5_r = convs[4][0].reshape(c4, hw).astype(jnp.float32)      # (C4, kh*kw)
    w5_tiled = jnp.tile(w5_r, (1, N))                            # (C4, N*hw)
    seg = jnp.repeat(jnp.eye(N, dtype=jnp.float32), hw, axis=0)  # (N*hw, N)
    out = conv_bn_leaky_head(p, _w2d(convs[3]),
                             params["gamma"][2], params["beta"][2],
                             w5_tiled, seg)                      # (1, N) f32

    return out.reshape(N, 1, 1, 1).astype(jnp.float32)


# --------------------------------- main ------------------------------------ #

if __name__ == "__main__":
    NUM_CLASSES = 4
    NDF = 16          # small ndf (PyTorch default is 64); shapes stay consistent
    BATCH = 2
    SPATIAL = 64      # 64 -> 32 -> 16 -> 8 -> 4 -> 1 (final 4x4 valid conv)

    key = jax.random.PRNGKey(0)
    k_param, k_x = jax.random.split(key)
    params = init_params(k_param, NUM_CLASSES, NDF)
    x = jax.random.normal(k_x, (BATCH, NUM_CLASSES, SPATIAL, SPATIAL), jnp.float32)

    fwd = jax.jit(discriminator_forward)
    out = fwd(params, x)
    out = jax.block_until_ready(out)

    assert out.shape == (BATCH, 1, 1, 1), out.shape
    assert bool(jnp.all((out >= 0.0) & (out <= 1.0)))  # sigmoid range sanity
    assert bool(jnp.all(jnp.isfinite(out)))
    print("KERNEL_OK")
</pallas_src>

<mosaic_0001>
module attributes {stable_mosaic.version = 11 : i64} {
  func.func @_conv_leaky_kernel(%arg0: i32, %arg1: memref<16x64xbf16, #tpu.memory_space<vmem>>, %arg2: memref<64x2048xbf16, #tpu.memory_space<vmem>>, %arg3: memref<16x2048xbf16, #tpu.memory_space<vmem>>) attributes {dimension_semantics = [#tpu.dimension_semantics<parallel>], iteration_bounds = array<i64: 1>, scalar_prefetch = 0 : i64, scratch_operands = 0 : i64, tpu.core_type = #tpu.core_type<tc>, window_params = [{pipeline_mode = #tpu.pipeline_mode<synchronous>, transform_indices = @transform_0, window_bounds = array<i64: 16, 64>}, {transform_indices = @transform_1, window_bounds = array<i64: 64, 2048>}, {transform_indices = @transform_2, window_bounds = array<i64: 16, 2048>}]} {
    %c0 = arith.constant 0 : index
    %c0_0 = arith.constant 0 : index
    %0 = vector.load %arg1[%c0, %c0_0] : memref<16x64xbf16, #tpu.memory_space<vmem>>, vector<16x64xbf16>
    %c0_1 = arith.constant 0 : index
    %c0_2 = arith.constant 0 : index
    %1 = vector.load %arg2[%c0_1, %c0_2] : memref<64x2048xbf16, #tpu.memory_space<vmem>>, vector<64x2048xbf16>
    %cst = arith.constant dense<0.000000e+00> : vector<16x2048xf32>
    %2 = tpu.matmul %0, %1, %cst {dimension_numbers = #tpu.dot_dimension_numbers<[1], [0], [0], [1], [0, 0, 1, 1], [], []>} : vector<16x64xbf16>, vector<64x2048xbf16>, vector<16x2048xf32> -> vector<16x2048xf32>
    %cst_3 = arith.constant 0.000000e+00 : f32
    %3 = vector.broadcast %cst_3 : f32 to vector<16x2048xf32>
    %4 = arith.cmpf oge, %2, %3 : vector<16x2048xf32>
    %cst_4 = arith.constant 2.000000e-01 : f32
    %5 = vector.broadcast %cst_4 : f32 to vector<16x2048xf32>
    %6 = arith.mulf %5, %2 : vector<16x2048xf32>
    %7 = arith.select %4, %2, %6 : vector<16x2048xi1>, vector<16x2048xf32>
    %8 = arith.truncf %7 : vector<16x2048xf32> to vector<16x2048xbf16>
    %c0_5 = arith.constant 0 : index
    %c0_6 = arith.constant 0 : index
    %9 = vector.load %arg3[%c0_5, %c0_6] : memref<16x2048xbf16, #tpu.memory_space<vmem>>, vector<16x2048xbf16>
    tpu.vector_store %arg3[%c0_5, %c0_6], %8 {strides = array<i32>} : memref<16x2048xbf16, #tpu.memory_space<vmem>>, vector<16x2048xbf16>,
    return
  }
  func.func @transform_0(%arg0: i32) -> (i32, i32) {
    %c0_i32 = arith.constant 0 : i32
    %c0_i32_0 = arith.constant 0 : i32
    %c0_i32_1 = arith.constant 0 : i32
    return %c0_i32, %c0_i32_0 : i32, i32
  }
  func.func @transform_1(%arg0: i32) -> (i32, i32) {
    %c0_i32 = arith.constant 0 : i32
    %c0_i32_0 = arith.constant 0 : i32
    return %c0_i32, %arg0 : i32, i32
  }
  func.func @transform_2(%arg0: i32) -> (i32, i32) {
    %c0_i32 = arith.constant 0 : i32
    %c0_i32_0 = arith.constant 0 : i32
    return %c0_i32, %arg0 : i32, i32
  }
}

module attributes {stable_mosaic.version = 11 : i64} {
  func.func @_conv_bn_leaky_kernel(%arg0: i32, %arg1: memref<32x256xbf16, #tpu.memory_space<vmem>>, %arg2: memref<256x512xbf16, #tpu.memory_space<vmem>>, %arg3: memref<32x1xf32, #tpu.memory_space<vmem>>, %arg4: memref<32x1xf32, #tpu.memory_space<vmem>>, %arg5: memref<32x512xbf16, #tpu.memory_space<vmem>>) attributes {dimension_semantics = [#tpu.dimension_semantics<arbitrary>], iteration_bounds = array<i64: 1>, scalar_prefetch = 0 : i64, scratch_operands = 0 : i64, tpu.core_type = #tpu.core_type<tc>, window_params = [{pipeline_mode = #tpu.pipeline_mode<synchronous>, transform_indices = @transform_0, window_bounds = array<i64: 32, 256>}, {pipeline_mode = #tpu.pipeline_mode<synchronous>, transform_indices = @transform_1, window_bounds = array<i64: 256, 512>}, {pipeline_mode = #tpu.pipeline_mode<synchronous>, transform_indices = @transform_2, window_bounds = array<i64: 32, 1>}, {pipeline_mode = #tpu.pipeline_mode<synchronous>, transform_indices = @transform_3, window_bounds = array<i64: 32, 1>}, {pipeline_mode = #tpu.pipeline_mode<synchronous>, transform_indices = @transform_4, window_bounds = array<i64: 32, 512>}]} {
    %c0 = arith.constant 0 : index
    %c0_0 = arith.constant 0 : index
    %0 = vector.load %arg1[%c0, %c0_0] : memref<32x256xbf16, #tpu.memory_space<vmem>>, vector<32x256xbf16>
    %c0_1 = arith.constant 0 : index
    %c0_2 = arith.constant 0 : index
    %1 = vector.load %arg2[%c0_1, %c0_2] : memref<256x512xbf16, #tpu.memory_space<vmem>>, vector<256x512xbf16>
    %cst = arith.constant dense<0.000000e+00> : vector<32x512xf32>
    %2 = tpu.matmul %0, %1, %cst {dimension_numbers = #tpu.dot_dimension_numbers<[1], [0], [0], [1], [0, 0, 1, 1], [], []>} : vector<32x256xbf16>, vector<256x512xbf16>, vector<32x512xf32> -> vector<32x512xf32>
    %cst_3 = arith.constant dense<0.000000e+00> : vector<32xf32>
    %3 = vector.multi_reduction <add>, %2, %cst_3 [1] : vector<32x512xf32> to vector<32xf32>
    %4 = vector.shape_cast %3 : vector<32xf32> to vector<32x1xf32>
    %cst_4 = arith.constant 0.001953125 : f32
    %5 = vector.broadcast %cst_4 : f32 to vector<32x1xf32>
    %6 = arith.mulf %4, %5 : vector<32x1xf32>
    %7 = vector.broadcast %6 : vector<32x1xf32> to vector<32x512xf32>
    %8 = arith.subf %2, %7 : vector<32x512xf32>
    %9 = arith.mulf %8, %8 : vector<32x512xf32>
    %cst_5 = arith.constant dense<0.000000e+00> : vector<32xf32>
    %10 = vector.multi_reduction <add>, %9, %cst_5 [1] : vector<32x512xf32> to vector<32xf32>
    %11 = vector.shape_cast %10 : vector<32xf32> to vector<32x1xf32>
    %cst_6 = arith.constant 0.001953125 : f32
    %12 = vector.broadcast %cst_6 : f32 to vector<32x1xf32>
    %13 = arith.mulf %11, %12 : vector<32x1xf32>
    %c0_7 = arith.constant 0 : index
    %c0_8 = arith.constant 0 : index
    %14 = vector.load %arg3[%c0_7, %c0_8] : memref<32x1xf32, #tpu.memory_space<vmem>>, vector<32x1xf32>
    %cst_9 = arith.constant 9.99999974E-6 : f32
    %15 = vector.broadcast %cst_9 : f32 to vector<32x1xf32>
    %16 = arith.addf %13, %15 : vector<32x1xf32>
    %17 = math.rsqrt %16 : vector<32x1xf32>
    %18 = arith.mulf %14, %17 : vector<32x1xf32>
    %19 = vector.broadcast %18 : vector<32x1xf32> to vector<32x512xf32>
    %20 = arith.mulf %8, %19 : vector<32x512xf32>
    %c0_10 = arith.constant 0 : index
    %c0_11 = arith.constant 0 : index
    %21 = vector.load %arg4[%c0_10, %c0_11] : memref<32x1xf32, #tpu.memory_space<vmem>>, vector<32x1xf32>
    %22 = vector.broadcast %21 : vector<32x1xf32> to vector<32x512xf32>
    %23 = arith.addf %20, %22 : vector<32x512xf32>
    %cst_12 = arith.constant 0.000000e+00 : f32
    %24 = vector.broadcast %cst_12 : f32 to vector<32x512xf32>
    %25 = arith.cmpf oge, %23, %24 : vector<32x512xf32>
    %cst_13 = arith.constant 2.000000e-01 : f32
    %26 = vector.broadcast %cst_13 : f32 to vector<32x512xf32>
    %27 = arith.mulf %26, %23 : vector<32x512xf32>
    %28 = arith.select %25, %23, %27 : vector<32x512xi1>, vector<32x512xf32>
    %29 = arith.truncf %28 : vector<32x512xf32> to vector<32x512xbf16>
    %c0_14 = arith.constant 0 : index
    %c0_15 = arith.constant 0 : index
    %30 = vector.load %arg5[%c0_14, %c0_15] : memref<32x512xbf16, #tpu.memory_space<vmem>>, vector<32x512xbf16>
    tpu.vector_store %arg5[%c0_14, %c0_15], %29 {strides = array<i32>} : memref<32x512xbf16, #tpu.memory_space<vmem>>, vector<32x512xbf16>,
    return
  }
  func.func @transform_0(%arg0: i32) -> (i32, i32) {
    %c0_i32 = arith.constant 0 : i32
    %c0_i32_0 = arith.constant 0 : i32
    %c0_i32_1 = arith.constant 0 : i32
    return %c0_i32, %c0_i32_0 : i32, i32
  }
  func.func @transform_1(%arg0: i32) -> (i32, i32) {
    %c0_i32 = arith.constant 0 : i32
    %c0_i32_0 = arith.constant 0 : i32
    %c0_i32_1 = arith.constant 0 : i32
    return %c0_i32, %c0_i32_0 : i32, i32
  }
  func.func @transform_2(%arg0: i32) -> (i32, i32) {
    %c0_i32 = arith.constant 0 : i32
    %c0_i32_0 = arith.constant 0 : i32
    %c0_i32_1 = arith.constant 0 : i32
    return %c0_i32, %c0_i32_0 : i32, i32
  }
  func.func @transform_3(%arg0: i32) -> (i32, i32) {
    %c0_i32 = arith.constant 0 : i32
    %c0_i32_0 = arith.constant 0 : i32
    %c0_i32_1 = arith.constant 0 : i32
    return %c0_i32, %c0_i32_0 : i32, i32
  }
  func.func @transform_4(%arg0: i32) -> (i32, i32) {
    %c0_i32 = arith.constant 0 : i32
    %c0_i32_0 = arith.constant 0 : i32
    %c0_i32_1 = arith.constant 0 : i32
    return %c0_i32, %c0_i32_0 : i32, i32
  }
}

module attributes {stable_mosaic.version = 11 : i64} {
  func.func @_conv_bn_leaky_kernel(%arg0: i32, %arg1: memref<64x512xbf16, #tpu.memory_space<vmem>>, %arg2: memref<512x128xbf16, #tpu.memory_space<vmem>>, %arg3: memref<64x1xf32, #tpu.memory_space<vmem>>, %arg4: memref<64x1xf32, #tpu.memory_space<vmem>>, %arg5: memref<64x128xbf16, #tpu.memory_space<vmem>>) attributes {dimension_semantics = [#tpu.dimension_semantics<arbitrary>], iteration_bounds = array<i64: 1>, scalar_prefetch = 0 : i64, scratch_operands = 0 : i64, tpu.core_type = #tpu.core_type<tc>, window_params = [{pipeline_mode = #tpu.pipeline_mode<synchronous>, transform_indices = @transform_0, window_bounds = array<i64: 64, 512>}, {pipeline_mode = #tpu.pipeline_mode<synchronous>, transform_indices = @transform_1, window_bounds = array<i64: 512, 128>}, {pipeline_mode = #tpu.pipeline_mode<synchronous>, transform_indices = @transform_2, window_bounds = array<i64: 64, 1>}, {pipeline_mode = #tpu.pipeline_mode<synchronous>, transform_indices = @transform_3, window_bounds = array<i64: 64, 1>}, {pipeline_mode = #tpu.pipeline_mode<synchronous>, transform_indices = @transform_4, window_bounds = array<i64: 64, 128>}]} {
    %c0 = arith.constant 0 : index
    %c0_0 = arith.constant 0 : index
    %0 = vector.load %arg1[%c0, %c0_0] : memref<64x512xbf16, #tpu.memory_space<vmem>>, vector<64x512xbf16>
    %c0_1 = arith.constant 0 : index
    %c0_2 = arith.constant 0 : index
    %1 = vector.load %arg2[%c0_1, %c0_2] : memref<512x128xbf16, #tpu.memory_space<vmem>>, vector<512x128xbf16>
    %cst = arith.constant dense<0.000000e+00> : vector<64x128xf32>
    %2 = tpu.matmul %0, %1, %cst {dimension_numbers = #tpu.dot_dimension_numbers<[1], [0], [0], [1], [0, 0, 1, 1], [], []>} : vector<64x512xbf16>, vector<512x128xbf16>, vector<64x128xf32> -> vector<64x128xf32>
    %cst_3 = arith.constant dense<0.000000e+00> : vector<64xf32>
    %3 = vector.multi_reduction <add>, %2, %cst_3 [1] : vector<64x128xf32> to vector<64xf32>
    %4 = vector.shape_cast %3 : vector<64xf32> to vector<64x1xf32>
    %cst_4 = arith.constant 7.812500e-03 : f32
    %5 = vector.broadcast %cst_4 : f32 to vector<64x1xf32>
    %6 = arith.mulf %4, %5 : vector<64x1xf32>
    %7 = vector.broadcast %6 : vector<64x1xf32> to vector<64x128xf32>
    %8 = arith.subf %2, %7 : vector<64x128xf32>
    %9 = arith.mulf %8, %8 : vector<64x128xf32>
    %cst_5 = arith.constant dense<0.000000e+00> : vector<64xf32>
    %10 = vector.multi_reduction <add>, %9, %cst_5 [1] : vector<64x128xf32> to vector<64xf32>
    %11 = vector.shape_cast %10 : vector<64xf32> to vector<64x1xf32>
    %cst_6 = arith.constant 7.812500e-03 : f32
    %12 = vector.broadcast %cst_6 : f32 to vector<64x1xf32>
    %13 = arith.mulf %11, %12 : vector<64x1xf32>
    %c0_7 = arith.constant 0 : index
    %c0_8 = arith.constant 0 : index
    %14 = vector.load %arg3[%c0_7, %c0_8] : memref<64x1xf32, #tpu.memory_space<vmem>>, vector<64x1xf32>
    %cst_9 = arith.constant 9.99999974E-6 : f32
    %15 = vector.broadcast %cst_9 : f32 to vector<64x1xf32>
    %16 = arith.addf %13, %15 : vector<64x1xf32>
    %17 = math.rsqrt %16 : vector<64x1xf32>
    %18 = arith.mulf %14, %17 : vector<64x1xf32>
    %19 = vector.broadcast %18 : vector<64x1xf32> to vector<64x128xf32>
    %20 = arith.mulf %8, %19 : vector<64x128xf32>
    %c0_10 = arith.constant 0 : index
    %c0_11 = arith.constant 0 : index
    %21 = vector.load %arg4[%c0_10, %c0_11] : memref<64x1xf32, #tpu.memory_space<vmem>>, vector<64x1xf32>
    %22 = vector.broadcast %21 : vector<64x1xf32> to vector<64x128xf32>
    %23 = arith.addf %20, %22 : vector<64x128xf32>
    %cst_12 = arith.constant 0.000000e+00 : f32
    %24 = vector.broadcast %cst_12 : f32 to vector<64x128xf32>
    %25 = arith.cmpf oge, %23, %24 : vector<64x128xf32>
    %cst_13 = arith.constant 2.000000e-01 : f32
    %26 = vector.broadcast %cst_13 : f32 to vector<64x128xf32>
    %27 = arith.mulf %26, %23 : vector<64x128xf32>
    %28 = arith.select %25, %23, %27 : vector<64x128xi1>, vector<64x128xf32>
    %29 = arith.truncf %28 : vector<64x128xf32> to vector<64x128xbf16>
    %c0_14 = arith.constant 0 : index
    %c0_15 = arith.constant 0 : index
    %30 = vector.load %arg5[%c0_14, %c0_15] : memref<64x128xbf16, #tpu.memory_space<vmem>>, vector<64x128xbf16>
    tpu.vector_store %arg5[%c0_14, %c0_15], %29 {strides = array<i32>} : memref<64x128xbf16, #tpu.memory_space<vmem>>, vector<64x128xbf16>,
    return
  }
  func.func @transform_0(%arg0: i32) -> (i32, i32) {
    %c0_i32 = arith.constant 0 : i32
    %c0_i32_0 = arith.constant 0 : i32
    %c0_i32_1 = arith.constant 0 : i32
    return %c0_i32, %c0_i32_0 : i32, i32
  }
  func.func @transform_1(%arg0: i32) -> (i32, i32) {
    %c0_i32 = arith.constant 0 : i32
    %c0_i32_0 = arith.constant 0 : i32
    %c0_i32_1 = arith.constant 0 : i32
    return %c0_i32, %c0_i32_0 : i32, i32
  }
  func.func @transform_2(%arg0: i32) -> (i32, i32) {
    %c0_i32 = arith.constant 0 : i32
    %c0_i32_0 = arith.constant 0 : i32
    %c0_i32_1 = arith.constant 0 : i32
    return %c0_i32, %c0_i32_0 : i32, i32
  }
  func.func @transform_3(%arg0: i32) -> (i32, i32) {
    %c0_i32 = arith.constant 0 : i32
    %c0_i32_0 = arith.constant 0 : i32
    %c0_i32_1 = arith.constant 0 : i32
    return %c0_i32, %c0_i32_0 : i32, i32
  }
  func.func @transform_4(%arg0: i32) -> (i32, i32) {
    %c0_i32 = arith.constant 0 : i32
    %c0_i32_0 = arith.constant 0 : i32
    %c0_i32_1 = arith.constant 0 : i32
    return %c0_i32, %c0_i32_0 : i32, i32
  }
}

module attributes {stable_mosaic.version = 11 : i64} {
  func.func @_conv_bn_leaky_head_kernel(%arg0: i32, %arg1: memref<128x1024xbf16, #tpu.memory_space<vmem>>, %arg2: memref<1024x32xbf16, #tpu.memory_space<vmem>>, %arg3: memref<128x1xf32, #tpu.memory_space<vmem>>, %arg4: memref<128x1xf32, #tpu.memory_space<vmem>>, %arg5: memref<128x32xf32, #tpu.memory_space<vmem>>, %arg6: memref<32x2xf32, #tpu.memory_space<vmem>>, %arg7: memref<1x2xf32, #tpu.memory_space<vmem>>) attributes {dimension_semantics = [#tpu.dimension_semantics<arbitrary>], iteration_bounds = array<i64: 1>, scalar_prefetch = 0 : i64, scratch_operands = 0 : i64, tpu.core_type = #tpu.core_type<tc>, window_params = [{pipeline_mode = #tpu.pipeline_mode<synchronous>, transform_indices = @transform_0, window_bounds = array<i64: 128, 1024>}, {pipeline_mode = #tpu.pipeline_mode<synchronous>, transform_indices = @transform_1, window_bounds = array<i64: 1024, 32>}, {pipeline_mode = #tpu.pipeline_mode<synchronous>, transform_indices = @transform_2, window_bounds = array<i64: 128, 1>}, {pipeline_mode = #tpu.pipeline_mode<synchronous>, transform_indices = @transform_3, window_bounds = array<i64: 128, 1>}, {pipeline_mode = #tpu.pipeline_mode<synchronous>, transform_indices = @transform_4, window_bounds = array<i64: 128, 32>}, {pipeline_mode = #tpu.pipeline_mode<synchronous>, transform_indices = @transform_5, window_bounds = array<i64: 32, 2>}, {pipeline_mode = #tpu.pipeline_mode<synchronous>, transform_indices = @transform_6, window_bounds = array<i64: 1, 2>}]} {
    %c0 = arith.constant 0 : index
    %c0_0 = arith.constant 0 : index
    %0 = vector.load %arg1[%c0, %c0_0] : memref<128x1024xbf16, #tpu.memory_space<vmem>>, vector<128x1024xbf16>
    %c0_1 = arith.constant 0 : index
    %c0_2 = arith.constant 0 : index
    %1 = vector.load %arg2[%c0_1, %c0_2] : memref<1024x32xbf16, #tpu.memory_space<vmem>>, vector<1024x32xbf16>
    %cst = arith.constant dense<0.000000e+00> : vector<128x32xf32>
    %2 = tpu.matmul %0, %1, %cst {dimension_numbers = #tpu.dot_dimension_numbers<[1], [0], [0], [1], [0, 0, 1, 1], [], []>} : vector<128x1024xbf16>, vector<1024x32xbf16>, vector<128x32xf32> -> vector<128x32xf32>
    %cst_3 = arith.constant dense<0.000000e+00> : vector<128xf32>
    %3 = vector.multi_reduction <add>, %2, %cst_3 [1] : vector<128x32xf32> to vector<128xf32>
    %4 = vector.shape_cast %3 : vector<128xf32> to vector<128x1xf32>
    %cst_4 = arith.constant 3.125000e-02 : f32
    %5 = vector.broadcast %cst_4 : f32 to vector<128x1xf32>
    %6 = arith.mulf %4, %5 : vector<128x1xf32>
    %7 = vector.broadcast %6 : vector<128x1xf32> to vector<128x32xf32>
    %8 = arith.subf %2, %7 : vector<128x32xf32>
    %9 = arith.mulf %8, %8 : vector<128x32xf32>
    %cst_5 = arith.constant dense<0.000000e+00> : vector<128xf32>
    %10 = vector.multi_reduction <add>, %9, %cst_5 [1] : vector<128x32xf32> to vector<128xf32>
    %11 = vector.shape_cast %10 : vector<128xf32> to vector<128x1xf32>
    %cst_6 = arith.constant 3.125000e-02 : f32
    %12 = vector.broadcast %cst_6 : f32 to vector<128x1xf32>
    %13 = arith.mulf %11, %12 : vector<128x1xf32>
    %c0_7 = arith.constant 0 : index
    %c0_8 = arith.constant 0 : index
    %14 = vector.load %arg3[%c0_7, %c0_8] : memref<128x1xf32, #tpu.memory_space<vmem>>, vector<128x1xf32>
    %cst_9 = arith.constant 9.99999974E-6 : f32
    %15 = vector.broadcast %cst_9 : f32 to vector<128x1xf32>
    %16 = arith.addf %13, %15 : vector<128x1xf32>
    %17 = math.rsqrt %16 : vector<128x1xf32>
    %18 = arith.mulf %14, %17 : vector<128x1xf32>
    %19 = vector.broadcast %18 : vector<128x1xf32> to vector<128x32xf32>
    %20 = arith.mulf %8, %19 : vector<128x32xf32>
    %c0_10 = arith.constant 0 : index
    %c0_11 = arith.constant 0 : index
    %21 = vector.load %arg4[%c0_10, %c0_11] : memref<128x1xf32, #tpu.memory_space<vmem>>, vector<128x1xf32>
    %22 = vector.broadcast %21 : vector<128x1xf32> to vector<128x32xf32>
    %23 = arith.addf %20, %22 : vector<128x32xf32>
    %cst_12 = arith.constant 0.000000e+00 : f32
    %24 = vector.broadcast %cst_12 : f32 to vector<128x32xf32>
    %25 = arith.cmpf oge, %23, %24 : vector<128x32xf32>
    %cst_13 = arith.constant 2.000000e-01 : f32
    %26 = vector.broadcast %cst_13 : f32 to vector<128x32xf32>
    %27 = arith.mulf %26, %23 : vector<128x32xf32>
    %28 = arith.select %25, %23, %27 : vector<128x32xi1>, vector<128x32xf32>
    %c0_14 = arith.constant 0 : index
    %c0_15 = arith.constant 0 : index
    %29 = vector.load %arg5[%c0_14, %c0_15] : memref<128x32xf32, #tpu.memory_space<vmem>>, vector<128x32xf32>
    %30 = arith.mulf %28, %29 : vector<128x32xf32>
    %c0_16 = arith.constant 0 : index
    %c0_17 = arith.constant 0 : index
    %31 = vector.load %arg6[%c0_16, %c0_17] : memref<32x2xf32, #tpu.memory_space<vmem>>, vector<32x2xf32>
    %cst_18 = arith.constant dense<0.000000e+00> : vector<128x2xf32>
    %32 = tpu.matmul %30, %31, %cst_18 {dimension_numbers = #tpu.dot_dimension_numbers<[1], [0], [0], [1], [0, 0, 1, 1], [], []>} : vector<128x32xf32>, vector<32x2xf32>, vector<128x2xf32> -> vector<128x2xf32>
    %cst_19 = arith.constant dense<0.000000e+00> : vector<2xf32>
    %33 = vector.multi_reduction <add>, %32, %cst_19 [0] : vector<128x2xf32> to vector<2xf32>
    %34 = vector.shape_cast %33 : vector<2xf32> to vector<1x2xf32>
    %35 = math.absf %34 : vector<1x2xf32>
    %cst_20 = arith.constant 0.000000e+00 : f32
    %36 = vector.broadcast %cst_20 : f32 to vector<1x2xf32>
    %37 = arith.subf %36, %35 : vector<1x2xf32>
    %38 = math.exp %37 : vector<1x2xf32>
    %cst_21 = arith.constant 0.000000e+00 : f32
    %39 = vector.broadcast %cst_21 : f32 to vector<1x2xf32>
    %40 = arith.cmpf oge, %34, %39 : vector<1x2xf32>
    %cst_22 = arith.constant 1.000000e+00 : f32
    %41 = vector.broadcast %cst_22 : f32 to vector<1x2xf32>
    %42 = arith.addf %41, %38 : vector<1x2xf32>
    %cst_23 = arith.constant 1.000000e+00 : f32
    %43 = vector.broadcast %cst_23 : f32 to vector<1x2xf32>
    %44 = arith.divf %43, %42 : vector<1x2xf32>
    %cst_24 = arith.constant 1.000000e+00 : f32
    %45 = vector.broadcast %cst_24 : f32 to vector<1x2xf32>
    %46 = arith.addf %45, %38 : vector<1x2xf32>
    %47 = arith.divf %38, %46 : vector<1x2xf32>
    %48 = arith.select %40, %44, %47 : vector<1x2xi1>, vector<1x2xf32>
    %c0_25 = arith.constant 0 : index
    %c0_26 = arith.constant 0 : index
    %49 = vector.load %arg7[%c0_25, %c0_26] : memref<1x2xf32, #tpu.memory_space<vmem>>, vector<1x2xf32>
    tpu.vector_store %arg7[%c0_25, %c0_26], %48 {strides = array<i32>} : memref<1x2xf32, #tpu.memory_space<vmem>>, vector<1x2xf32>,
    return
  }
  func.func @transform_0(%arg0: i32) -> (i32, i32) {
    %c0_i32 = arith.constant 0 : i32
    %c0_i32_0 = arith.constant 0 : i32
    %c0_i32_1 = arith.constant 0 : i32
    return %c0_i32, %c0_i32_0 : i32, i32
  }
  func.func @transform_1(%arg0: i32) -> (i32, i32) {
    %c0_i32 = arith.constant 0 : i32
    %c0_i32_0 = arith.constant 0 : i32
    %c0_i32_1 = arith.constant 0 : i32
    return %c0_i32, %c0_i32_0 : i32, i32
  }
  func.func @transform_2(%arg0: i32) -> (i32, i32) {
    %c0_i32 = arith.constant 0 : i32
    %c0_i32_0 = arith.constant 0 : i32
    %c0_i32_1 = arith.constant 0 : i32
    return %c0_i32, %c0_i32_0 : i32, i32
  }
  func.func @transform_3(%arg0: i32) -> (i32, i32) {
    %c0_i32 = arith.constant 0 : i32
    %c0_i32_0 = arith.constant 0 : i32
    %c0_i32_1 = arith.constant 0 : i32
    return %c0_i32, %c0_i32_0 : i32, i32
  }
  func.func @transform_4(%arg0: i32) -> (i32, i32) {
    %c0_i32 = arith.constant 0 : i32
    %c0_i32_0 = arith.constant 0 : i32
    %c0_i32_1 = arith.constant 0 : i32
    return %c0_i32, %c0_i32_0 : i32, i32
  }
  func.func @transform_5(%arg0: i32) -> (i32, i32) {
    %c0_i32 = arith.constant 0 : i32
    %c0_i32_0 = arith.constant 0 : i32
    %c0_i32_1 = arith.constant 0 : i32
    return %c0_i32, %c0_i32_0 : i32, i32
  }
  func.func @transform_6(%arg0: i32) -> (i32, i32) {
    %c0_i32 = arith.constant 0 : i32
    %c0_i32_0 = arith.constant 0 : i32
    %c0_i32_1 = arith.constant 0 : i32
    return %c0_i32, %c0_i32_0 : i32, i32
  }
}

</mosaic_0001>

<llo_original>
// kernel: discriminator_forward.4
$region0: #{discriminator_forward.4}
  #allocation0 [shape = 'u32[]', space=smem, size = 0x4, offset = 0x4, fixed_abs, tag = 'smem constant byte address 0x4 - core index']
  #allocation1 [shape = 'u32[144,128]{1,0:T(1,128)}', space=vmem, size = 0x12000, scoped, tag = 'internal scratch']
  %s0 = inlined_call_operand.vmem [shape: bf16[16,64], index: 0, kind: input, shape index: {}]
  %s1 = inlined_call_operand.vmem [shape: bf16[64,2048], index: 1, kind: input, shape index: {}]
  %s2 = inlined_call_operand.vmem [shape: bf16[16,2048], index: 2, kind: output, shape index: {}]
  %s3 = sld [smem:[#allocation0]]
  $region18: #{discriminator_forward.4} parent=0
    _
  %s5 = ssub.s32 1, %s3
  %s6 = scalar_select 0, %s5, %s3
  // Predicated region
  $region2: #{discriminator_forward.4} parent=0 // pred_check
    _
  $region3: #{discriminator_forward.4} parent=0 // pred_check_branch
    %8 = sbr.rel (0) target = $region5
  $region4: #{discriminator_forward.4} parent=0 // pred_region
    _
  $region5: #{discriminator_forward.4} parent=0 // pred_fallthru
    _
  // Predicated region
  $region6: #{discriminator_forward.4} parent=0 // pred_check
    _
  $region7: #{discriminator_forward.4} parent=0 // pred_check_branch
    %10 = sbr.rel (0) target = $region9
  $region8: #{discriminator_forward.4} parent=0 // pred_region
    _
  $region9: #{discriminator_forward.4} parent=0 // pred_fallthru
    _
  %v12 = vld [vmem:[%s0] sm:$0xf]
  %v13 = vld [vmem:[%s0 + $0x4] sm:$0xf]
  %v14 = vld [vmem:[%s1] sm:$0xff]
  %v15 = vld [vmem:[%s1 + $0x8] sm:$0xff]
  %v16 = vld [vmem:[%s1 + $0x10] sm:$0xff]
  %v17 = vld [vmem:[%s1 + $0x18] sm:$0xff]
  %v18 = vld [vmem:[%s1 + $0x20] sm:$0xff]
  %v19 = vld [vmem:[%s1 + $0x28] sm:$0xff]
  %v20 = vld [vmem:[%s1 + $0x30] sm:$0xff]
  %v21 = vld [vmem:[%s1 + $0x38] sm:$0xff]
  %v22 = vld [vmem:[%s1 + $0x40] sm:$0xff]
  %v23 = vld [vmem:[%s1 + $0x48] sm:$0xff]
  %v24 = vld [vmem:[%s1 + $0x50] sm:$0xff]
  %v25 = vld [vmem:[%s1 + $0x58] sm:$0xff]
  %v26 = vld [vmem:[%s1 + $0x60] sm:$0xff]
  %v27 = vld [vmem:[%s1 + $0x68] sm:$0xff]
  %v28 = vld [vmem:[%s1 + $0x70] sm:$0xff]
  %v29 = vld [vmem:[%s1 + $0x78] sm:$0xff]
  %v30 = vld [vmem:[%s1 + $0x80] sm:$0xff]
  %v31 = vld [vmem:[%s1 + $0x88] sm:$0xff]
  %v32 = vld [vmem:[%s1 + $0x90] sm:$0xff]
  %v33 = vld [vmem:[%s1 + $0x98] sm:$0xff]
  %v34 = vld [vmem:[%s1 + $0xa0] sm:$0xff]
  %v35 = vld [vmem:[%s1 + $0xa8] sm:$0xff]
  %v36 = vld [vmem:[%s1 + $0xb0] sm:$0xff]
  %v37 = vld [vmem:[%s1 + $0xb8] sm:$0xff]
  %v38 = vld [vmem:[%s1 + $0xc0] sm:$0xff]
  %v39 = vld [vmem:[%s1 + $0xc8] sm:$0xff]
  %v40 = vld [vmem:[%s1 + $0xd0] sm:$0xff]
  %v41 = vld [vmem:[%s1 + $0xd8] sm:$0xff]
  %v42 = vld [vmem:[%s1 + $0xe0] sm:$0xff]
  %v43 = vld [vmem:[%s1 + $0xe8] sm:$0xff]
  %v44 = vld [vmem:[%s1 + $0xf0] sm:$0xff]
  %v45 = vld [vmem:[%s1 + $0xf8] sm:$0xff]
  %v46 = vld [vmem:[%s1 + $0x100] sm:$0xff]
  %v47 = vld [vmem:[%s1 + $0x108] sm:$0xff]
  %v48 = vld [vmem:[%s1 + $0x110] sm:$0xff]
  %v49 = vld [vmem:[%s1 + $0x118] sm:$0xff]
  %v50 = vld [vmem:[%s1 + $0x120] sm:$0xff]
  %v51 = vld [vmem:[%s1 + $0x128] sm:$0xff]
  %v52 = vld [vmem:[%s1 + $0x130] sm:$0xff]
  %v53 = vld [vmem:[%s1 + $0x138] sm:$0xff]
  %v54 = vld [vmem:[%s1 + $0x140] sm:$0xff]
  %v55 = vld [vmem:[%s1 + $0x148] sm:$0xff]
  %v56 = vld [vmem:[%s1 + $0x150] sm:$0xff]
  %v57 = vld [vmem:[%s1 + $0x158] sm:$0xff]
  %v58 = vld [vmem:[%s1 + $0x160] sm:$0xff]
  %v59 = vld [vmem:[%s1 + $0x168] sm:$0xff]
  %v60 = vld [vmem:[%s1 + $0x170] sm:$0xff]
  %v61 = vld [vmem:[%s1 + $0x178] sm:$0xff]
  %v62 = vld [vmem:[%s1 + $0x180] sm:$0xff]
  %v63 = vld [vmem:[%s1 + $0x188] sm:$0xff]
  %v64 = vld [vmem:[%s1 + $0x190] sm:$0xff]
  %v65 = vld [vmem:[%s1 + $0x198] sm:$0xff]
  %v66 = vld [vmem:[%s1 + $0x1a0] sm:$0xff]
  %v67 = vld [vmem:[%s1 + $0x1a8] sm:$0xff]
  %v68 = vld [vmem:[%s1 + $0x1b0] sm:$0xff]
  %v69 = vld [vmem:[%s1 + $0x1b8] sm:$0xff]
  %v70 = vld [vmem:[%s1 + $0x1c0] sm:$0xff]
  %v71 = vld [vmem:[%s1 + $0x1c8] sm:$0xff]
  %v72 = vld [vmem:[%s1 + $0x1d0] sm:$0xff]
  %v73 = vld [vmem:[%s1 + $0x1d8] sm:$0xff]
  %v74 = vld [vmem:[%s1 + $0x1e0] sm:$0xff]
  %v75 = vld [vmem:[%s1 + $0x1e8] sm:$0xff]
  %v76 = vld [vmem:[%s1 + $0x1f0] sm:$0xff]
  %v77 = vld [vmem:[%s1 + $0x1f8] sm:$0xff]
  %v80 = vunpack.c.l.b16 %v12
  %v81 = vunpack.c.l.b16 %v13
  %v82 = vpack.c.b16 %v81, %v80
  %v147 = vunpack.c.l.b16 %v14
  %v148 = vunpack.c.h.b16 %v14
  %v149 = vunpack.c.l.b16 %v15
  %v150 = vunpack.c.h.b16 %v15
  %v151 = vunpack.c.l.b16 %v16
  %v152 = vunpack.c.h.b16 %v16
  %v153 = vunpack.c.l.b16 %v17
  %v154 = vunpack.c.h.b16 %v17
  %v155 = vunpack.c.l.b16 %v18
  %v156 = vunpack.c.h.b16 %v18
  %v157 = vunpack.c.l.b16 %v19
  %v158 = vunpack.c.h.b16 %v19
  %v159 = vunpack.c.l.b16 %v20
  %v160 = vunpack.c.h.b16 %v20
  %v161 = vunpack.c.l.b16 %v21
  %v162 = vunpack.c.h.b16 %v21
  %v163 = vunpack.c.l.b16 %v22
  %v164 = vunpack.c.h.b16 %v22
  %v165 = vunpack.c.l.b16 %v23
  %v166 = vunpack.c.h.b16 %v23
  %v167 = vunpack.c.l.b16 %v24
  %v168 = vunpack.c.h.b16 %v24
  %v169 = vunpack.c.l.b16 %v25
  %v170 = vunpack.c.h.b16 %v25
  %v171 = vunpack.c.l.b16 %v26
  %v172 = vunpack.c.h.b16 %v26
  %v173 = vunpack.c.l.b16 %v27
  %v174 = vunpack.c.h.b16 %v27
  %v175 = vunpack.c.l.b16 %v28
  %v176 = vunpack.c.h.b16 %v28
  %v177 = vunpack.c.l.b16 %v29
  %v178 = vunpack.c.h.b16 %v29
  %v179 = vunpack.c.l.b16 %v30
  %v180 = vunpack.c.h.b16 %v30
  %v181 = vunpack.c.l.b16 %v31
  %v182 = vunpack.c.h.b16 %v31
  %v183 = vunpack.c.l.b16 %v32
  %v184 = vunpack.c.h.b16 %v32
  %v185 = vunpack.c.l.b16 %v33
  %v186 = vunpack.c.h.b16 %v33
  %v187 = vunpack.c.l.b16 %v34
  %v188 = vunpack.c.h.b16 %v34
  %v189 = vunpack.c.l.b16 %v35
  %v190 = vunpack.c.h.b16 %v35
  %v191 = vunpack.c.l.b16 %v36
  %v192 = vunpack.c.h.b16 %v36
  %v193 = vunpack.c.l.b16 %v37
  %v194 = vunpack.c.h.b16 %v37
  %v195 = vunpack.c.l.b16 %v38
  %v196 = vunpack.c.h.b16 %v38
  %v197 = vunpack.c.l.b16 %v39
  %v198 = vunpack.c.h.b16 %v39
  %v199 = vunpack.c.l.b16 %v40
  %v200 = vunpack.c.h.b16 %v40
  %v201 = vunpack.c.l.b16 %v41
  %v202 = vunpack.c.h.b16 %v41
  %v203 = vunpack.c.l.b16 %v42
  %v204 = vunpack.c.h.b16 %v42
  %v205 = vunpack.c.l.b16 %v43
  %v206 = vunpack.c.h.b16 %v43
  %v207 = vunpack.c.l.b16 %v44
  %v208 = vunpack.c.h.b16 %v44
  %v209 = vunpack.c.l.b16 %v45
  %v210 = vunpack.c.h.b16 %v45
  %v211 = vunpack.c.l.b16 %v46
  %v212 = vunpack.c.h.b16 %v46
  %v213 = vunpack.c.l.b16 %v47
  %v214 = vunpack.c.h.b16 %v47
  %v215 = vunpack.c.l.b16 %v48
  %v216 = vunpack.c.h.b16 %v48
  %v217 = vunpack.c.l.b16 %v49
  %v218 = vunpack.c.h.b16 %v49
  %v219 = vunpack.c.l.b16 %v50
  %v220 = vunpack.c.h.b16 %v50
  %v221 = vunpack.c.l.b16 %v51
  %v222 = vunpack.c.h.b16 %v51
  %v223 = vunpack.c.l.b16 %v52
  %v224 = vunpack.c.h.b16 %v52
  %v225 = vunpack.c.l.b16 %v53
  %v226 = vunpack.c.h.b16 %v53
  %v227 = vunpack.c.l.b16 %v54
  %v228 = vunpack.c.h.b16 %v54
  %v229 = vunpack.c.l.b16 %v55
  %v230 = vunpack.c.h.b16 %v55
  %v231 = vunpack.c.l.b16 %v56
  %v232 = vunpack.c.h.b16 %v56
  %v233 = vunpack.c.l.b16 %v57
  %v234 = vunpack.c.h.b16 %v57
  %v235 = vunpack.c.l.b16 %v58
  %v236 = vunpack.c.h.b16 %v58
  %v237 = vunpack.c.l.b16 %v59
  %v238 = vunpack.c.h.b16 %v59
  %v239 = vunpack.c.l.b16 %v60
  %v240 = vunpack.c.h.b16 %v60
  %v241 = vunpack.c.l.b16 %v61
  %v242 = vunpack.c.h.b16 %v61
  %v243 = vunpack.c.l.b16 %v62
  %v244 = vunpack.c.h.b16 %v62
  %v245 = vunpack.c.l.b16 %v63
  %v246 = vunpack.c.h.b16 %v63
  %v247 = vunpack.c.l.b16 %v64
  %v248 = vunpack.c.h.b16 %v64
  %v249 = vunpack.c.l.b16 %v65
  %v250 = vunpack.c.h.b16 %v65
  %v251 = vunpack.c.l.b16 %v66
  %v252 = vunpack.c.h.b16 %v66
  %v253 = vunpack.c.l.b16 %v67
  %v254 = vunpack.c.h.b16 %v67
  %v255 = vunpack.c.l.b16 %v68
  %v256 = vunpack.c.h.b16 %v68
  %v257 = vunpack.c.l.b16 %v69
  %v258 = vunpack.c.h.b16 %v69
  %v259 = vunpack.c.l.b16 %v70
  %v260 = vunpack.c.h.b16 %v70
  %v261 = vunpack.c.l.b16 %v71
  %v262 = vunpack.c.h.b16 %v71
  %v263 = vunpack.c.l.b16 %v72
  %v264 = vunpack.c.h.b16 %v72
  %v265 = vunpack.c.l.b16 %v73
  %v266 = vunpack.c.h.b16 %v73
  %v267 = vunpack.c.l.b16 %v74
  %v268 = vunpack.c.h.b16 %v74
  %v269 = vunpack.c.l.b16 %v75
  %v270 = vunpack.c.h.b16 %v75
  %v271 = vunpack.c.l.b16 %v76
  %v272 = vunpack.c.h.b16 %v76
  %v273 = vunpack.c.l.b16 %v77
  %v274 = vunpack.c.h.b16 %v77
  %v275 = vpack.c.b16 %v163, %v147
  %v276 = vpack.c.b16 %v164, %v148
  %v277 = vpack.c.b16 %v165, %v149
  %v278 = vpack.c.b16 %v166, %v150
  %v279 = vpack.c.b16 %v167, %v151
  %v280 = vpack.c.b16 %v168, %v152
  %v281 = vpack.c.b16 %v169, %v153
  %v282 = vpack.c.b16 %v170, %v154
  %v283 = vpack.c.b16 %v171, %v155
  %v284 = vpack.c.b16 %v172, %v156
  %v285 = vpack.c.b16 %v173, %v157
  %v286 = vpack.c.b16 %v174, %v158
  %v287 = vpack.c.b16 %v175, %v159
  %v288 = vpack.c.b16 %v176, %v160
  %v289 = vpack.c.b16 %v177, %v161
  %v290 = vpack.c.b16 %v178, %v162
  %v291 = vpack.c.b16 %v195, %v179
  %v292 = vpack.c.b16 %v196, %v180
  %v293 = vpack.c.b16 %v197, %v181
  %v294 = vpack.c.b16 %v198, %v182
  %v295 = vpack.c.b16 %v199, %v183
  %v296 = vpack.c.b16 %v200, %v184
  %v297 = vpack.c.b16 %v201, %v185
  %v298 = vpack.c.b16 %v202, %v186
  %v299 = vpack.c.b16 %v203, %v187
  %v300 = vpack.c.b16 %v204, %v188
  %v301 = vpack.c.b16 %v205, %v189
  %v302 = vpack.c.b16 %v206, %v190
  %v303 = vpack.c.b16 %v207, %v191
  %v304 = vpack.c.b16 %v208, %v192
  %v305 = vpack.c.b16 %v209, %v193
  %v306 = vpack.c.b16 %v210, %v194
  %v307 = vpack.c.b16 %v227, %v211
  %v308 = vpack.c.b16 %v228, %v212
  %v309 = vpack.c.b16 %v229, %v213
  %v310 = vpack.c.b16 %v230, %v214
  %v311 = vpack.c.b16 %v231, %v215
  %v312 = vpack.c.b16 %v232, %v216
  %v313 = vpack.c.b16 %v233, %v217
  %v314 = vpack.c.b16 %v234, %v218
  %v315 = vpack.c.b16 %v235, %v219
  %v316 = vpack.c.b16 %v236, %v220
  %v317 = vpack.c.b16 %v237, %v221
  %v318 = vpack.c.b16 %v238, %v222
  %v319 = vpack.c.b16 %v239, %v223
  %v320 = vpack.c.b16 %v240, %v224
  %v321 = vpack.c.b16 %v241, %v225
  %v322 = vpack.c.b16 %v242, %v226
  %v323 = vpack.c.b16 %v259, %v243
  %v324 = vpack.c.b16 %v260, %v244
  %v325 = vpack.c.b16 %v261, %v245
  %v326 = vpack.c.b16 %v262, %v246
  %v327 = vpack.c.b16 %v263, %v247
  %v328 = vpack.c.b16 %v264, %v248
  %v329 = vpack.c.b16 %v265, %v249
  %v330 = vpack.c.b16 %v266, %v250
  %v331 = vpack.c.b16 %v267, %v251
  %v332 = vpack.c.b16 %v268, %v252
  %v333 = vpack.c.b16 %v269, %v253
  %v334 = vpack.c.b16 %v270, %v254
  %v335 = vpack.c.b16 %v271, %v255
  %v336 = vpack.c.b16 %v272, %v256
  %v337 = vpack.c.b16 %v273, %v257
  %v338 = vpack.c.b16 %v274, %v258
  %vm403 = vcmask 523264
  %v405 = vsel %vm403, %v82, 0
  %407 = vmatprep.subr.bf16.mxu0 0
  %408 = vmatpush1.bf16.msra.mxu0 0
  %409 = vmatprep.subr.bf16.mxu0 0
  %410 = vmatpush1.bf16.msra.mxu0 0
  %411 = vmatprep.subr.bf16.mxu0 0
  %412 = vmatpush1.bf16.msra.mxu0 0
  %413 = vmatprep.subr.bf16.mxu0 0
  %414 = vmatpush1.bf16.msra.mxu0 0
  %415 = vmatprep.subr.bf16.mxu0 %v324
  %416 = vmatpush1.bf16.msra.mxu0 %v323
  %417 = vmatprep.subr.bf16.mxu0 %v308
  %418 = vmatpush1.bf16.msra.mxu0 %v307
  %419 = vmatprep.subr.bf16.mxu0 %v292
  %420 = vmatpush1.bf16.msra.mxu0 %v291
  %421 = vmatprep.subr.bf16.mxu0 %v276
  %422 = vmatpush1.bf16.msra.mxu0 %v275
  %423 = vmatprep.subr.bf16.mxu0 0
  %424 = vmatpush2.bf16.msra.mxu0 0
  %425 = vmatprep.subr.bf16.mxu0 0
  %426 = vmatpush2.bf16.msra.mxu0 0
  %427 = vmatprep.subr.bf16.mxu0 0
  %428 = vmatpush2.bf16.msra.mxu0 0
  %429 = vmatprep.subr.bf16.mxu0 0
  %430 = vmatpush2.bf16.msra.mxu0 0
  %431 = vmatprep.subr.bf16.mxu0 0
  %432 = vmatpush2.bf16.msra.mxu0 0
  %433 = vmatprep.subr.bf16.mxu0 0
  %434 = vmatpush2.bf16.msra.mxu0 0
  %435 = vmatprep.subr.bf16.mxu0 0
  %436 = vmatpush2.bf16.msra.mxu0 0
  %437 = vmatprep.subr.bf16.mxu0 0
  %438 = vmatpush2.bf16.msra.mxu0 0
  %439 = vmatprep.mubr.bf16.mxu0 0
  %440 = vmatmul.mubr.bf16.gmra.mxu0 %v405
  %v441 = vpop.f32.mrf.mxu0
  %v442 = vadd.f32 0.0, %v441
  %v443 = vpop.f32.mrf.mxu0
  %v444 = vadd.f32 0.0, %v443
  %v445 = vpop.f32.mrf.mxu0
  %v446 = vadd.f32 0.0, %v445
  %v447 = vpop.f32.mrf.mxu0
  %v448 = vadd.f32 0.0, %v447
  %449 = vdwg.mxu0
  %450 = vmatprep.subr.bf16.mxu0 0
  %451 = vmatpush1.bf16.msra.mxu0 0
  %452 = vmatprep.subr.bf16.mxu0 0
  %453 = vmatpush1.bf16.msra.mxu0 0
  %454 = vmatprep.subr.bf16.mxu0 0
  %455 = vmatpush1.bf16.msra.mxu0 0
  %456 = vmatprep.subr.bf16.mxu0 0
  %457 = vmatpush1.bf16.msra.mxu0 0
  %458 = vmatprep.subr.bf16.mxu0 %v326
  %459 = vmatpush1.bf16.msra.mxu0 %v325
  %460 = vmatprep.subr.bf16.mxu0 %v310
  %461 = vmatpush1.bf16.msra.mxu0 %v309
  %462 = vmatprep.subr.bf16.mxu0 %v294
  %463 = vmatpush1.bf16.msra.mxu0 %v293
  %464 = vmatprep.subr.bf16.mxu0 %v278
  %465 = vmatpush1.bf16.msra.mxu0 %v277
  %466 = vmatprep.subr.bf16.mxu0 0
  %467 = vmatpush2.bf16.msra.mxu0 0
  %468 = vmatprep.subr.bf16.mxu0 0
  %469 = vmatpush2.bf16.msra.mxu0 0
  %470 = vmatprep.subr.bf16.mxu0 0
  %471 = vmatpush2.bf16.msra.mxu0 0
  %472 = vmatprep.subr.bf16.mxu0 0
  %473 = vmatpush2.bf16.msra.mxu0 0
  %474 = vmatprep.subr.bf16.mxu0 0
  %475 = vmatpush2.bf16.msra.mxu0 0
  %476 = vmatprep.subr.bf16.mxu0 0
  %477 = vmatpush2.bf16.msra.mxu0 0
  %478 = vmatprep.subr.bf16.mxu0 0
  %479 = vmatpush2.bf16.msra.mxu0 0
  %480 = vmatprep.subr.bf16.mxu0 0
  %481 = vmatpush2.bf16.msra.mxu0 0
  %482 = vmatprep.mubr.bf16.mxu0 0
  %483 = vmatmul.mubr.bf16.gmra.mxu0 %v405
  %v484 = vpop.f32.mrf.mxu0
  %v485 = vadd.f32 0.0, %v484
  %v486 = vpop.f32.mrf.mxu0
  %v487 = vadd.f32 0.0, %v486
  %v488 = vpop.f32.mrf.mxu0
  %v489 = vadd.f32 0.0, %v488
  %v490 = vpop.f32.mrf.mxu0
  %v491 = vadd.f32 0.0, %v490
  %492 = vdwg.mxu0
  %493 = vmatprep.subr.bf16.mxu0 0
  %494 = vmatpush1.bf16.msra.mxu0 0
  %495 = vmatprep.subr.bf16.mxu0 0
  %496 = vmatpush1.bf16.msra.mxu0 0
  %497 = vmatprep.subr.bf16.mxu0 0
  %498 = vmatpush1.bf16.msra.mxu0 0
  %499 = vmatprep.subr.bf16.mxu0 0
  %500 = vmatpush1.bf16.msra.mxu0 0
  %501 = vmatprep.subr.bf16.mxu0 %v328
  %502 = vmatpush1.bf16.msra.mxu0 %v327
  %503 = vmatprep.subr.bf16.mxu0 %v312
  %504 = vmatpush1.bf16.msra.mxu0 %v311
  %505 = vmatprep.subr.bf16.mxu0 %v296
  %506 = vmatpush1.bf16.msra.mxu0 %v295
  %507 = vmatprep.subr.bf16.mxu0 %v280
  %508 = vmatpush1.bf16.msra.mxu0 %v279
  %509 = vmatprep.subr.bf16.mxu0 0
  %510 = vmatpush2.bf16.msra.mxu0 0
  %511 = vmatprep.subr.bf16.mxu0 0
  %512 = vmatpush2.bf16.msra.mxu0 0
  %513 = vmatprep.subr.bf16.mxu0 0
  %514 = vmatpush2.bf16.msra.mxu0 0
  %515 = vmatprep.subr.bf16.mxu0 0
  %516 = vmatpush2.bf16.msra.mxu0 0
  %517 = vmatprep.subr.bf16.mxu0 0
  %518 = vmatpush2.bf16.msra.mxu0 0
  %519 = vmatprep.subr.bf16.mxu0 0
  %520 = vmatpush2.bf16.msra.mxu0 0
  %521 = vmatprep.subr.bf16.mxu0 0
  %522 = vmatpush2.bf16.msra.mxu0 0
  %523 = vmatprep.subr.bf16.mxu0 0
  %524 = vmatpush2.bf16.msra.mxu0 0
  %525 = vmatprep.mubr.bf16.mxu0 0
  %526 = vmatmul.mubr.bf16.gmra.mxu0 %v405
  %v527 = vpop.f32.mrf.mxu0
  %v528 = vadd.f32 0.0, %v527
  %v529 = vpop.f32.mrf.mxu0
  %v530 = vadd.f32 0.0, %v529
  %v531 = vpop.f32.mrf.mxu0
  %v532 = vadd.f32 0.0, %v531
  %v533 = vpop.f32.mrf.mxu0
  %v534 = vadd.f32 0.0, %v533
  %535 = vdwg.mxu0
  %536 = vmatprep.subr.bf16.mxu0 0
  %537 = vmatpush1.bf16.msra.mxu0 0
  %538 = vmatprep.subr.bf16.mxu0 0
  %539 = vmatpush1.bf16.msra.mxu0 0
  %540 = vmatprep.subr.bf16.mxu0 0
  %541 = vmatpush1.bf16.msra.mxu0 0
  %542 = vmatprep.subr.bf16.mxu0 0
  %543 = vmatpush1.bf16.msra.mxu0 0
  %544 = vmatprep.subr.bf16.mxu0 %v330
  %545 = vmatpush1.bf16.msra.mxu0 %v329
  %546 = vmatprep.subr.bf16.mxu0 %v314
  %547 = vmatpush1.bf16.msra.mxu0 %v313
  %548 = vmatprep.subr.bf16.mxu0 %v298
  %549 = vmatpush1.bf16.msra.mxu0 %v297
  %550 = vmatprep.subr.bf16.mxu0 %v282
  %551 = vmatpush1.bf16.msra.mxu0 %v281
  %552 = vmatprep.subr.bf16.mxu0 0
  %553 = vmatpush2.bf16.msra.mxu0 0
  %554 = vmatprep.subr.bf16.mxu0 0
  %555 = vmatpush2.bf16.msra.mxu0 0
  %556 = vmatprep.subr.bf16.mxu0 0
  %557 = vmatpush2.bf16.msra.mxu0 0
  %558 = vmatprep.subr.bf16.mxu0 0
  %559 = vmatpush2.bf16.msra.mxu0 0
  %560 = vmatprep.subr.bf16.mxu0 0
  %561 = vmatpush2.bf16.msra.mxu0 0
  %562 = vmatprep.subr.bf16.mxu0 0
  %563 = vmatpush2.bf16.msra.mxu0 0
  %564 = vmatprep.subr.bf16.mxu0 0
  %565 = vmatpush2.bf16.msra.mxu0 0
  %566 = vmatprep.subr.bf16.mxu0 0
  %567 = vmatpush2.bf16.msra.mxu0 0
  %568 = vmatprep.mubr.bf16.mxu0 0
  %569 = vmatmul.mubr.bf16.gmra.mxu0 %v405
  %v570 = vpop.f32.mrf.mxu0
  %v571 = vadd.f32 0.0, %v570
  %v572 = vpop.f32.mrf.mxu0
  %v573 = vadd.f32 0.0, %v572
  %v574 = vpop.f32.mrf.mxu0
  %v575 = vadd.f32 0.0, %v574
  %v576 = vpop.f32.mrf.mxu0
  %v577 = vadd.f32 0.0, %v576
  %578 = vdwg.mxu0
  %579 = vmatprep.subr.bf16.mxu0 0
  %580 = vmatpush1.bf16.msra.mxu0 0
  %581 = vmatprep.subr.bf16.mxu0 0
  %582 = vmatpush1.bf16.msra.mxu0 0
  %583 = vmatprep.subr.bf16.mxu0 0
  %584 = vmatpush1.bf16.msra.mxu0 0
  %585 = vmatprep.subr.bf16.mxu0 0
  %586 = vmatpush1.bf16.msra.mxu0 0
  %587 = vmatprep.subr.bf16.mxu0 %v332
  %588 = vmatpush1.bf16.msra.mxu0 %v331
  %589 = vmatprep.subr.bf16.mxu0 %v316
  %590 = vmatpush1.bf16.msra.mxu0 %v315
  %591 = vmatprep.subr.bf16.mxu0 %v300
  %592 = vmatpush1.bf16.msra.mxu0 %v299
  %593 = vmatprep.subr.bf16.mxu0 %v284
  %594 = vmatpush1.bf16.msra.mxu0 %v283
  %595 = vmatprep.subr.bf16.mxu0 0
  %596 = vmatpush2.bf16.msra.mxu0 0
  %597 = vmatprep.subr.bf16.mxu0 0
  %598 = vmatpush2.bf16.msra.mxu0 0
  %599 = vmatprep.subr.bf16.mxu0 0
  %600 = vmatpush2.bf16.msra.mxu0 0
  %601 = vmatprep.subr.bf16.mxu0 0
  %602 = vmatpush2.bf16.msra.mxu0 0
  %603 = vmatprep.subr.bf16.mxu0 0
  %604 = vmatpush2.bf16.msra.mxu0 0
  %605 = vmatprep.subr.bf16.mxu0 0
  %606 = vmatpush2.bf16.msra.mxu0 0
  %607 = vmatprep.subr.bf16.mxu0 0
  %608 = vmatpush2.bf16.msra.mxu0 0
  %609 = vmatprep.subr.bf16.mxu0 0
  %610 = vmatpush2.bf16.msra.mxu0 0
  %611 = vmatprep.mubr.bf16.mxu0 0
  %612 = vmatmul.mubr.bf16.gmra.mxu0 %v405
  %v613 = vpop.f32.mrf.mxu0
  %v614 = vadd.f32 0.0, %v613
  %v615 = vpop.f32.mrf.mxu0
  %v616 = vadd.f32 0.0, %v615
  %v617 = vpop.f32.mrf.mxu0
  %v618 = vadd.f32 0.0, %v617
  %v619 = vpop.f32.mrf.mxu0
  %v620 = vadd.f32 0.0, %v619
  %621 = vdwg.mxu0
  %622 = vmatprep.subr.bf16.mxu0 0
  %623 = vmatpush1.bf16.msra.mxu0 0
  %624 = vmatprep.subr.bf16.mxu0 0
  %625 = vmatpush1.bf16.msra.mxu0 0
  %626 = vmatprep.subr.bf16.mxu0 0
  %627 = vmatpush1.bf16.msra.mxu0 0
  %628 = vmatprep.subr.bf16.mxu0 0
  %629 = vmatpush1.bf16.msra.mxu0 0
  %630 = vmatprep.subr.bf16.mxu0 %v334
  %631 = vmatpush1.bf16.msra.mxu0 %v333
  %632 = vmatprep.subr.bf16.mxu0 %v318
  %633 = vmatpush1.bf16.msra.mxu0 %v317
  %634 = vmatprep.subr.bf16.mxu0 %v302
  %635 = vmatpush1.bf16.msra.mxu0 %v301
  %636 = vmatprep.subr.bf16.mxu0 %v286
  %637 = vmatpush1.bf16.msra.mxu0 %v285
  %638 = vmatprep.subr.bf16.mxu0 0
  %639 = vmatpush2.bf16.msra.mxu0 0
  %640 = vmatprep.subr.bf16.mxu0 0
  %641 = vmatpush2.bf16.msra.mxu0 0
  %642 = vmatprep.subr.bf16.mxu0 0
  %643 = vmatpush2.bf16.msra.mxu0 0
  %644 = vmatprep.subr.bf16.mxu0 0
  %645 = vmatpush2.bf16.msra.mxu0 0
  %646 = vmatprep.subr.bf16.mxu0 0
  %647 = vmatpush2.bf16.msra.mxu0 0
  %648 = vmatprep.subr.bf16.mxu0 0
  %649 = vmatpush2.bf16.msra.mxu0 0
  %650 = vmatprep.subr.bf16.mxu0 0
  %651 = vmatpush2.bf16.msra.mxu0 0
  %652 = vmatprep.subr.bf16.mxu0 0
  %653 = vmatpush2.bf16.msra.mxu0 0
  %654 = vmatprep.mubr.bf16.mxu0 0
  %655 = vmatmul.mubr.bf16.gmra.mxu0 %v405
  %v656 = vpop.f32.mrf.mxu0
  %v657 = vadd.f32 0.0, %v656
  %v658 = vpop.f32.mrf.mxu0
  %v659 = vadd.f32 0.0, %v658
  %v660 = vpop.f32.mrf.mxu0
  %v661 = vadd.f32 0.0, %v660
  %v662 = vpop.f32.mrf.mxu0
  %v663 = vadd.f32 0.0, %v662
  %664 = vdwg.mxu0
  %665 = vmatprep.subr.bf16.mxu0 0
  %666 = vmatpush1.bf16.msra.mxu0 0
  %667 = vmatprep.subr.bf16.mxu0 0
  %668 = vmatpush1.bf16.msra.mxu0 0
  %669 = vmatprep.subr.bf16.mxu0 0
  %670 = vmatpush1.bf16.msra.mxu0 0
  %671 = vmatprep.subr.bf16.mxu0 0
  %672 = vmatpush1.bf16.msra.mxu0 0
  %673 = vmatprep.subr.bf16.mxu0 %v336
  %674 = vmatpush1.bf16.msra.mxu0 %v335
  %675 = vmatprep.subr.bf16.mxu0 %v320
  %676 = vmatpush1.bf16.msra.mxu0 %v319
  %677 = vmatprep.subr.bf16.mxu0 %v304
  %678 = vmatpush1.bf16.msra.mxu0 %v303
  %679 = vmatprep.subr.bf16.mxu0 %v288
  %680 = vmatpush1.bf16.msra.mxu0 %v287
  %681 = vmatprep.subr.bf16.mxu0 0
  %682 = vmatpush2.bf16.msra.mxu0 0
  %683 = vmatprep.subr.bf16.mxu0 0
  %684 = vmatpush2.bf16.msra.mxu0 0
  %685 = vmatprep.subr.bf16.mxu0 0
  %686 = vmatpush2.bf16.msra.mxu0 0
  %687 = vmatprep.subr.bf16.mxu0 0
  %688 = vmatpush2.bf16.msra.mxu0 0
  %689 = vmatprep.subr.bf16.mxu0 0
  %690 = vmatpush2.bf16.msra.mxu0 0
  %691 = vmatprep.subr.bf16.mxu0 0
  %692 = vmatpush2.bf16.msra.mxu0 0
  %693 = vmatprep.subr.bf16.mxu0 0
  %694 = vmatpush2.bf16.msra.mxu0 0
  %695 = vmatprep.subr.bf16.mxu0 0
  %696 = vmatpush2.bf16.msra.mxu0 0
  %697 = vmatprep.mubr.bf16.mxu0 0
  %698 = vmatmul.mubr.bf16.gmra.mxu0 %v405
  %v699 = vpop.f32.mrf.mxu0
  %v700 = vadd.f32 0.0, %v699
  %v701 = vpop.f32.mrf.mxu0
  %v702 = vadd.f32 0.0, %v701
  %v703 = vpop.f32.mrf.mxu0
  %v704 = vadd.f32 0.0, %v703
  %v705 = vpop.f32.mrf.mxu0
  %v706 = vadd.f32 0.0, %v705
  %707 = vdwg.mxu0
  %708 = vmatprep.subr.bf16.mxu0 0
  %709 = vmatpush1.bf16.msra.mxu0 0
  %710 = vmatprep.subr.bf16.mxu0 0
  %711 = vmatpush1.bf16.msra.mxu0 0
  %712 = vmatprep.subr.bf16.mxu0 0
  %713 = vmatpush1.bf16.msra.mxu0 0
  %714 = vmatprep.subr.bf16.mxu0 0
  %715 = vmatpush1.bf16.msra.mxu0 0
  %716 = vmatprep.subr.bf16.mxu0 %v338
  %717 = vmatpush1.bf16.msra.mxu0 %v337
  %718 = vmatprep.subr.bf16.mxu0 %v322
  %719 = vmatpush1.bf16.msra.mxu0 %v321
  %720 = vmatprep.subr.bf16.mxu0 %v306
  %721 = vmatpush1.bf16.msra.mxu0 %v305
  %722 = vmatprep.subr.bf16.mxu0 %v290
  %723 = vmatpush1.bf16.msra.mxu0 %v289
  %724 = vmatprep.subr.bf16.mxu0 0
  %725 = vmatpush2.bf16.msra.mxu0 0
  %726 = vmatprep.subr.bf16.mxu0 0
  %727 = vmatpush2.bf16.msra.mxu0 0
  %728 = vmatprep.subr.bf16.mxu0 0
  %729 = vmatpush2.bf16.msra.mxu0 0
  %730 = vmatprep.subr.bf16.mxu0 0
  %731 = vmatpush2.bf16.msra.mxu0 0
  %732 = vmatprep.subr.bf16.mxu0 0
  %733 = vmatpush2.bf16.msra.mxu0 0
  %734 = vmatprep.subr.bf16.mxu0 0
  %735 = vmatpush2.bf16.msra.mxu0 0
  %736 = vmatprep.subr.bf16.mxu0 0
  %737 = vmatpush2.bf16.msra.mxu0 0
  %738 = vmatprep.subr.bf16.mxu0 0
  %739 = vmatpush2.bf16.msra.mxu0 0
  %740 = vmatprep.mubr.bf16.mxu0 0
  %741 = vmatmul.mubr.bf16.gmra.mxu0 %v405
  %v742 = vpop.f32.mrf.mxu0
  %v743 = vadd.f32 0.0, %v742
  %v744 = vpop.f32.mrf.mxu0
  %v745 = vadd.f32 0.0, %v744
  %v746 = vpop.f32.mrf.mxu0
  %v747 = vadd.f32 0.0, %v746
  %v748 = vpop.f32.mrf.mxu0
  %v749 = vadd.f32 0.0, %v748
  %750 = vdwg.mxu0
  %vm751 = vcmp.ge.f32.partialorder %v442, 0.0
  %vm752 = vcmp.ge.f32.partialorder %v444, 0.0
  %vm753 = vcmp.ge.f32.partialorder %v485, 0.0
  %vm754 = vcmp.ge.f32.partialorder %v487, 0.0
  %vm755 = vcmp.ge.f32.partialorder %v528, 0.0
  %vm756 = vcmp.ge.f32.partialorder %v530, 0.0
  %vm757 = vcmp.ge.f32.partialorder %v571, 0.0
  %vm758 = vcmp.ge.f32.partialorder %v573, 0.0
  %vm759 = vcmp.ge.f32.partialorder %v614, 0.0
  %vm760 = vcmp.ge.f32.partialorder %v616, 0.0
  %vm761 = vcmp.ge.f32.partialorder %v657, 0.0
  %vm762 = vcmp.ge.f32.partialorder %v659, 0.0
  %vm763 = vcmp.ge.f32.partialorder %v700, 0.0
  %vm764 = vcmp.ge.f32.partialorder %v702, 0.0
  %vm765 = vcmp.ge.f32.partialorder %v743, 0.0
  %vm766 = vcmp.ge.f32.partialorder %v745, 0.0
  %vm767 = vcmp.ge.f32.partialorder %v446, 0.0
  %vm768 = vcmp.ge.f32.partialorder %v448, 0.0
  %vm769 = vcmp.ge.f32.partialorder %v489, 0.0
  %vm770 = vcmp.ge.f32.partialorder %v491, 0.0
  %vm771 = vcmp.ge.f32.partialorder %v532, 0.0
  %vm772 = vcmp.ge.f32.partialorder %v534, 0.0
  %vm773 = vcmp.ge.f32.partialorder %v575, 0.0
  %vm774 = vcmp.ge.f32.partialorder %v577, 0.0
  %vm775 = vcmp.ge.f32.partialorder %v618, 0.0
  %vm776 = vcmp.ge.f32.partialorder %v620, 0.0
  %vm777 = vcmp.ge.f32.partialorder %v661, 0.0
  %vm778 = vcmp.ge.f32.partialorder %v663, 0.0
  %vm779 = vcmp.ge.f32.partialorder %v704, 0.0
  %vm780 = vcmp.ge.f32.partialorder %v706, 0.0
  %vm781 = vcmp.ge.f32.partialorder %v747, 0.0
  %vm782 = vcmp.ge.f32.partialorder %v749, 0.0
  %v783 = vmul.f32 %v442, 0.2
  %v784 = vmul.f32 %v444, 0.2
  %v785 = vmul.f32 %v485, 0.2
  %v786 = vmul.f32 %v487, 0.2
  %v787 = vmul.f32 %v528, 0.2
  %v788 = vmul.f32 %v530, 0.2
  %v789 = vmul.f32 %v571, 0.2
  %v790 = vmul.f32 %v573, 0.2
  %v791 = vmul.f32 %v614, 0.2
  %v792 = vmul.f32 %v616, 0.2
  %v793 = vmul.f32 %v657, 0.2
  %v794 = vmul.f32 %v659, 0.2
  %v795 = vmul.f32 %v700, 0.2
  %v796 = vmul.f32 %v702, 0.2
  %v797 = vmul.f32 %v743, 0.2
  %v798 = vmul.f32 %v745, 0.2
  %v799 = vmul.f32 %v446, 0.2
  %v800 = vmul.f32 %v448, 0.2
  %v801 = vmul.f32 %v489, 0.2
  %v802 = vmul.f32 %v491, 0.2
  %v803 = vmul.f32 %v532, 0.2
  %v804 = vmul.f32 %v534, 0.2
  %v805 = vmul.f32 %v575, 0.2
  %v806 = vmul.f32 %v577, 0.2
  %v807 = vmul.f32 %v618, 0.2
  %v808 = vmul.f32 %v620, 0.2
  %v809 = vmul.f32 %v661, 0.2
  %v810 = vmul.f32 %v663, 0.2
  %v811 = vmul.f32 %v704, 0.2
  %v812 = vmul.f32 %v706, 0.2
  %v813 = vmul.f32 %v747, 0.2
  %v814 = vmul.f32 %v749, 0.2
  %v815 = vsel %vm751, %v442, %v783
  %v816 = vsel %vm752, %v444, %v784
  %v817 = vsel %vm753, %v485, %v785
  %v818 = vsel %vm754, %v487, %v786
  %v819 = vsel %vm755, %v528, %v787
  %v820 = vsel %vm756, %v530, %v788
  %v821 = vsel %vm757, %v571, %v789
  %v822 = vsel %vm758, %v573, %v790
  %v823 = vsel %vm759, %v614, %v791
  %v824 = vsel %vm760, %v616, %v792
  %v825 = vsel %vm761, %v657, %v793
  %v826 = vsel %vm762, %v659, %v794
  %v827 = vsel %vm763, %v700, %v795
  %v828 = vsel %vm764, %v702, %v796
  %v829 = vsel %vm765, %v743, %v797
  %v830 = vsel %vm766, %v745, %v798
  %v831 = vsel %vm767, %v446, %v799
  %v832 = vsel %vm768, %v448, %v800
  %v833 = vsel %vm769, %v489, %v801
  %v834 = vsel %vm770, %v491, %v802
  %v835 = vsel %vm771, %v532, %v803
  %v836 = vsel %vm772, %v534, %v804
  %v837 = vsel %vm773, %v575, %v805
  %v838 = vsel %vm774, %v577, %v806
  %v839 = vsel %vm775, %v618, %v807
  %v840 = vsel %vm776, %v620, %v808
  %v841 = vsel %vm777, %v661, %v809
  %v842 = vsel %vm778, %v663, %v810
  %v843 = vsel %vm779, %v704, %v811
  %v844 = vsel %vm780, %v706, %v812
  %v845 = vsel %vm781, %v747, %v813
  %v846 = vsel %vm782, %v749, %v814
  %v847 = vpack.c.bf16 %v831, %v815
  %v848 = vpack.c.bf16 %v832, %v816
  %v849 = vpack.c.bf16 %v833, %v817
  %v850 = vpack.c.bf16 %v834, %v818
  %v851 = vpack.c.bf16 %v835, %v819
  %v852 = vpack.c.bf16 %v836, %v820
  %v853 = vpack.c.bf16 %v837, %v821
  %v854 = vpack.c.bf16 %v838, %v822
  %v855 = vpack.c.bf16 %v839, %v823
  %v856 = vpack.c.bf16 %v840, %v824
  %v857 = vpack.c.bf16 %v841, %v825
  %v858 = vpack.c.bf16 %v842, %v826
  %v859 = vpack.c.bf16 %v843, %v827
  %v860 = vpack.c.bf16 %v844, %v828
  %v861 = vpack.c.bf16 %v845, %v829
  %v862 = vpack.c.bf16 %v846, %v830
  %v879 = vunpack.c.l.b16 %v847
  %v880 = vunpack.c.l.b16 %v848
  %v881 = vunpack.c.l.b16 %v849
  %v882 = vunpack.c.l.b16 %v850
  %v883 = vunpack.c.l.b16 %v851
  %v884 = vunpack.c.l.b16 %v852
  %v885 = vunpack.c.l.b16 %v853
  %v886 = vunpack.c.l.b16 %v854
  %v887 = vunpack.c.l.b16 %v855
  %v888 = vunpack.c.l.b16 %v856
  %v889 = vunpack.c.l.b16 %v857
  %v890 = vunpack.c.l.b16 %v858
  %v891 = vunpack.c.l.b16 %v859
  %v892 = vunpack.c.l.b16 %v860
  %v893 = vunpack.c.l.b16 %v861
  %v894 = vunpack.c.l.b16 %v862
  %v895 = vunpack.c.h.b16 %v847
  %v896 = vunpack.c.h.b16 %v848
  %v897 = vunpack.c.h.b16 %v849
  %v898 = vunpack.c.h.b16 %v850
  %v899 = vunpack.c.h.b16 %v851
  %v900 = vunpack.c.h.b16 %v852
  %v901 = vunpack.c.h.b16 %v853
  %v902 = vunpack.c.h.b16 %v854
  %v903 = vunpack.c.h.b16 %v855
  %v904 = vunpack.c.h.b16 %v856
  %v905 = vunpack.c.h.b16 %v857
  %v906 = vunpack.c.h.b16 %v858
  %v907 = vunpack.c.h.b16 %v859
  %v908 = vunpack.c.h.b16 %v860
  %v909 = vunpack.c.h.b16 %v861
  %v910 = vunpack.c.h.b16 %v862
  %v911 = vpack.c.b16 %v880, %v879
  %v912 = vpack.c.b16 %v882, %v881
  %v913 = vpack.c.b16 %v884, %v883
  %v914 = vpack.c.b16 %v886, %v885
  %v915 = vpack.c.b16 %v888, %v887
  %v916 = vpack.c.b16 %v890, %v889
  %v917 = vpack.c.b16 %v892, %v891
  %v918 = vpack.c.b16 %v894, %v893
  %v919 = vpack.c.b16 %v896, %v895
  %v920 = vpack.c.b16 %v898, %v897
  %v921 = vpack.c.b16 %v900, %v899
  %v922 = vpack.c.b16 %v902, %v901
  %v923 = vpack.c.b16 %v904, %v903
  %v924 = vpack.c.b16 %v906, %v905
  %v925 = vpack.c.b16 %v908, %v907
  %v926 = vpack.c.b16 %v910, %v909
  %943 = vst [vmem:[%s2] sm:$0xff] %v911
  %944 = vst [vmem:[%s2 + $0x8] sm:$0xff] %v912
  %945 = vst [vmem:[%s2 + $0x10] sm:$0xff] %v913
  %946 = vst [vmem:[%s2 + $0x18] sm:$0xff] %v914
  %947 = vst [vmem:[%s2 + $0x20] sm:$0xff] %v915
  %948 = vst [vmem:[%s2 + $0x28] sm:$0xff] %v916
  %949 = vst [vmem:[%s2 + $0x30] sm:$0xff] %v917
  %950 = vst [vmem:[%s2 + $0x38] sm:$0xff] %v918
  %951 = vst [vmem:[%s2 + $0x40] sm:$0xff] %v919
  %952 = vst [vmem:[%s2 + $0x48] sm:$0xff] %v920
  %953 = vst [vmem:[%s2 + $0x50] sm:$0xff] %v921
  %954 = vst [vmem:[%s2 + $0x58] sm:$0xff] %v922
  %955 = vst [vmem:[%s2 + $0x60] sm:$0xff] %v923
  %956 = vst [vmem:[%s2 + $0x68] sm:$0xff] %v924
  %957 = vst [vmem:[%s2 + $0x70] sm:$0xff] %v925
  %958 = vst [vmem:[%s2 + $0x78] sm:$0xff] %v926
  // Predicated region
  $region10: #{discriminator_forward.4} parent=0 // pred_check
    _
  $region11: #{discriminator_forward.4} parent=0 // pred_check_branch
    %960 = sbr.rel (0) target = $region13
  $region12: #{discriminator_forward.4} parent=0 // pred_region
    _
  $region13: #{discriminator_forward.4} parent=0 // pred_fallthru
    _
  // Predicated region
  $region14: #{discriminator_forward.4} parent=0 // pred_check
    _
  $region15: #{discriminator_forward.4} parent=0 // pred_check_branch
    %962 = sbr.rel (0) target = $region17
  $region16: #{discriminator_forward.4} parent=0 // pred_region
    _
  $region17: #{discriminator_forward.4} parent=0 // pred_fallthru
    _

// kernel: discriminator_forward.5
$region0: #{discriminator_forward.5}
  #allocation0 [shape = 'u32[]', space=smem, size = 0x4, offset = 0x4, fixed_abs, tag = 'smem constant byte address 0x4 - core index']
  #allocation1 [shape = 'u32[144,128]{1,0:T(1,128)}', space=vmem, size = 0x12000, scoped, tag = 'internal scratch']
  %s0 = inlined_call_operand.vmem [shape: bf16[32,256], index: 0, kind: input, shape index: {}]
  %s1 = inlined_call_operand.vmem [shape: bf16[256,512], index: 1, kind: input, shape index: {}]
  %s2 = inlined_call_operand.vmem [shape: f32[32,1], index: 2, kind: input, shape index: {}]
  %s3 = inlined_call_operand.vmem [shape: f32[32,1], index: 3, kind: input, shape index: {}]
  %s4 = inlined_call_operand.vmem [shape: bf16[32,512], index: 4, kind: output, shape index: {}]
  %s5 = sld [smem:[#allocation0]]
  $region26: #{discriminator_forward.5} parent=0
    _
  %s7 = ssub.s32 1, %s5
  %s8 = scalar_select 0, %s7, %s5
  // Predicated region
  $region2: #{discriminator_forward.5} parent=0 // pred_check
    _
  $region3: #{discriminator_forward.5} parent=0 // pred_check_branch
    %10 = sbr.rel (0) target = $region5
  $region4: #{discriminator_forward.5} parent=0 // pred_region
    _
  $region5: #{discriminator_forward.5} parent=0 // pred_fallthru
    _
  // Predicated region
  $region6: #{discriminator_forward.5} parent=0 // pred_check
    _
  $region7: #{discriminator_forward.5} parent=0 // pred_check_branch
    %12 = sbr.rel (0) target = $region9
  $region8: #{discriminator_forward.5} parent=0 // pred_region
    _
  $region9: #{discriminator_forward.5} parent=0 // pred_fallthru
    _
  // Predicated region
  $region10: #{discriminator_forward.5} parent=0 // pred_check
    _
  $region11: #{discriminator_forward.5} parent=0 // pred_check_branch
    %14 = sbr.rel (0) target = $region13
  $region12: #{discriminator_forward.5} parent=0 // pred_region
    _
  $region13: #{discriminator_forward.5} parent=0 // pred_fallthru
    _
  // Predicated region
  $region14: #{discriminator_forward.5} parent=0 // pred_check
    _
  $region15: #{discriminator_forward.5} parent=0 // pred_check_branch
    %16 = sbr.rel (0) target = $region17
  $region16: #{discriminator_forward.5} parent=0 // pred_region
    _
  $region17: #{discriminator_forward.5} parent=0 // pred_fallthru
    _
  %v17 = vld [vmem:[%s0] sm:$0xff]
  %v18 = vld [vmem:[%s0 + $0x8] sm:$0xff]
  %v19 = vld [vmem:[%s0 + $0x10] sm:$0xff]
  %v20 = vld [vmem:[%s0 + $0x18] sm:$0xff]
  %v21 = vld [vmem:[%s1] sm:$0xff]
  %v22 = vld [vmem:[%s1 + $0x8] sm:$0xff]
  %v23 = vld [vmem:[%s1 + $0x10] sm:$0xff]
  %v24 = vld [vmem:[%s1 + $0x18] sm:$0xff]
  %v25 = vld [vmem:[%s1 + $0x20] sm:$0xff]
  %v26 = vld [vmem:[%s1 + $0x28] sm:$0xff]
  %v27 = vld [vmem:[%s1 + $0x30] sm:$0xff]
  %v28 = vld [vmem:[%s1 + $0x38] sm:$0xff]
  %v29 = vld [vmem:[%s1 + $0x40] sm:$0xff]
  %v30 = vld [vmem:[%s1 + $0x48] sm:$0xff]
  %v31 = vld [vmem:[%s1 + $0x50] sm:$0xff]
  %v32 = vld [vmem:[%s1 + $0x58] sm:$0xff]
  %v33 = vld [vmem:[%s1 + $0x60] sm:$0xff]
  %v34 = vld [vmem:[%s1 + $0x68] sm:$0xff]
  %v35 = vld [vmem:[%s1 + $0x70] sm:$0xff]
  %v36 = vld [vmem:[%s1 + $0x78] sm:$0xff]
  %v37 = vld [vmem:[%s1 + $0x80] sm:$0xff]
  %v38 = vld [vmem:[%s1 + $0x88] sm:$0xff]
  %v39 = vld [vmem:[%s1 + $0x90] sm:$0xff]
  %v40 = vld [vmem:[%s1 + $0x98] sm:$0xff]
  %v41 = vld [vmem:[%s1 + $0xa0] sm:$0xff]
  %v42 = vld [vmem:[%s1 + $0xa8] sm:$0xff]
  %v43 = vld [vmem:[%s1 + $0xb0] sm:$0xff]
  %v44 = vld [vmem:[%s1 + $0xb8] sm:$0xff]
  %v45 = vld [vmem:[%s1 + $0xc0] sm:$0xff]
  %v46 = vld [vmem:[%s1 + $0xc8] sm:$0xff]
  %v47 = vld [vmem:[%s1 + $0xd0] sm:$0xff]
  %v48 = vld [vmem:[%s1 + $0xd8] sm:$0xff]
  %v49 = vld [vmem:[%s1 + $0xe0] sm:$0xff]
  %v50 = vld [vmem:[%s1 + $0xe8] sm:$0xff]
  %v51 = vld [vmem:[%s1 + $0xf0] sm:$0xff]
  %v52 = vld [vmem:[%s1 + $0xf8] sm:$0xff]
  %v53 = vld [vmem:[%s1 + $0x100] sm:$0xff]
  %v54 = vld [vmem:[%s1 + $0x108] sm:$0xff]
  %v55 = vld [vmem:[%s1 + $0x110] sm:$0xff]
  %v56 = vld [vmem:[%s1 + $0x118] sm:$0xff]
  %v57 = vld [vmem:[%s1 + $0x120] sm:$0xff]
  %v58 = vld [vmem:[%s1 + $0x128] sm:$0xff]
  %v59 = vld [vmem:[%s1 + $0x130] sm:$0xff]
  %v60 = vld [vmem:[%s1 + $0x138] sm:$0xff]
  %v61 = vld [vmem:[%s1 + $0x140] sm:$0xff]
  %v62 = vld [vmem:[%s1 + $0x148] sm:$0xff]
  %v63 = vld [vmem:[%s1 + $0x150] sm:$0xff]
  %v64 = vld [vmem:[%s1 + $0x158] sm:$0xff]
  %v65 = vld [vmem:[%s1 + $0x160] sm:$0xff]
  %v66 = vld [vmem:[%s1 + $0x168] sm:$0xff]
  %v67 = vld [vmem:[%s1 + $0x170] sm:$0xff]
  %v68 = vld [vmem:[%s1 + $0x178] sm:$0xff]
  %v69 = vld [vmem:[%s1 + $0x180] sm:$0xff]
  %v70 = vld [vmem:[%s1 + $0x188] sm:$0xff]
  %v71 = vld [vmem:[%s1 + $0x190] sm:$0xff]
  %v72 = vld [vmem:[%s1 + $0x198] sm:$0xff]
  %v73 = vld [vmem:[%s1 + $0x1a0] sm:$0xff]
  %v74 = vld [vmem:[%s1 + $0x1a8] sm:$0xff]
  %v75 = vld [vmem:[%s1 + $0x1b0] sm:$0xff]
  %v76 = vld [vmem:[%s1 + $0x1b8] sm:$0xff]
  %v77 = vld [vmem:[%s1 + $0x1c0] sm:$0xff]
  %v78 = vld [vmem:[%s1 + $0x1c8] sm:$0xff]
  %v79 = vld [vmem:[%s1 + $0x1d0] sm:$0xff]
  %v80 = vld [vmem:[%s1 + $0x1d8] sm:$0xff]
  %v81 = vld [vmem:[%s1 + $0x1e0] sm:$0xff]
  %v82 = vld [vmem:[%s1 + $0x1e8] sm:$0xff]
  %v83 = vld [vmem:[%s1 + $0x1f0] sm:$0xff]
  %v84 = vld [vmem:[%s1 + $0x1f8] sm:$0xff]
  %v89 = vunpack.c.l.b16 %v17
  %v90 = vunpack.c.h.b16 %v17
  %v91 = vunpack.c.l.b16 %v18
  %v92 = vunpack.c.h.b16 %v18
  %v93 = vunpack.c.l.b16 %v19
  %v94 = vunpack.c.h.b16 %v19
  %v95 = vunpack.c.l.b16 %v20
  %v96 = vunpack.c.h.b16 %v20
  %v97 = vpack.c.b16 %v91, %v89
  %v98 = vpack.c.b16 %v92, %v90
  %v99 = vpack.c.b16 %v95, %v93
  %v100 = vpack.c.b16 %v96, %v94
  %v169 = vunpack.c.l.b16 %v21
  %v170 = vunpack.c.h.b16 %v21
  %v171 = vunpack.c.l.b16 %v22
  %v172 = vunpack.c.h.b16 %v22
  %v173 = vunpack.c.l.b16 %v23
  %v174 = vunpack.c.h.b16 %v23
  %v175 = vunpack.c.l.b16 %v24
  %v176 = vunpack.c.h.b16 %v24
  %v177 = vunpack.c.l.b16 %v25
  %v178 = vunpack.c.h.b16 %v25
  %v179 = vunpack.c.l.b16 %v26
  %v180 = vunpack.c.h.b16 %v26
  %v181 = vunpack.c.l.b16 %v27
  %v182 = vunpack.c.h.b16 %v27
  %v183 = vunpack.c.l.b16 %v28
  %v184 = vunpack.c.h.b16 %v28
  %v185 = vunpack.c.l.b16 %v29
  %v186 = vunpack.c.h.b16 %v29
  %v187 = vunpack.c.l.b16 %v30
  %v188 = vunpack.c.h.b16 %v30
  %v189 = vunpack.c.l.b16 %v31
  %v190 = vunpack.c.h.b16 %v31
  %v191 = vunpack.c.l.b16 %v32
  %v192 = vunpack.c.h.b16 %v32
  %v193 = vunpack.c.l.b16 %v33
  %v194 = vunpack.c.h.b16 %v33
  %v195 = vunpack.c.l.b16 %v34
  %v196 = vunpack.c.h.b16 %v34
  %v197 = vunpack.c.l.b16 %v35
  %v198 = vunpack.c.h.b16 %v35
  %v199 = vunpack.c.l.b16 %v36
  %v200 = vunpack.c.h.b16 %v36
  %v201 = vunpack.c.l.b16 %v37
  %v202 = vunpack.c.h.b16 %v37
  %v203 = vunpack.c.l.b16 %v38
  %v204 = vunpack.c.h.b16 %v38
  %v205 = vunpack.c.l.b16 %v39
  %v206 = vunpack.c.h.b16 %v39
  %v207 = vunpack.c.l.b16 %v40
  %v208 = vunpack.c.h.b16 %v40
  %v209 = vunpack.c.l.b16 %v41
  %v210 = vunpack.c.h.b16 %v41
  %v211 = vunpack.c.l.b16 %v42
  %v212 = vunpack.c.h.b16 %v42
  %v213 = vunpack.c.l.b16 %v43
  %v214 = vunpack.c.h.b16 %v43
  %v215 = vunpack.c.l.b16 %v44
  %v216 = vunpack.c.h.b16 %v44
  %v217 = vunpack.c.l.b16 %v45
  %v218 = vunpack.c.h.b16 %v45
  %v219 = vunpack.c.l.b16 %v46
  %v220 = vunpack.c.h.b16 %v46
  %v221 = vunpack.c.l.b16 %v47
  %v222 = vunpack.c.h.b16 %v47
  %v223 = vunpack.c.l.b16 %v48
  %v224 = vunpack.c.h.b16 %v48
  %v225 = vunpack.c.l.b16 %v49
  %v226 = vunpack.c.h.b16 %v49
  %v227 = vunpack.c.l.b16 %v50
  %v228 = vunpack.c.h.b16 %v50
  %v229 = vunpack.c.l.b16 %v51
  %v230 = vunpack.c.h.b16 %v51
  %v231 = vunpack.c.l.b16 %v52
  %v232 = vunpack.c.h.b16 %v52
  %v233 = vunpack.c.l.b16 %v53
  %v234 = vunpack.c.h.b16 %v53
  %v235 = vunpack.c.l.b16 %v54
  %v236 = vunpack.c.h.b16 %v54
  %v237 = vunpack.c.l.b16 %v55
  %v238 = vunpack.c.h.b16 %v55
  %v239 = vunpack.c.l.b16 %v56
  %v240 = vunpack.c.h.b16 %v56
  %v241 = vunpack.c.l.b16 %v57
  %v242 = vunpack.c.h.b16 %v57
  %v243 = vunpack.c.l.b16 %v58
  %v244 = vunpack.c.h.b16 %v58
  %v245 = vunpack.c.l.b16 %v59
  %v246 = vunpack.c.h.b16 %v59
  %v247 = vunpack.c.l.b16 %v60
  %v248 = vunpack.c.h.b16 %v60
  %v249 = vunpack.c.l.b16 %v61
  %v250 = vunpack.c.h.b16 %v61
  %v251 = vunpack.c.l.b16 %v62
  %v252 = vunpack.c.h.b16 %v62
  %v253 = vunpack.c.l.b16 %v63
  %v254 = vunpack.c.h.b16 %v63
  %v255 = vunpack.c.l.b16 %v64
  %v256 = vunpack.c.h.b16 %v64
  %v257 = vunpack.c.l.b16 %v65
  %v258 = vunpack.c.h.b16 %v65
  %v259 = vunpack.c.l.b16 %v66
  %v260 = vunpack.c.h.b16 %v66
  %v261 = vunpack.c.l.b16 %v67
  %v262 = vunpack.c.h.b16 %v67
  %v263 = vunpack.c.l.b16 %v68
  %v264 = vunpack.c.h.b16 %v68
  %v265 = vunpack.c.l.b16 %v69
  %v266 = vunpack.c.h.b16 %v69
  %v267 = vunpack.c.l.b16 %v70
  %v268 = vunpack.c.h.b16 %v70
  %v269 = vunpack.c.l.b16 %v71
  %v270 = vunpack.c.h.b16 %v71
  %v271 = vunpack.c.l.b16 %v72
  %v272 = vunpack.c.h.b16 %v72
  %v273 = vunpack.c.l.b16 %v73
  %v274 = vunpack.c.h.b16 %v73
  %v275 = vunpack.c.l.b16 %v74
  %v276 = vunpack.c.h.b16 %v74
  %v277 = vunpack.c.l.b16 %v75
  %v278 = vunpack.c.h.b16 %v75
  %v279 = vunpack.c.l.b16 %v76
  %v280 = vunpack.c.h.b16 %v76
  %v281 = vunpack.c.l.b16 %v77
  %v282 = vunpack.c.h.b16 %v77
  %v283 = vunpack.c.l.b16 %v78
  %v284 = vunpack.c.h.b16 %v78
  %v285 = vunpack.c.l.b16 %v79
  %v286 = vunpack.c.h.b16 %v79
  %v287 = vunpack.c.l.b16 %v80
  %v288 = vunpack.c.h.b16 %v80
  %v289 = vunpack.c.l.b16 %v81
  %v290 = vunpack.c.h.b16 %v81
  %v291 = vunpack.c.l.b16 %v82
  %v292 = vunpack.c.h.b16 %v82
  %v293 = vunpack.c.l.b16 %v83
  %v294 = vunpack.c.h.b16 %v83
  %v295 = vunpack.c.l.b16 %v84
  %v296 = vunpack.c.h.b16 %v84
  %v297 = vpack.c.b16 %v173, %v169
  %v298 = vpack.c.b16 %v174, %v170
  %v299 = vpack.c.b16 %v175, %v171
  %v300 = vpack.c.b16 %v176, %v172
  %v301 = vpack.c.b16 %v181, %v177
  %v302 = vpack.c.b16 %v182, %v178
  %v303 = vpack.c.b16 %v183, %v179
  %v304 = vpack.c.b16 %v184, %v180
  %v305 = vpack.c.b16 %v189, %v185
  %v306 = vpack.c.b16 %v190, %v186
  %v307 = vpack.c.b16 %v191, %v187
  %v308 = vpack.c.b16 %v192, %v188
  %v309 = vpack.c.b16 %v197, %v193
  %v310 = vpack.c.b16 %v198, %v194
  %v311 = vpack.c.b16 %v199, %v195
  %v312 = vpack.c.b16 %v200, %v196
  %v313 = vpack.c.b16 %v205, %v201
  %v314 = vpack.c.b16 %v206, %v202
  %v315 = vpack.c.b16 %v207, %v203
  %v316 = vpack.c.b16 %v208, %v204
  %v317 = vpack.c.b16 %v213, %v209
  %v318 = vpack.c.b16 %v214, %v210
  %v319 = vpack.c.b16 %v215, %v211
  %v320 = vpack.c.b16 %v216, %v212
  %v321 = vpack.c.b16 %v221, %v217
  %v322 = vpack.c.b16 %v222, %v218
  %v323 = vpack.c.b16 %v223, %v219
  %v324 = vpack.c.b16 %v224, %v220
  %v325 = vpack.c.b16 %v229, %v225
  %v326 = vpack.c.b16 %v230, %v226
  %v327 = vpack.c.b16 %v231, %v227
  %v328 = vpack.c.b16 %v232, %v228
  %v329 = vpack.c.b16 %v237, %v233
  %v330 = vpack.c.b16 %v238, %v234
  %v331 = vpack.c.b16 %v239, %v235
  %v332 = vpack.c.b16 %v240, %v236
  %v333 = vpack.c.b16 %v245, %v241
  %v334 = vpack.c.b16 %v246, %v242
  %v335 = vpack.c.b16 %v247, %v243
  %v336 = vpack.c.b16 %v248, %v244
  %v337 = vpack.c.b16 %v253, %v249
  %v338 = vpack.c.b16 %v254, %v250
  %v339 = vpack.c.b16 %v255, %v251
  %v340 = vpack.c.b16 %v256, %v252
  %v341 = vpack.c.b16 %v261, %v257
  %v342 = vpack.c.b16 %v262, %v258
  %v343 = vpack.c.b16 %v263, %v259
  %v344 = vpack.c.b16 %v264, %v260
  %v345 = vpack.c.b16 %v269, %v265
  %v346 = vpack.c.b16 %v270, %v266
  %v347 = vpack.c.b16 %v271, %v267
  %v348 = vpack.c.b16 %v272, %v268
  %v349 = vpack.c.b16 %v277, %v273
  %v350 = vpack.c.b16 %v278, %v274
  %v351 = vpack.c.b16 %v279, %v275
  %v352 = vpack.c.b16 %v280, %v276
  %v353 = vpack.c.b16 %v285, %v281
  %v354 = vpack.c.b16 %v286, %v282
  %v355 = vpack.c.b16 %v287, %v283
  %v356 = vpack.c.b16 %v288, %v284
  %v357 = vpack.c.b16 %v293, %v289
  %v358 = vpack.c.b16 %v294, %v290
  %v359 = vpack.c.b16 %v295, %v291
  %v360 = vpack.c.b16 %v296, %v292
  %425 = vmatprep.subr.bf16.mxu0 %v326
  %426 = vmatpush1.bf16.msra.mxu0 %v325
  %427 = vmatprep.subr.bf16.mxu0 %v322
  %428 = vmatpush1.bf16.msra.mxu0 %v321
  %429 = vmatprep.subr.bf16.mxu0 %v318
  %430 = vmatpush1.bf16.msra.mxu0 %v317
  %431 = vmatprep.subr.bf16.mxu0 %v314
  %432 = vmatpush1.bf16.msra.mxu0 %v313
  %433 = vmatprep.subr.bf16.mxu0 %v310
  %434 = vmatpush1.bf16.msra.mxu0 %v309
  %435 = vmatprep.subr.bf16.mxu0 %v306
  %436 = vmatpush1.bf16.msra.mxu0 %v305
  %437 = vmatprep.subr.bf16.mxu0 %v302
  %438 = vmatpush1.bf16.msra.mxu0 %v301
  %439 = vmatprep.subr.bf16.mxu0 %v298
  %440 = vmatpush1.bf16.msra.mxu0 %v297
  %441 = vmatprep.subr.bf16.mxu0 %v358
  %442 = vmatpush2.bf16.msra.mxu0 %v357
  %443 = vmatprep.subr.bf16.mxu0 %v354
  %444 = vmatpush2.bf16.msra.mxu0 %v353
  %445 = vmatprep.subr.bf16.mxu0 %v350
  %446 = vmatpush2.bf16.msra.mxu0 %v349
  %447 = vmatprep.subr.bf16.mxu0 %v346
  %448 = vmatpush2.bf16.msra.mxu0 %v345
  %449 = vmatprep.subr.bf16.mxu0 %v342
  %450 = vmatpush2.bf16.msra.mxu0 %v341
  %451 = vmatprep.subr.bf16.mxu0 %v338
  %452 = vmatpush2.bf16.msra.mxu0 %v337
  %453 = vmatprep.subr.bf16.mxu0 %v334
  %454 = vmatpush2.bf16.msra.mxu0 %v333
  %455 = vmatprep.subr.bf16.mxu0 %v330
  %456 = vmatpush2.bf16.msra.mxu0 %v329
  %457 = vmatprep.mubr.bf16.mxu0 %v98
  %458 = vmatmul.mubr.bf16.gmra.mxu0 %v97
  %v459 = vpop.f32.mrf.mxu0
  %v460 = vadd.f32 0.0, %v459
  %v461 = vpop.f32.mrf.mxu0
  %v462 = vadd.f32 0.0, %v461
  %v463 = vpop.f32.mrf.mxu0
  %v464 = vadd.f32 0.0, %v463
  %v465 = vpop.f32.mrf.mxu0
  %v466 = vadd.f32 0.0, %v465
  %467 = vmatprep.mubr.bf16.mxu0 %v100
  %468 = vmatmul.mubr.bf16.gmra.mxu0 %v99
  %v469 = vpop.f32.mrf.mxu0
  %v470 = vadd.f32 0.0, %v469
  %v471 = vpop.f32.mrf.mxu0
  %v472 = vadd.f32 0.0, %v471
  %v473 = vpop.f32.mrf.mxu0
  %v474 = vadd.f32 0.0, %v473
  %v475 = vpop.f32.mrf.mxu0
  %v476 = vadd.f32 0.0, %v475
  %477 = vdwg.mxu0
  %478 = vmatprep.subr.bf16.mxu0 %v328
  %479 = vmatpush1.bf16.msra.mxu0 %v327
  %480 = vmatprep.subr.bf16.mxu0 %v324
  %481 = vmatpush1.bf16.msra.mxu0 %v323
  %482 = vmatprep.subr.bf16.mxu0 %v320
  %483 = vmatpush1.bf16.msra.mxu0 %v319
  %484 = vmatprep.subr.bf16.mxu0 %v316
  %485 = vmatpush1.bf16.msra.mxu0 %v315
  %486 = vmatprep.subr.bf16.mxu0 %v312
  %487 = vmatpush1.bf16.msra.mxu0 %v311
  %488 = vmatprep.subr.bf16.mxu0 %v308
  %489 = vmatpush1.bf16.msra.mxu0 %v307
  %490 = vmatprep.subr.bf16.mxu0 %v304
  %491 = vmatpush1.bf16.msra.mxu0 %v303
  %492 = vmatprep.subr.bf16.mxu0 %v300
  %493 = vmatpush1.bf16.msra.mxu0 %v299
  %494 = vmatprep.subr.bf16.mxu0 %v360
  %495 = vmatpush2.bf16.msra.mxu0 %v359
  %496 = vmatprep.subr.bf16.mxu0 %v356
  %497 = vmatpush2.bf16.msra.mxu0 %v355
  %498 = vmatprep.subr.bf16.mxu0 %v352
  %499 = vmatpush2.bf16.msra.mxu0 %v351
  %500 = vmatprep.subr.bf16.mxu0 %v348
  %501 = vmatpush2.bf16.msra.mxu0 %v347
  %502 = vmatprep.subr.bf16.mxu0 %v344
  %503 = vmatpush2.bf16.msra.mxu0 %v343
  %504 = vmatprep.subr.bf16.mxu0 %v340
  %505 = vmatpush2.bf16.msra.mxu0 %v339
  %506 = vmatprep.subr.bf16.mxu0 %v336
  %507 = vmatpush2.bf16.msra.mxu0 %v335
  %508 = vmatprep.subr.bf16.mxu0 %v332
  %509 = vmatpush2.bf16.msra.mxu0 %v331
  %510 = vmatprep.mubr.bf16.mxu0 %v98
  %511 = vmatmul.mubr.bf16.gmra.mxu0 %v97
  %v512 = vpop.f32.mrf.mxu0
  %v513 = vadd.f32 0.0, %v512
  %v514 = vpop.f32.mrf.mxu0
  %v515 = vadd.f32 0.0, %v514
  %v516 = vpop.f32.mrf.mxu0
  %v517 = vadd.f32 0.0, %v516
  %v518 = vpop.f32.mrf.mxu0
  %v519 = vadd.f32 0.0, %v518
  %520 = vmatprep.mubr.bf16.mxu0 %v100
  %521 = vmatmul.mubr.bf16.gmra.mxu0 %v99
  %v522 = vpop.f32.mrf.mxu0
  %v523 = vadd.f32 0.0, %v522
  %v524 = vpop.f32.mrf.mxu0
  %v525 = vadd.f32 0.0, %v524
  %v526 = vpop.f32.mrf.mxu0
  %v527 = vadd.f32 0.0, %v526
  %v528 = vpop.f32.mrf.mxu0
  %v529 = vadd.f32 0.0, %v528
  %530 = vdwg.mxu0
  %v531 = vadd.f32 %v460, %v462
  %v532 = vadd.f32 %v531, %v513
  %v533 = vadd.f32 %v532, %v515
  %534 = vadd.xlane.f32.xlu0 %v533
  %v535 = vpop.xlane.xlu0 %534
  %v536 = vadd.f32 %v464, %v466
  %v537 = vadd.f32 %v536, %v517
  %v538 = vadd.f32 %v537, %v519
  %539 = vadd.xlane.f32.xlu0 %v538
  %v540 = vpop.xlane.xlu0 %539
  %v541 = vadd.f32 %v470, %v472
  %v542 = vadd.f32 %v541, %v523
  %v543 = vadd.f32 %v542, %v525
  %544 = vadd.xlane.f32.xlu0 %v543
  %v545 = vpop.xlane.xlu0 %544
  %v546 = vadd.f32 %v474, %v476
  %v547 = vadd.f32 %v546, %v527
  %v548 = vadd.f32 %v547, %v529
  %549 = vadd.xlane.f32.xlu0 %v548
  %v550 = vpop.xlane.xlu0 %549
  %v551 = vmul.f32 %v535, 0.001953125
  %v552 = vmul.f32 %v540, 0.001953125
  %v553 = vmul.f32 %v545, 0.001953125
  %v554 = vmul.f32 %v550, 0.001953125
  %v555 = vsub.f32 %v460, %v551
  %v556 = vsub.f32 %v462, %v551
  %v557 = vsub.f32 %v513, %v551
  %v558 = vsub.f32 %v515, %v551
  %v559 = vsub.f32 %v464, %v552
  %v560 = vsub.f32 %v466, %v552
  %v561 = vsub.f32 %v517, %v552
  %v562 = vsub.f32 %v519, %v552
  %v563 = vsub.f32 %v470, %v553
  %v564 = vsub.f32 %v472, %v553
  %v565 = vsub.f32 %v523, %v553
  %v566 = vsub.f32 %v525, %v553
  %v567 = vsub.f32 %v474, %v554
  %v568 = vsub.f32 %v476, %v554
  %v569 = vsub.f32 %v527, %v554
  %v570 = vsub.f32 %v529, %v554
  %v571 = vmul.f32 %v555, %v555
  %v572 = vmul.f32 %v556, %v556
  %v573 = vmul.f32 %v557, %v557
  %v574 = vmul.f32 %v558, %v558
  %v575 = vmul.f32 %v559, %v559
  %v576 = vmul.f32 %v560, %v560
  %v577 = vmul.f32 %v561, %v561
  %v578 = vmul.f32 %v562, %v562
  %v579 = vmul.f32 %v563, %v563
  %v580 = vmul.f32 %v564, %v564
  %v581 = vmul.f32 %v565, %v565
  %v582 = vmul.f32 %v566, %v566
  %v583 = vmul.f32 %v567, %v567
  %v584 = vmul.f32 %v568, %v568
  %v585 = vmul.f32 %v569, %v569
  %v586 = vmul.f32 %v570, %v570
  %v587 = vadd.f32 %v571, %v572
  %v588 = vadd.f32 %v587, %v573
  %v589 = vadd.f32 %v588, %v574
  %590 = vadd.xlane.f32.xlu0 %v589
  %v591 = vpop.xlane.xlu0 %590
  %v592 = vadd.f32 %v575, %v576
  %v593 = vadd.f32 %v592, %v577
  %v594 = vadd.f32 %v593, %v578
  %595 = vadd.xlane.f32.xlu0 %v594
  %v596 = vpop.xlane.xlu0 %595
  %v597 = vadd.f32 %v579, %v580
  %v598 = vadd.f32 %v597, %v581
  %v599 = vadd.f32 %v598, %v582
  %600 = vadd.xlane.f32.xlu0 %v599
  %v601 = vpop.xlane.xlu0 %600
  %v602 = vadd.f32 %v583, %v584
  %v603 = vadd.f32 %v602, %v585
  %v604 = vadd.f32 %v603, %v586
  %605 = vadd.xlane.f32.xlu0 %v604
  %v606 = vpop.xlane.xlu0 %605
  %v607 = vmul.f32 %v591, 0.001953125
  %v608 = vmul.f32 %v596, 0.001953125
  %v609 = vmul.f32 %v601, 0.001953125
  %v610 = vmul.f32 %v606, 0.001953125
  %v611 = vld [vmem:[%s2] sm:$0xff]
  %v612 = vld [vmem:[%s2 + $0x8] sm:$0xff]
  %v613 = vld [vmem:[%s2 + $0x10] sm:$0xff]
  %v614 = vld [vmem:[%s2 + $0x18] sm:$0xff]
  %v615 = vadd.f32 %v607, 1e-05
  %v616 = vadd.f32 %v608, 1e-05
  %v617 = vadd.f32 %v609, 1e-05
  %v618 = vadd.f32 %v610, 1e-05
  %v619 = vrsqrt.pop %v615
  %v620 = vrsqrt.pop %v616
  %v621 = vrsqrt.pop %v617
  %v622 = vrsqrt.pop %v618
  %v623 = vmul.f32 %v611, %v619
  %v624 = vmul.f32 %v612, %v620
  %v625 = vmul.f32 %v613, %v621
  %v626 = vmul.f32 %v614, %v622
  %628 = vset.pattern.permute.xlu0 0
  %629 = vperm.xlu0 %628, %v623
  %v630 = vpop.permute.xlu0 %629
  %633 = vset.pattern.permute.xlu0 0
  %634 = vperm.xlu0 %633, %v624
  %v635 = vpop.permute.xlu0 %634
  %638 = vset.pattern.permute.xlu0 0
  %639 = vperm.xlu0 %638, %v625
  %v640 = vpop.permute.xlu0 %639
  %643 = vset.pattern.permute.xlu0 0
  %644 = vperm.xlu0 %643, %v626
  %v645 = vpop.permute.xlu0 %644
  %v647 = vmul.f32 %v555, %v630
  %v648 = vmul.f32 %v556, %v630
  %v649 = vmul.f32 %v557, %v630
  %v650 = vmul.f32 %v558, %v630
  %v651 = vmul.f32 %v559, %v635
  %v652 = vmul.f32 %v560, %v635
  %v653 = vmul.f32 %v561, %v635
  %v654 = vmul.f32 %v562, %v635
  %v655 = vmul.f32 %v563, %v640
  %v656 = vmul.f32 %v564, %v640
  %v657 = vmul.f32 %v565, %v640
  %v658 = vmul.f32 %v566, %v640
  %v659 = vmul.f32 %v567, %v645
  %v660 = vmul.f32 %v568, %v645
  %v661 = vmul.f32 %v569, %v645
  %v662 = vmul.f32 %v570, %v645
  %v663 = vld [vmem:[%s3] sm:$0xff]
  %v664 = vld [vmem:[%s3 + $0x8] sm:$0xff]
  %v665 = vld [vmem:[%s3 + $0x10] sm:$0xff]
  %v666 = vld [vmem:[%s3 + $0x18] sm:$0xff]
  %668 = vset.pattern.permute.xlu0 0
  %669 = vperm.xlu0 %668, %v663
  %v670 = vpop.permute.xlu0 %669
  %673 = vset.pattern.permute.xlu0 0
  %674 = vperm.xlu0 %673, %v664
  %v675 = vpop.permute.xlu0 %674
  %678 = vset.pattern.permute.xlu0 0
  %679 = vperm.xlu0 %678, %v665
  %v680 = vpop.permute.xlu0 %679
  %683 = vset.pattern.permute.xlu0 0
  %684 = vperm.xlu0 %683, %v666
  %v685 = vpop.permute.xlu0 %684
  %v687 = vadd.f32 %v647, %v670
  %v688 = vadd.f32 %v648, %v670
  %v689 = vadd.f32 %v649, %v670
  %v690 = vadd.f32 %v650, %v670
  %v691 = vadd.f32 %v651, %v675
  %v692 = vadd.f32 %v652, %v675
  %v693 = vadd.f32 %v653, %v675
  %v694 = vadd.f32 %v654, %v675
  %v695 = vadd.f32 %v655, %v680
  %v696 = vadd.f32 %v656, %v680
  %v697 = vadd.f32 %v657, %v680
  %v698 = vadd.f32 %v658, %v680
  %v699 = vadd.f32 %v659, %v685
  %v700 = vadd.f32 %v660, %v685
  %v701 = vadd.f32 %v661, %v685
  %v702 = vadd.f32 %v662, %v685
  %vm703 = vcmp.ge.f32.partialorder %v687, 0.0
  %vm704 = vcmp.ge.f32.partialorder %v688, 0.0
  %vm705 = vcmp.ge.f32.partialorder %v689, 0.0
  %vm706 = vcmp.ge.f32.partialorder %v690, 0.0
  %vm707 = vcmp.ge.f32.partialorder %v691, 0.0
  %vm708 = vcmp.ge.f32.partialorder %v692, 0.0
  %vm709 = vcmp.ge.f32.partialorder %v693, 0.0
  %vm710 = vcmp.ge.f32.partialorder %v694, 0.0
  %vm711 = vcmp.ge.f32.partialorder %v695, 0.0
  %vm712 = vcmp.ge.f32.partialorder %v696, 0.0
  %vm713 = vcmp.ge.f32.partialorder %v697, 0.0
  %vm714 = vcmp.ge.f32.partialorder %v698, 0.0
  %vm715 = vcmp.ge.f32.partialorder %v699, 0.0
  %vm716 = vcmp.ge.f32.partialorder %v700, 0.0
  %vm717 = vcmp.ge.f32.partialorder %v701, 0.0
  %vm718 = vcmp.ge.f32.partialorder %v702, 0.0
  %v719 = vmul.f32 %v687, 0.2
  %v720 = vmul.f32 %v688, 0.2
  %v721 = vmul.f32 %v689, 0.2
  %v722 = vmul.f32 %v690, 0.2
  %v723 = vmul.f32 %v691, 0.2
  %v724 = vmul.f32 %v692, 0.2
  %v725 = vmul.f32 %v693, 0.2
  %v726 = vmul.f32 %v694, 0.2
  %v727 = vmul.f32 %v695, 0.2
  %v728 = vmul.f32 %v696, 0.2
  %v729 = vmul.f32 %v697, 0.2
  %v730 = vmul.f32 %v698, 0.2
  %v731 = vmul.f32 %v699, 0.2
  %v732 = vmul.f32 %v700, 0.2
  %v733 = vmul.f32 %v701, 0.2
  %v734 = vmul.f32 %v702, 0.2
  %v735 = vsel %vm703, %v687, %v719
  %v736 = vsel %vm704, %v688, %v720
  %v737 = vsel %vm705, %v689, %v721
  %v738 = vsel %vm706, %v690, %v722
  %v739 = vsel %vm707, %v691, %v723
  %v740 = vsel %vm708, %v692, %v724
  %v741 = vsel %vm709, %v693, %v725
  %v742 = vsel %vm710, %v694, %v726
  %v743 = vsel %vm711, %v695, %v727
  %v744 = vsel %vm712, %v696, %v728
  %v745 = vsel %vm713, %v697, %v729
  %v746 = vsel %vm714, %v698, %v730
  %v747 = vsel %vm715, %v699, %v731
  %v748 = vsel %vm716, %v700, %v732
  %v749 = vsel %vm717, %v701, %v733
  %v750 = vsel %vm718, %v702, %v734
  %v751 = vpack.c.bf16 %v739, %v735
  %v752 = vpack.c.bf16 %v740, %v736
  %v753 = vpack.c.bf16 %v741, %v737
  %v754 = vpack.c.bf16 %v742, %v738
  %v755 = vpack.c.bf16 %v747, %v743
  %v756 = vpack.c.bf16 %v748, %v744
  %v757 = vpack.c.bf16 %v749, %v745
  %v758 = vpack.c.bf16 %v750, %v746
  %v767 = vunpack.c.l.b16 %v751
  %v768 = vunpack.c.l.b16 %v752
  %v769 = vunpack.c.l.b16 %v753
  %v770 = vunpack.c.l.b16 %v754
  %v771 = vunpack.c.h.b16 %v751
  %v772 = vunpack.c.h.b16 %v752
  %v773 = vunpack.c.h.b16 %v753
  %v774 = vunpack.c.h.b16 %v754
  %v775 = vunpack.c.l.b16 %v755
  %v776 = vunpack.c.l.b16 %v756
  %v777 = vunpack.c.l.b16 %v757
  %v778 = vunpack.c.l.b16 %v758
  %v779 = vunpack.c.h.b16 %v755
  %v780 = vunpack.c.h.b16 %v756
  %v781 = vunpack.c.h.b16 %v757
  %v782 = vunpack.c.h.b16 %v758
  %v783 = vpack.c.b16 %v768, %v767
  %v784 = vpack.c.b16 %v770, %v769
  %v785 = vpack.c.b16 %v772, %v771
  %v786 = vpack.c.b16 %v774, %v773
  %v787 = vpack.c.b16 %v776, %v775
  %v788 = vpack.c.b16 %v778, %v777
  %v789 = vpack.c.b16 %v780, %v779
  %v790 = vpack.c.b16 %v782, %v781
  %799 = vst [vmem:[%s4] sm:$0xff] %v783
  %800 = vst [vmem:[%s4 + $0x8] sm:$0xff] %v784
  %801 = vst [vmem:[%s4 + $0x10] sm:$0xff] %v785
  %802 = vst [vmem:[%s4 + $0x18] sm:$0xff] %v786
  %803 = vst [vmem:[%s4 + $0x20] sm:$0xff] %v787
  %804 = vst [vmem:[%s4 + $0x28] sm:$0xff] %v788
  %805 = vst [vmem:[%s4 + $0x30] sm:$0xff] %v789
  %806 = vst [vmem:[%s4 + $0x38] sm:$0xff] %v790
  // Predicated region
  $region18: #{discriminator_forward.5} parent=0 // pred_check
    _
  $region19: #{discriminator_forward.5} parent=0 // pred_check_branch
    %808 = sbr.rel (0) target = $region21
  $region20: #{discriminator_forward.5} parent=0 // pred_region
    _
  $region21: #{discriminator_forward.5} parent=0 // pred_fallthru
    _
  // Predicated region
  $region22: #{discriminator_forward.5} parent=0 // pred_check
    _
  $region23: #{discriminator_forward.5} parent=0 // pred_check_branch
    %810 = sbr.rel (0) target = $region25
  $region24: #{discriminator_forward.5} parent=0 // pred_region
    _
  $region25: #{discriminator_forward.5} parent=0 // pred_fallthru
    _

// kernel: discriminator_forward.6
$region0: #{discriminator_forward.6}
  #allocation0 [shape = 'u32[]', space=smem, size = 0x4, offset = 0x4, fixed_abs, tag = 'smem constant byte address 0x4 - core index']
  #allocation1 [shape = 'u32[144,128]{1,0:T(1,128)}', space=vmem, size = 0x12000, scoped, tag = 'internal scratch']
  %s0 = inlined_call_operand.vmem [shape: bf16[64,512], index: 0, kind: input, shape index: {}]
  %s1 = inlined_call_operand.vmem [shape: bf16[512,128], index: 1, kind: input, shape index: {}]
  %s2 = inlined_call_operand.vmem [shape: f32[64,1], index: 2, kind: input, shape index: {}]
  %s3 = inlined_call_operand.vmem [shape: f32[64,1], index: 3, kind: input, shape index: {}]
  %s4 = inlined_call_operand.vmem [shape: bf16[64,128], index: 4, kind: output, shape index: {}]
  %s5 = sld [smem:[#allocation0]]
  $region26: #{discriminator_forward.6} parent=0
    _
  %s7 = ssub.s32 1, %s5
  %s8 = scalar_select 0, %s7, %s5
  // Predicated region
  $region2: #{discriminator_forward.6} parent=0 // pred_check
    _
  $region3: #{discriminator_forward.6} parent=0 // pred_check_branch
    %10 = sbr.rel (0) target = $region5
  $region4: #{discriminator_forward.6} parent=0 // pred_region
    _
  $region5: #{discriminator_forward.6} parent=0 // pred_fallthru
    _
  // Predicated region
  $region6: #{discriminator_forward.6} parent=0 // pred_check
    _
  $region7: #{discriminator_forward.6} parent=0 // pred_check_branch
    %12 = sbr.rel (0) target = $region9
  $region8: #{discriminator_forward.6} parent=0 // pred_region
    _
  $region9: #{discriminator_forward.6} parent=0 // pred_fallthru
    _
  // Predicated region
  $region10: #{discriminator_forward.6} parent=0 // pred_check
    _
  $region11: #{discriminator_forward.6} parent=0 // pred_check_branch
    %14 = sbr.rel (0) target = $region13
  $region12: #{discriminator_forward.6} parent=0 // pred_region
    _
  $region13: #{discriminator_forward.6} parent=0 // pred_fallthru
    _
  // Predicated region
  $region14: #{discriminator_forward.6} parent=0 // pred_check
    _
  $region15: #{discriminator_forward.6} parent=0 // pred_check_branch
    %16 = sbr.rel (0) target = $region17
  $region16: #{discriminator_forward.6} parent=0 // pred_region
    _
  $region17: #{discriminator_forward.6} parent=0 // pred_fallthru
    _
  %v18 = vld [vmem:[%s0] sm:$0xff]
  %v19 = vld [vmem:[%s0 + $0x8] sm:$0xff]
  %v20 = vld [vmem:[%s0 + $0x10] sm:$0xff]
  %v21 = vld [vmem:[%s0 + $0x18] sm:$0xff]
  %v22 = vld [vmem:[%s0 + $0x20] sm:$0xff]
  %v23 = vld [vmem:[%s0 + $0x28] sm:$0xff]
  %v24 = vld [vmem:[%s0 + $0x30] sm:$0xff]
  %v25 = vld [vmem:[%s0 + $0x38] sm:$0xff]
  %v26 = vld [vmem:[%s0 + $0x40] sm:$0xff]
  %v27 = vld [vmem:[%s0 + $0x48] sm:$0xff]
  %v28 = vld [vmem:[%s0 + $0x50] sm:$0xff]
  %v29 = vld [vmem:[%s0 + $0x58] sm:$0xff]
  %v30 = vld [vmem:[%s0 + $0x60] sm:$0xff]
  %v31 = vld [vmem:[%s0 + $0x68] sm:$0xff]
  %v32 = vld [vmem:[%s0 + $0x70] sm:$0xff]
  %v33 = vld [vmem:[%s0 + $0x78] sm:$0xff]
  %v34 = vld [vmem:[%s1] sm:$0xf]
  %v35 = vld [vmem:[%s1 + $0x4] sm:$0xf]
  %v36 = vld [vmem:[%s1 + $0x8] sm:$0xf]
  %v37 = vld [vmem:[%s1 + $0xc] sm:$0xf]
  %v38 = vld [vmem:[%s1 + $0x10] sm:$0xf]
  %v39 = vld [vmem:[%s1 + $0x14] sm:$0xf]
  %v40 = vld [vmem:[%s1 + $0x18] sm:$0xf]
  %v41 = vld [vmem:[%s1 + $0x1c] sm:$0xf]
  %v42 = vld [vmem:[%s1 + $0x20] sm:$0xf]
  %v43 = vld [vmem:[%s1 + $0x24] sm:$0xf]
  %v44 = vld [vmem:[%s1 + $0x28] sm:$0xf]
  %v45 = vld [vmem:[%s1 + $0x2c] sm:$0xf]
  %v46 = vld [vmem:[%s1 + $0x30] sm:$0xf]
  %v47 = vld [vmem:[%s1 + $0x34] sm:$0xf]
  %v48 = vld [vmem:[%s1 + $0x38] sm:$0xf]
  %v49 = vld [vmem:[%s1 + $0x3c] sm:$0xf]
  %v50 = vld [vmem:[%s1 + $0x40] sm:$0xf]
  %v51 = vld [vmem:[%s1 + $0x44] sm:$0xf]
  %v52 = vld [vmem:[%s1 + $0x48] sm:$0xf]
  %v53 = vld [vmem:[%s1 + $0x4c] sm:$0xf]
  %v54 = vld [vmem:[%s1 + $0x50] sm:$0xf]
  %v55 = vld [vmem:[%s1 + $0x54] sm:$0xf]
  %v56 = vld [vmem:[%s1 + $0x58] sm:$0xf]
  %v57 = vld [vmem:[%s1 + $0x5c] sm:$0xf]
  %v58 = vld [vmem:[%s1 + $0x60] sm:$0xf]
  %v59 = vld [vmem:[%s1 + $0x64] sm:$0xf]
  %v60 = vld [vmem:[%s1 + $0x68] sm:$0xf]
  %v61 = vld [vmem:[%s1 + $0x6c] sm:$0xf]
  %v62 = vld [vmem:[%s1 + $0x70] sm:$0xf]
  %v63 = vld [vmem:[%s1 + $0x74] sm:$0xf]
  %v64 = vld [vmem:[%s1 + $0x78] sm:$0xf]
  %v65 = vld [vmem:[%s1 + $0x7c] sm:$0xf]
  %v66 = vld [vmem:[%s1 + $0x80] sm:$0xf]
  %v67 = vld [vmem:[%s1 + $0x84] sm:$0xf]
  %v68 = vld [vmem:[%s1 + $0x88] sm:$0xf]
  %v69 = vld [vmem:[%s1 + $0x8c] sm:$0xf]
  %v70 = vld [vmem:[%s1 + $0x90] sm:$0xf]
  %v71 = vld [vmem:[%s1 + $0x94] sm:$0xf]
  %v72 = vld [vmem:[%s1 + $0x98] sm:$0xf]
  %v73 = vld [vmem:[%s1 + $0x9c] sm:$0xf]
  %v74 = vld [vmem:[%s1 + $0xa0] sm:$0xf]
  %v75 = vld [vmem:[%s1 + $0xa4] sm:$0xf]
  %v76 = vld [vmem:[%s1 + $0xa8] sm:$0xf]
  %v77 = vld [vmem:[%s1 + $0xac] sm:$0xf]
  %v78 = vld [vmem:[%s1 + $0xb0] sm:$0xf]
  %v79 = vld [vmem:[%s1 + $0xb4] sm:$0xf]
  %v80 = vld [vmem:[%s1 + $0xb8] sm:$0xf]
  %v81 = vld [vmem:[%s1 + $0xbc] sm:$0xf]
  %v82 = vld [vmem:[%s1 + $0xc0] sm:$0xf]
  %v83 = vld [vmem:[%s1 + $0xc4] sm:$0xf]
  %v84 = vld [vmem:[%s1 + $0xc8] sm:$0xf]
  %v85 = vld [vmem:[%s1 + $0xcc] sm:$0xf]
  %v86 = vld [vmem:[%s1 + $0xd0] sm:$0xf]
  %v87 = vld [vmem:[%s1 + $0xd4] sm:$0xf]
  %v88 = vld [vmem:[%s1 + $0xd8] sm:$0xf]
  %v89 = vld [vmem:[%s1 + $0xdc] sm:$0xf]
  %v90 = vld [vmem:[%s1 + $0xe0] sm:$0xf]
  %v91 = vld [vmem:[%s1 + $0xe4] sm:$0xf]
  %v92 = vld [vmem:[%s1 + $0xe8] sm:$0xf]
  %v93 = vld [vmem:[%s1 + $0xec] sm:$0xf]
  %v94 = vld [vmem:[%s1 + $0xf0] sm:$0xf]
  %v95 = vld [vmem:[%s1 + $0xf4] sm:$0xf]
  %v96 = vld [vmem:[%s1 + $0xf8] sm:$0xf]
  %v97 = vld [vmem:[%s1 + $0xfc] sm:$0xf]
  %v114 = vunpack.c.l.b16 %v18
  %v115 = vunpack.c.h.b16 %v18
  %v116 = vunpack.c.l.b16 %v19
  %v117 = vunpack.c.h.b16 %v19
  %v118 = vunpack.c.l.b16 %v20
  %v119 = vunpack.c.h.b16 %v20
  %v120 = vunpack.c.l.b16 %v21
  %v121 = vunpack.c.h.b16 %v21
  %v122 = vunpack.c.l.b16 %v22
  %v123 = vunpack.c.h.b16 %v22
  %v124 = vunpack.c.l.b16 %v23
  %v125 = vunpack.c.h.b16 %v23
  %v126 = vunpack.c.l.b16 %v24
  %v127 = vunpack.c.h.b16 %v24
  %v128 = vunpack.c.l.b16 %v25
  %v129 = vunpack.c.h.b16 %v25
  %v130 = vunpack.c.l.b16 %v26
  %v131 = vunpack.c.h.b16 %v26
  %v132 = vunpack.c.l.b16 %v27
  %v133 = vunpack.c.h.b16 %v27
  %v134 = vunpack.c.l.b16 %v28
  %v135 = vunpack.c.h.b16 %v28
  %v136 = vunpack.c.l.b16 %v29
  %v137 = vunpack.c.h.b16 %v29
  %v138 = vunpack.c.l.b16 %v30
  %v139 = vunpack.c.h.b16 %v30
  %v140 = vunpack.c.l.b16 %v31
  %v141 = vunpack.c.h.b16 %v31
  %v142 = vunpack.c.l.b16 %v32
  %v143 = vunpack.c.h.b16 %v32
  %v144 = vunpack.c.l.b16 %v33
  %v145 = vunpack.c.h.b16 %v33
  %v146 = vpack.c.b16 %v118, %v114
  %v147 = vpack.c.b16 %v119, %v115
  %v148 = vpack.c.b16 %v120, %v116
  %v149 = vpack.c.b16 %v121, %v117
  %v150 = vpack.c.b16 %v126, %v122
  %v151 = vpack.c.b16 %v127, %v123
  %v152 = vpack.c.b16 %v128, %v124
  %v153 = vpack.c.b16 %v129, %v125
  %v154 = vpack.c.b16 %v134, %v130
  %v155 = vpack.c.b16 %v135, %v131
  %v156 = vpack.c.b16 %v136, %v132
  %v157 = vpack.c.b16 %v137, %v133
  %v158 = vpack.c.b16 %v142, %v138
  %v159 = vpack.c.b16 %v143, %v139
  %v160 = vpack.c.b16 %v144, %v140
  %v161 = vpack.c.b16 %v145, %v141
  %v242 = vunpack.c.l.b16 %v34
  %v243 = vunpack.c.l.b16 %v35
  %v244 = vunpack.c.l.b16 %v36
  %v245 = vunpack.c.l.b16 %v37
  %v246 = vunpack.c.l.b16 %v38
  %v247 = vunpack.c.l.b16 %v39
  %v248 = vunpack.c.l.b16 %v40
  %v249 = vunpack.c.l.b16 %v41
  %v250 = vunpack.c.l.b16 %v42
  %v251 = vunpack.c.l.b16 %v43
  %v252 = vunpack.c.l.b16 %v44
  %v253 = vunpack.c.l.b16 %v45
  %v254 = vunpack.c.l.b16 %v46
  %v255 = vunpack.c.l.b16 %v47
  %v256 = vunpack.c.l.b16 %v48
  %v257 = vunpack.c.l.b16 %v49
  %v258 = vunpack.c.l.b16 %v50
  %v259 = vunpack.c.l.b16 %v51
  %v260 = vunpack.c.l.b16 %v52
  %v261 = vunpack.c.l.b16 %v53
  %v262 = vunpack.c.l.b16 %v54
  %v263 = vunpack.c.l.b16 %v55
  %v264 = vunpack.c.l.b16 %v56
  %v265 = vunpack.c.l.b16 %v57
  %v266 = vunpack.c.l.b16 %v58
  %v267 = vunpack.c.l.b16 %v59
  %v268 = vunpack.c.l.b16 %v60
  %v269 = vunpack.c.l.b16 %v61
  %v270 = vunpack.c.l.b16 %v62
  %v271 = vunpack.c.l.b16 %v63
  %v272 = vunpack.c.l.b16 %v64
  %v273 = vunpack.c.l.b16 %v65
  %v274 = vunpack.c.l.b16 %v66
  %v275 = vunpack.c.l.b16 %v67
  %v276 = vunpack.c.l.b16 %v68
  %v277 = vunpack.c.l.b16 %v69
  %v278 = vunpack.c.l.b16 %v70
  %v279 = vunpack.c.l.b16 %v71
  %v280 = vunpack.c.l.b16 %v72
  %v281 = vunpack.c.l.b16 %v73
  %v282 = vunpack.c.l.b16 %v74
  %v283 = vunpack.c.l.b16 %v75
  %v284 = vunpack.c.l.b16 %v76
  %v285 = vunpack.c.l.b16 %v77
  %v286 = vunpack.c.l.b16 %v78
  %v287 = vunpack.c.l.b16 %v79
  %v288 = vunpack.c.l.b16 %v80
  %v289 = vunpack.c.l.b16 %v81
  %v290 = vunpack.c.l.b16 %v82
  %v291 = vunpack.c.l.b16 %v83
  %v292 = vunpack.c.l.b16 %v84
  %v293 = vunpack.c.l.b16 %v85
  %v294 = vunpack.c.l.b16 %v86
  %v295 = vunpack.c.l.b16 %v87
  %v296 = vunpack.c.l.b16 %v88
  %v297 = vunpack.c.l.b16 %v89
  %v298 = vunpack.c.l.b16 %v90
  %v299 = vunpack.c.l.b16 %v91
  %v300 = vunpack.c.l.b16 %v92
  %v301 = vunpack.c.l.b16 %v93
  %v302 = vunpack.c.l.b16 %v94
  %v303 = vunpack.c.l.b16 %v95
  %v304 = vunpack.c.l.b16 %v96
  %v305 = vunpack.c.l.b16 %v97
  %v306 = vpack.c.b16 %v243, %v242
  %v307 = vpack.c.b16 %v245, %v244
  %v308 = vpack.c.b16 %v247, %v246
  %v309 = vpack.c.b16 %v249, %v248
  %v310 = vpack.c.b16 %v251, %v250
  %v311 = vpack.c.b16 %v253, %v252
  %v312 = vpack.c.b16 %v255, %v254
  %v313 = vpack.c.b16 %v257, %v256
  %v314 = vpack.c.b16 %v259, %v258
  %v315 = vpack.c.b16 %v261, %v260
  %v316 = vpack.c.b16 %v263, %v262
  %v317 = vpack.c.b16 %v265, %v264
  %v318 = vpack.c.b16 %v267, %v266
  %v319 = vpack.c.b16 %v269, %v268
  %v320 = vpack.c.b16 %v271, %v270
  %v321 = vpack.c.b16 %v273, %v272
  %v322 = vpack.c.b16 %v275, %v274
  %v323 = vpack.c.b16 %v277, %v276
  %v324 = vpack.c.b16 %v279, %v278
  %v325 = vpack.c.b16 %v281, %v280
  %v326 = vpack.c.b16 %v283, %v282
  %v327 = vpack.c.b16 %v285, %v284
  %v328 = vpack.c.b16 %v287, %v286
  %v329 = vpack.c.b16 %v289, %v288
  %v330 = vpack.c.b16 %v291, %v290
  %v331 = vpack.c.b16 %v293, %v292
  %v332 = vpack.c.b16 %v295, %v294
  %v333 = vpack.c.b16 %v297, %v296
  %v334 = vpack.c.b16 %v299, %v298
  %v335 = vpack.c.b16 %v301, %v300
  %v336 = vpack.c.b16 %v303, %v302
  %v337 = vpack.c.b16 %v305, %v304
  %370 = vmatprep.subr.bf16.mxu0 0
  %371 = vmatpush1.bf16.msra.mxu0 %v313
  %372 = vmatprep.subr.bf16.mxu0 0
  %373 = vmatpush1.bf16.msra.mxu0 %v312
  %374 = vmatprep.subr.bf16.mxu0 0
  %375 = vmatpush1.bf16.msra.mxu0 %v311
  %376 = vmatprep.subr.bf16.mxu0 0
  %377 = vmatpush1.bf16.msra.mxu0 %v310
  %378 = vmatprep.subr.bf16.mxu0 0
  %379 = vmatpush1.bf16.msra.mxu0 %v309
  %380 = vmatprep.subr.bf16.mxu0 0
  %381 = vmatpush1.bf16.msra.mxu0 %v308
  %382 = vmatprep.subr.bf16.mxu0 0
  %383 = vmatpush1.bf16.msra.mxu0 %v307
  %384 = vmatprep.subr.bf16.mxu0 0
  %385 = vmatpush1.bf16.msra.mxu0 %v306
  %386 = vmatprep.subr.bf16.mxu0 0
  %387 = vmatpush2.bf16.msra.mxu0 %v321
  %388 = vmatprep.subr.bf16.mxu0 0
  %389 = vmatpush2.bf16.msra.mxu0 %v320
  %390 = vmatprep.subr.bf16.mxu0 0
  %391 = vmatpush2.bf16.msra.mxu0 %v319
  %392 = vmatprep.subr.bf16.mxu0 0
  %393 = vmatpush2.bf16.msra.mxu0 %v318
  %394 = vmatprep.subr.bf16.mxu0 0
  %395 = vmatpush2.bf16.msra.mxu0 %v317
  %396 = vmatprep.subr.bf16.mxu0 0
  %397 = vmatpush2.bf16.msra.mxu0 %v316
  %398 = vmatprep.subr.bf16.mxu0 0
  %399 = vmatpush2.bf16.msra.mxu0 %v315
  %400 = vmatprep.subr.bf16.mxu0 0
  %401 = vmatpush2.bf16.msra.mxu0 %v314
  %402 = vmatprep.mubr.bf16.mxu0 %v147
  %403 = vmatmul.mubr.bf16.gmra.mxu0 %v146
  %v404 = vpop.f32.mrf.mxu0
  %v405 = vadd.f32 0.0, %v404
  %v406 = vpop.f32.mrf.mxu0
  %v407 = vpop.f32.mrf.mxu0
  %v408 = vadd.f32 0.0, %v407
  %v409 = vpop.f32.mrf.mxu0
  %410 = vmatprep.mubr.bf16.mxu0 %v151
  %411 = vmatmul.mubr.bf16.gmra.mxu0 %v150
  %v412 = vpop.f32.mrf.mxu0
  %v413 = vadd.f32 0.0, %v412
  %v414 = vpop.f32.mrf.mxu0
  %v415 = vpop.f32.mrf.mxu0
  %v416 = vadd.f32 0.0, %v415
  %v417 = vpop.f32.mrf.mxu0
  %418 = vmatprep.mubr.bf16.mxu0 %v155
  %419 = vmatmul.mubr.bf16.gmra.mxu0 %v154
  %v420 = vpop.f32.mrf.mxu0
  %v421 = vadd.f32 0.0, %v420
  %v422 = vpop.f32.mrf.mxu0
  %v423 = vpop.f32.mrf.mxu0
  %v424 = vadd.f32 0.0, %v423
  %v425 = vpop.f32.mrf.mxu0
  %426 = vmatprep.mubr.bf16.mxu0 %v159
  %427 = vmatmul.mubr.bf16.gmra.mxu0 %v158
  %v428 = vpop.f32.mrf.mxu0
  %v429 = vadd.f32 0.0, %v428
  %v430 = vpop.f32.mrf.mxu0
  %v431 = vpop.f32.mrf.mxu0
  %v432 = vadd.f32 0.0, %v431
  %v433 = vpop.f32.mrf.mxu0
  %434 = vdwg.mxu0
  %435 = vmatprep.subr.bf16.mxu0 0
  %436 = vmatpush1.bf16.msra.mxu0 %v329
  %437 = vmatprep.subr.bf16.mxu0 0
  %438 = vmatpush1.bf16.msra.mxu0 %v328
  %439 = vmatprep.subr.bf16.mxu0 0
  %440 = vmatpush1.bf16.msra.mxu0 %v327
  %441 = vmatprep.subr.bf16.mxu0 0
  %442 = vmatpush1.bf16.msra.mxu0 %v326
  %443 = vmatprep.subr.bf16.mxu0 0
  %444 = vmatpush1.bf16.msra.mxu0 %v325
  %445 = vmatprep.subr.bf16.mxu0 0
  %446 = vmatpush1.bf16.msra.mxu0 %v324
  %447 = vmatprep.subr.bf16.mxu0 0
  %448 = vmatpush1.bf16.msra.mxu0 %v323
  %449 = vmatprep.subr.bf16.mxu0 0
  %450 = vmatpush1.bf16.msra.mxu0 %v322
  %451 = vmatprep.subr.bf16.mxu0 0
  %452 = vmatpush2.bf16.msra.mxu0 %v337
  %453 = vmatprep.subr.bf16.mxu0 0
  %454 = vmatpush2.bf16.msra.mxu0 %v336
  %455 = vmatprep.subr.bf16.mxu0 0
  %456 = vmatpush2.bf16.msra.mxu0 %v335
  %457 = vmatprep.subr.bf16.mxu0 0
  %458 = vmatpush2.bf16.msra.mxu0 %v334
  %459 = vmatprep.subr.bf16.mxu0 0
  %460 = vmatpush2.bf16.msra.mxu0 %v333
  %461 = vmatprep.subr.bf16.mxu0 0
  %462 = vmatpush2.bf16.msra.mxu0 %v332
  %463 = vmatprep.subr.bf16.mxu0 0
  %464 = vmatpush2.bf16.msra.mxu0 %v331
  %465 = vmatprep.subr.bf16.mxu0 0
  %466 = vmatpush2.bf16.msra.mxu0 %v330
  %467 = vmatprep.mubr.bf16.mxu0 %v149
  %468 = vmatmul.mubr.bf16.gmra.mxu0 %v148
  %v469 = vpop.f32.mrf.mxu0
  %v470 = vadd.f32 %v405, %v469
  %v471 = vpop.f32.mrf.mxu0
  %v472 = vpop.f32.mrf.mxu0
  %v473 = vadd.f32 %v408, %v472
  %v474 = vpop.f32.mrf.mxu0
  %475 = vmatprep.mubr.bf16.mxu0 %v153
  %476 = vmatmul.mubr.bf16.gmra.mxu0 %v152
  %v477 = vpop.f32.mrf.mxu0
  %v478 = vadd.f32 %v413, %v477
  %v479 = vpop.f32.mrf.mxu0
  %v480 = vpop.f32.mrf.mxu0
  %v481 = vadd.f32 %v416, %v480
  %v482 = vpop.f32.mrf.mxu0
  %483 = vmatprep.mubr.bf16.mxu0 %v157
  %484 = vmatmul.mubr.bf16.gmra.mxu0 %v156
  %v485 = vpop.f32.mrf.mxu0
  %v486 = vadd.f32 %v421, %v485
  %v487 = vpop.f32.mrf.mxu0
  %v488 = vpop.f32.mrf.mxu0
  %v489 = vadd.f32 %v424, %v488
  %v490 = vpop.f32.mrf.mxu0
  %491 = vmatprep.mubr.bf16.mxu0 %v161
  %492 = vmatmul.mubr.bf16.gmra.mxu0 %v160
  %v493 = vpop.f32.mrf.mxu0
  %v494 = vadd.f32 %v429, %v493
  %v495 = vpop.f32.mrf.mxu0
  %v496 = vpop.f32.mrf.mxu0
  %v497 = vadd.f32 %v432, %v496
  %v498 = vpop.f32.mrf.mxu0
  %499 = vdwg.mxu0
  %500 = vadd.xlane.f32.xlu0 %v470
  %v501 = vpop.xlane.xlu0 %500
  %502 = vadd.xlane.f32.xlu0 %v473
  %v503 = vpop.xlane.xlu0 %502
  %504 = vadd.xlane.f32.xlu0 %v478
  %v505 = vpop.xlane.xlu0 %504
  %506 = vadd.xlane.f32.xlu0 %v481
  %v507 = vpop.xlane.xlu0 %506
  %508 = vadd.xlane.f32.xlu0 %v486
  %v509 = vpop.xlane.xlu0 %508
  %510 = vadd.xlane.f32.xlu0 %v489
  %v511 = vpop.xlane.xlu0 %510
  %512 = vadd.xlane.f32.xlu0 %v494
  %v513 = vpop.xlane.xlu0 %512
  %514 = vadd.xlane.f32.xlu0 %v497
  %v515 = vpop.xlane.xlu0 %514
  %v516 = vmul.f32 %v501, 0.0078125
  %v517 = vmul.f32 %v503, 0.0078125
  %v518 = vmul.f32 %v505, 0.0078125
  %v519 = vmul.f32 %v507, 0.0078125
  %v520 = vmul.f32 %v509, 0.0078125
  %v521 = vmul.f32 %v511, 0.0078125
  %v522 = vmul.f32 %v513, 0.0078125
  %v523 = vmul.f32 %v515, 0.0078125
  %v524 = vsub.f32 %v470, %v516
  %v525 = vsub.f32 %v473, %v517
  %v526 = vsub.f32 %v478, %v518
  %v527 = vsub.f32 %v481, %v519
  %v528 = vsub.f32 %v486, %v520
  %v529 = vsub.f32 %v489, %v521
  %v530 = vsub.f32 %v494, %v522
  %v531 = vsub.f32 %v497, %v523
  %v532 = vmul.f32 %v524, %v524
  %v533 = vmul.f32 %v525, %v525
  %v534 = vmul.f32 %v526, %v526
  %v535 = vmul.f32 %v527, %v527
  %v536 = vmul.f32 %v528, %v528
  %v537 = vmul.f32 %v529, %v529
  %v538 = vmul.f32 %v530, %v530
  %v539 = vmul.f32 %v531, %v531
  %540 = vadd.xlane.f32.xlu0 %v532
  %v541 = vpop.xlane.xlu0 %540
  %542 = vadd.xlane.f32.xlu0 %v533
  %v543 = vpop.xlane.xlu0 %542
  %544 = vadd.xlane.f32.xlu0 %v534
  %v545 = vpop.xlane.xlu0 %544
  %546 = vadd.xlane.f32.xlu0 %v535
  %v547 = vpop.xlane.xlu0 %546
  %548 = vadd.xlane.f32.xlu0 %v536
  %v549 = vpop.xlane.xlu0 %548
  %550 = vadd.xlane.f32.xlu0 %v537
  %v551 = vpop.xlane.xlu0 %550
  %552 = vadd.xlane.f32.xlu0 %v538
  %v553 = vpop.xlane.xlu0 %552
  %554 = vadd.xlane.f32.xlu0 %v539
  %v555 = vpop.xlane.xlu0 %554
  %v556 = vmul.f32 %v541, 0.0078125
  %v557 = vmul.f32 %v543, 0.0078125
  %v558 = vmul.f32 %v545, 0.0078125
  %v559 = vmul.f32 %v547, 0.0078125
  %v560 = vmul.f32 %v549, 0.0078125
  %v561 = vmul.f32 %v551, 0.0078125
  %v562 = vmul.f32 %v553, 0.0078125
  %v563 = vmul.f32 %v555, 0.0078125
  %v564 = vld [vmem:[%s2] sm:$0xff]
  %v565 = vld [vmem:[%s2 + $0x8] sm:$0xff]
  %v566 = vld [vmem:[%s2 + $0x10] sm:$0xff]
  %v567 = vld [vmem:[%s2 + $0x18] sm:$0xff]
  %v568 = vld [vmem:[%s2 + $0x20] sm:$0xff]
  %v569 = vld [vmem:[%s2 + $0x28] sm:$0xff]
  %v570 = vld [vmem:[%s2 + $0x30] sm:$0xff]
  %v571 = vld [vmem:[%s2 + $0x38] sm:$0xff]
  %v572 = vadd.f32 %v556, 1e-05
  %v573 = vadd.f32 %v557, 1e-05
  %v574 = vadd.f32 %v558, 1e-05
  %v575 = vadd.f32 %v559, 1e-05
  %v576 = vadd.f32 %v560, 1e-05
  %v577 = vadd.f32 %v561, 1e-05
  %v578 = vadd.f32 %v562, 1e-05
  %v579 = vadd.f32 %v563, 1e-05
  %v580 = vrsqrt.pop %v572
  %v581 = vrsqrt.pop %v573
  %v582 = vrsqrt.pop %v574
  %v583 = vrsqrt.pop %v575
  %v584 = vrsqrt.pop %v576
  %v585 = vrsqrt.pop %v577
  %v586 = vrsqrt.pop %v578
  %v587 = vrsqrt.pop %v579
  %v588 = vmul.f32 %v564, %v580
  %v589 = vmul.f32 %v565, %v581
  %v590 = vmul.f32 %v566, %v582
  %v591 = vmul.f32 %v567, %v583
  %v592 = vmul.f32 %v568, %v584
  %v593 = vmul.f32 %v569, %v585
  %v594 = vmul.f32 %v570, %v586
  %v595 = vmul.f32 %v571, %v587
  %597 = vset.pattern.permute.xlu0 0
  %598 = vperm.xlu0 %597, %v588
  %v599 = vpop.permute.xlu0 %598
  %602 = vset.pattern.permute.xlu0 0
  %603 = vperm.xlu0 %602, %v589
  %v604 = vpop.permute.xlu0 %603
  %607 = vset.pattern.permute.xlu0 0
  %608 = vperm.xlu0 %607, %v590
  %v609 = vpop.permute.xlu0 %608
  %612 = vset.pattern.permute.xlu0 0
  %613 = vperm.xlu0 %612, %v591
  %v614 = vpop.permute.xlu0 %613
  %617 = vset.pattern.permute.xlu0 0
  %618 = vperm.xlu0 %617, %v592
  %v619 = vpop.permute.xlu0 %618
  %622 = vset.pattern.permute.xlu0 0
  %623 = vperm.xlu0 %622, %v593
  %v624 = vpop.permute.xlu0 %623
  %627 = vset.pattern.permute.xlu0 0
  %628 = vperm.xlu0 %627, %v594
  %v629 = vpop.permute.xlu0 %628
  %632 = vset.pattern.permute.xlu0 0
  %633 = vperm.xlu0 %632, %v595
  %v634 = vpop.permute.xlu0 %633
  %v636 = vmul.f32 %v524, %v599
  %v637 = vmul.f32 %v525, %v604
  %v638 = vmul.f32 %v526, %v609
  %v639 = vmul.f32 %v527, %v614
  %v640 = vmul.f32 %v528, %v619
  %v641 = vmul.f32 %v529, %v624
  %v642 = vmul.f32 %v530, %v629
  %v643 = vmul.f32 %v531, %v634
  %v644 = vld [vmem:[%s3] sm:$0xff]
  %v645 = vld [vmem:[%s3 + $0x8] sm:$0xff]
  %v646 = vld [vmem:[%s3 + $0x10] sm:$0xff]
  %v647 = vld [vmem:[%s3 + $0x18] sm:$0xff]
  %v648 = vld [vmem:[%s3 + $0x20] sm:$0xff]
  %v649 = vld [vmem:[%s3 + $0x28] sm:$0xff]
  %v650 = vld [vmem:[%s3 + $0x30] sm:$0xff]
  %v651 = vld [vmem:[%s3 + $0x38] sm:$0xff]
  %653 = vset.pattern.permute.xlu0 0
  %654 = vperm.xlu0 %653, %v644
  %v655 = vpop.permute.xlu0 %654
  %658 = vset.pattern.permute.xlu0 0
  %659 = vperm.xlu0 %658, %v645
  %v660 = vpop.permute.xlu0 %659
  %663 = vset.pattern.permute.xlu0 0
  %664 = vperm.xlu0 %663, %v646
  %v665 = vpop.permute.xlu0 %664
  %668 = vset.pattern.permute.xlu0 0
  %669 = vperm.xlu0 %668, %v647
  %v670 = vpop.permute.xlu0 %669
  %673 = vset.pattern.permute.xlu0 0
  %674 = vperm.xlu0 %673, %v648
  %v675 = vpop.permute.xlu0 %674
  %678 = vset.pattern.permute.xlu0 0
  %679 = vperm.xlu0 %678, %v649
  %v680 = vpop.permute.xlu0 %679
  %683 = vset.pattern.permute.xlu0 0
  %684 = vperm.xlu0 %683, %v650
  %v685 = vpop.permute.xlu0 %684
  %688 = vset.pattern.permute.xlu0 0
  %689 = vperm.xlu0 %688, %v651
  %v690 = vpop.permute.xlu0 %689
  %v692 = vadd.f32 %v636, %v655
  %v693 = vadd.f32 %v637, %v660
  %v694 = vadd.f32 %v638, %v665
  %v695 = vadd.f32 %v639, %v670
  %v696 = vadd.f32 %v640, %v675
  %v697 = vadd.f32 %v641, %v680
  %v698 = vadd.f32 %v642, %v685
  %v699 = vadd.f32 %v643, %v690
  %vm700 = vcmp.ge.f32.partialorder %v692, 0.0
  %vm701 = vcmp.ge.f32.partialorder %v693, 0.0
  %vm702 = vcmp.ge.f32.partialorder %v694, 0.0
  %vm703 = vcmp.ge.f32.partialorder %v695, 0.0
  %vm704 = vcmp.ge.f32.partialorder %v696, 0.0
  %vm705 = vcmp.ge.f32.partialorder %v697, 0.0
  %vm706 = vcmp.ge.f32.partialorder %v698, 0.0
  %vm707 = vcmp.ge.f32.partialorder %v699, 0.0
  %v708 = vmul.f32 %v692, 0.2
  %v709 = vmul.f32 %v693, 0.2
  %v710 = vmul.f32 %v694, 0.2
  %v711 = vmul.f32 %v695, 0.2
  %v712 = vmul.f32 %v696, 0.2
  %v713 = vmul.f32 %v697, 0.2
  %v714 = vmul.f32 %v698, 0.2
  %v715 = vmul.f32 %v699, 0.2
  %v716 = vsel %vm700, %v692, %v708
  %v717 = vsel %vm701, %v693, %v709
  %v718 = vsel %vm702, %v694, %v710
  %v719 = vsel %vm703, %v695, %v711
  %v720 = vsel %vm704, %v696, %v712
  %v721 = vsel %vm705, %v697, %v713
  %v722 = vsel %vm706, %v698, %v714
  %v723 = vsel %vm707, %v699, %v715
  %v724 = vpack.c.bf16 %v717, %v716
  %v725 = vpack.c.bf16 %v719, %v718
  %v726 = vpack.c.bf16 %v721, %v720
  %v727 = vpack.c.bf16 %v723, %v722
  %v732 = vunpack.c.l.b16 %v724
  %v733 = vunpack.c.h.b16 %v724
  %v734 = vunpack.c.l.b16 %v725
  %v735 = vunpack.c.h.b16 %v725
  %v736 = vunpack.c.l.b16 %v726
  %v737 = vunpack.c.h.b16 %v726
  %v738 = vunpack.c.l.b16 %v727
  %v739 = vunpack.c.h.b16 %v727
  %v740 = vpack.c.b16 %v732, %v732
  %v741 = vpack.c.b16 %v733, %v733
  %v742 = vpack.c.b16 %v734, %v734
  %v743 = vpack.c.b16 %v735, %v735
  %v744 = vpack.c.b16 %v736, %v736
  %v745 = vpack.c.b16 %v737, %v737
  %v746 = vpack.c.b16 %v738, %v738
  %v747 = vpack.c.b16 %v739, %v739
  %756 = vst [vmem:[%s4] sm:$0xf] %v740
  %757 = vst [vmem:[%s4 + $0x4] sm:$0xf] %v741
  %758 = vst [vmem:[%s4 + $0x8] sm:$0xf] %v742
  %759 = vst [vmem:[%s4 + $0xc] sm:$0xf] %v743
  %760 = vst [vmem:[%s4 + $0x10] sm:$0xf] %v744
  %761 = vst [vmem:[%s4 + $0x14] sm:$0xf] %v745
  %762 = vst [vmem:[%s4 + $0x18] sm:$0xf] %v746
  %763 = vst [vmem:[%s4 + $0x1c] sm:$0xf] %v747
  // Predicated region
  $region18: #{discriminator_forward.6} parent=0 // pred_check
    _
  $region19: #{discriminator_forward.6} parent=0 // pred_check_branch
    %765 = sbr.rel (0) target = $region21
  $region20: #{discriminator_forward.6} parent=0 // pred_region
    _
  $region21: #{discriminator_forward.6} parent=0 // pred_fallthru
    _
  // Predicated region
  $region22: #{discriminator_forward.6} parent=0 // pred_check
    _
  $region23: #{discriminator_forward.6} parent=0 // pred_check_branch
    %767 = sbr.rel (0) target = $region25
  $region24: #{discriminator_forward.6} parent=0 // pred_region
    _
  $region25: #{discriminator_forward.6} parent=0 // pred_fallthru
    _

// kernel: discriminator_forward.7
$region0: #{discriminator_forward.7}
  #allocation0 [shape = 'u32[]', space=smem, size = 0x4, offset = 0x4, fixed_abs, tag = 'smem constant byte address 0x4 - core index']
  #allocation1 [shape = 'u32[144,128]{1,0:T(1,128)}', space=vmem, size = 0x12000, scoped, tag = 'internal scratch']
  %s0 = inlined_call_operand.vmem [shape: bf16[128,1024], index: 0, kind: input, shape index: {}]
  %s1 = inlined_call_operand.vmem [shape: bf16[1024,32], index: 1, kind: input, shape index: {}]
  %s2 = inlined_call_operand.vmem [shape: f32[128,1], index: 2, kind: input, shape index: {}]
  %s3 = inlined_call_operand.vmem [shape: f32[128,1], index: 3, kind: input, shape index: {}]
  %s4 = inlined_call_operand.vmem [shape: f32[128,32], index: 4, kind: input, shape index: {}]
  %s5 = inlined_call_operand.vmem [shape: f32[32,2], index: 5, kind: input, shape index: {}]
  %s6 = inlined_call_operand.hbm [shape: f32[1,2], index: 6, kind: output, shape index: {}]
  %s7 = sld [smem:[#allocation0]]
  $region34: #{discriminator_forward.7} parent=0
    _
  %s9 = ssub.s32 1, %s7
  %s10 = scalar_select 0, %s9, %s7
  $region1: #{discriminator_forward.7} parent=0
    #allocation2 [shape = 'u8[512]{0}', space=vmem, size = 0x400, scoped, tag = 'output window, operand 0, single buffered']
    #allocation3 [shape = 's32[1]{0}', space=sflag, size = 0x4, scoped, tag = 'scoped memory for discriminator_forward.7']
    %11 = vsyncpa [#allocation3], 0
    // Predicated region
    $region2: #{discriminator_forward.7} parent=1 // pred_check
      _
    $region3: #{discriminator_forward.7} parent=1 // pred_check_branch
      %13 = sbr.rel (0) target = $region5
    $region4: #{discriminator_forward.7} parent=1 // pred_region
      _
    $region5: #{discriminator_forward.7} parent=1 // pred_fallthru
      _
    // Predicated region
    $region6: #{discriminator_forward.7} parent=1 // pred_check
      _
    $region7: #{discriminator_forward.7} parent=1 // pred_check_branch
      %15 = sbr.rel (0) target = $region9
    $region8: #{discriminator_forward.7} parent=1 // pred_region
      _
    $region9: #{discriminator_forward.7} parent=1 // pred_fallthru
      _
    // Predicated region
    $region10: #{discriminator_forward.7} parent=1 // pred_check
      _
    $region11: #{discriminator_forward.7} parent=1 // pred_check_branch
      %17 = sbr.rel (0) target = $region13
    $region12: #{discriminator_forward.7} parent=1 // pred_region
      _
    $region13: #{discriminator_forward.7} parent=1 // pred_fallthru
      _
    // Predicated region
    $region14: #{discriminator_forward.7} parent=1 // pred_check
      _
    $region15: #{discriminator_forward.7} parent=1 // pred_check_branch
      %19 = sbr.rel (0) target = $region17
    $region16: #{discriminator_forward.7} parent=1 // pred_region
      _
    $region17: #{discriminator_forward.7} parent=1 // pred_fallthru
      _
    // Predicated region
    $region18: #{discriminator_forward.7} parent=1 // pred_check
      _
    $region19: #{discriminator_forward.7} parent=1 // pred_check_branch
      %21 = sbr.rel (0) target = $region21
    $region20: #{discriminator_forward.7} parent=1 // pred_region
      _
    $region21: #{discriminator_forward.7} parent=1 // pred_fallthru
      _
    // Predicated region
    $region22: #{discriminator_forward.7} parent=1 // pred_check
      _
    $region23: #{discriminator_forward.7} parent=1 // pred_check_branch
      %23 = sbr.rel (0) target = $region25
    $region24: #{discriminator_forward.7} parent=1 // pred_region
      _
    $region25: #{discriminator_forward.7} parent=1 // pred_fallthru
      _
    %v25 = vld [vmem:[%s0] sm:$0xff]
    %v26 = vld [vmem:[%s0 + $0x8] sm:$0xff]
    %v27 = vld [vmem:[%s0 + $0x10] sm:$0xff]
    %v28 = vld [vmem:[%s0 + $0x18] sm:$0xff]
    %v29 = vld [vmem:[%s0 + $0x20] sm:$0xff]
    %v30 = vld [vmem:[%s0 + $0x28] sm:$0xff]
    %v31 = vld [vmem:[%s0 + $0x30] sm:$0xff]
    %v32 = vld [vmem:[%s0 + $0x38] sm:$0xff]
    %v33 = vld [vmem:[%s0 + $0x40] sm:$0xff]
    %v34 = vld [vmem:[%s0 + $0x48] sm:$0xff]
    %v35 = vld [vmem:[%s0 + $0x50] sm:$0xff]
    %v36 = vld [vmem:[%s0 + $0x58] sm:$0xff]
    %v37 = vld [vmem:[%s0 + $0x60] sm:$0xff]
    %v38 = vld [vmem:[%s0 + $0x68] sm:$0xff]
    %v39 = vld [vmem:[%s0 + $0x70] sm:$0xff]
    %v40 = vld [vmem:[%s0 + $0x78] sm:$0xff]
    %v41 = vld [vmem:[%s0 + $0x80] sm:$0xff]
    %v42 = vld [vmem:[%s0 + $0x88] sm:$0xff]
    %v43 = vld [vmem:[%s0 + $0x90] sm:$0xff]
    %v44 = vld [vmem:[%s0 + $0x98] sm:$0xff]
    %v45 = vld [vmem:[%s0 + $0xa0] sm:$0xff]
    %v46 = vld [vmem:[%s0 + $0xa8] sm:$0xff]
    %v47 = vld [vmem:[%s0 + $0xb0] sm:$0xff]
    %v48 = vld [vmem:[%s0 + $0xb8] sm:$0xff]
    %v49 = vld [vmem:[%s0 + $0xc0] sm:$0xff]
    %v50 = vld [vmem:[%s0 + $0xc8] sm:$0xff]
    %v51 = vld [vmem:[%s0 + $0xd0] sm:$0xff]
    %v52 = vld [vmem:[%s0 + $0xd8] sm:$0xff]
    %v53 = vld [vmem:[%s0 + $0xe0] sm:$0xff]
    %v54 = vld [vmem:[%s0 + $0xe8] sm:$0xff]
    %v55 = vld [vmem:[%s0 + $0xf0] sm:$0xff]
    %v56 = vld [vmem:[%s0 + $0xf8] sm:$0xff]
    %v57 = vld [vmem:[%s0 + $0x100] sm:$0xff]
    %v58 = vld [vmem:[%s0 + $0x108] sm:$0xff]
    %v59 = vld [vmem:[%s0 + $0x110] sm:$0xff]
    %v60 = vld [vmem:[%s0 + $0x118] sm:$0xff]
    %v61 = vld [vmem:[%s0 + $0x120] sm:$0xff]
    %v62 = vld [vmem:[%s0 + $0x128] sm:$0xff]
    %v63 = vld [vmem:[%s0 + $0x130] sm:$0xff]
    %v64 = vld [vmem:[%s0 + $0x138] sm:$0xff]
    %v65 = vld [vmem:[%s0 + $0x140] sm:$0xff]
    %v66 = vld [vmem:[%s0 + $0x148] sm:$0xff]
    %v67 = vld [vmem:[%s0 + $0x150] sm:$0xff]
    %v68 = vld [vmem:[%s0 + $0x158] sm:$0xff]
    %v69 = vld [vmem:[%s0 + $0x160] sm:$0xff]
    %v70 = vld [vmem:[%s0 + $0x168] sm:$0xff]
    %v71 = vld [vmem:[%s0 + $0x170] sm:$0xff]
    %v72 = vld [vmem:[%s0 + $0x178] sm:$0xff]
    %v73 = vld [vmem:[%s0 + $0x180] sm:$0xff]
    %v74 = vld [vmem:[%s0 + $0x188] sm:$0xff]
    %v75 = vld [vmem:[%s0 + $0x190] sm:$0xff]
    %v76 = vld [vmem:[%s0 + $0x198] sm:$0xff]
    %v77 = vld [vmem:[%s0 + $0x1a0] sm:$0xff]
    %v78 = vld [vmem:[%s0 + $0x1a8] sm:$0xff]
    %v79 = vld [vmem:[%s0 + $0x1b0] sm:$0xff]
    %v80 = vld [vmem:[%s0 + $0x1b8] sm:$0xff]
    %v81 = vld [vmem:[%s0 + $0x1c0] sm:$0xff]
    %v82 = vld [vmem:[%s0 + $0x1c8] sm:$0xff]
    %v83 = vld [vmem:[%s0 + $0x1d0] sm:$0xff]
    %v84 = vld [vmem:[%s0 + $0x1d8] sm:$0xff]
    %v85 = vld [vmem:[%s0 + $0x1e0] sm:$0xff]
    %v86 = vld [vmem:[%s0 + $0x1e8] sm:$0xff]
    %v87 = vld [vmem:[%s0 + $0x1f0] sm:$0xff]
    %v88 = vld [vmem:[%s0 + $0x1f8] sm:$0xff]
    %v89 = vld [vmem:[%s1] sm:$0xf]
    %v90 = vld [vmem:[%s1 + $0x4] sm:$0xf]
    %v91 = vld [vmem:[%s1 + $0x8] sm:$0xf]
    %v92 = vld [vmem:[%s1 + $0xc] sm:$0xf]
    %v93 = vld [vmem:[%s1 + $0x10] sm:$0xf]
    %v94 = vld [vmem:[%s1 + $0x14] sm:$0xf]
    %v95 = vld [vmem:[%s1 + $0x18] sm:$0xf]
    %v96 = vld [vmem:[%s1 + $0x1c] sm:$0xf]
    %v97 = vld [vmem:[%s1 + $0x20] sm:$0xf]
    %v98 = vld [vmem:[%s1 + $0x24] sm:$0xf]
    %v99 = vld [vmem:[%s1 + $0x28] sm:$0xf]
    %v100 = vld [vmem:[%s1 + $0x2c] sm:$0xf]
    %v101 = vld [vmem:[%s1 + $0x30] sm:$0xf]
    %v102 = vld [vmem:[%s1 + $0x34] sm:$0xf]
    %v103 = vld [vmem:[%s1 + $0x38] sm:$0xf]
    %v104 = vld [vmem:[%s1 + $0x3c] sm:$0xf]
    %v105 = vld [vmem:[%s1 + $0x40] sm:$0xf]
    %v106 = vld [vmem:[%s1 + $0x44] sm:$0xf]
    %v107 = vld [vmem:[%s1 + $0x48] sm:$0xf]
    %v108 = vld [vmem:[%s1 + $0x4c] sm:$0xf]
    %v109 = vld [vmem:[%s1 + $0x50] sm:$0xf]
    %v110 = vld [vmem:[%s1 + $0x54] sm:$0xf]
    %v111 = vld [vmem:[%s1 + $0x58] sm:$0xf]
    %v112 = vld [vmem:[%s1 + $0x5c] sm:$0xf]
    %v113 = vld [vmem:[%s1 + $0x60] sm:$0xf]
    %v114 = vld [vmem:[%s1 + $0x64] sm:$0xf]
    %v115 = vld [vmem:[%s1 + $0x68] sm:$0xf]
    %v116 = vld [vmem:[%s1 + $0x6c] sm:$0xf]
    %v117 = vld [vmem:[%s1 + $0x70] sm:$0xf]
    %v118 = vld [vmem:[%s1 + $0x74] sm:$0xf]
    %v119 = vld [vmem:[%s1 + $0x78] sm:$0xf]
    %v120 = vld [vmem:[%s1 + $0x7c] sm:$0xf]
    %v121 = vld [vmem:[%s1 + $0x80] sm:$0xf]
    %v122 = vld [vmem:[%s1 + $0x84] sm:$0xf]
    %v123 = vld [vmem:[%s1 + $0x88] sm:$0xf]
    %v124 = vld [vmem:[%s1 + $0x8c] sm:$0xf]
    %v125 = vld [vmem:[%s1 + $0x90] sm:$0xf]
    %v126 = vld [vmem:[%s1 + $0x94] sm:$0xf]
    %v127 = vld [vmem:[%s1 + $0x98] sm:$0xf]
    %v128 = vld [vmem:[%s1 + $0x9c] sm:$0xf]
    %v129 = vld [vmem:[%s1 + $0xa0] sm:$0xf]
    %v130 = vld [vmem:[%s1 + $0xa4] sm:$0xf]
    %v131 = vld [vmem:[%s1 + $0xa8] sm:$0xf]
    %v132 = vld [vmem:[%s1 + $0xac] sm:$0xf]
    %v133 = vld [vmem:[%s1 + $0xb0] sm:$0xf]
    %v134 = vld [vmem:[%s1 + $0xb4] sm:$0xf]
    %v135 = vld [vmem:[%s1 + $0xb8] sm:$0xf]
    %v136 = vld [vmem:[%s1 + $0xbc] sm:$0xf]
    %v137 = vld [vmem:[%s1 + $0xc0] sm:$0xf]
    %v138 = vld [vmem:[%s1 + $0xc4] sm:$0xf]
    %v139 = vld [vmem:[%s1 + $0xc8] sm:$0xf]
    %v140 = vld [vmem:[%s1 + $0xcc] sm:$0xf]
    %v141 = vld [vmem:[%s1 + $0xd0] sm:$0xf]
    %v142 = vld [vmem:[%s1 + $0xd4] sm:$0xf]
    %v143 = vld [vmem:[%s1 + $0xd8] sm:$0xf]
    %v144 = vld [vmem:[%s1 + $0xdc] sm:$0xf]
    %v145 = vld [vmem:[%s1 + $0xe0] sm:$0xf]
    %v146 = vld [vmem:[%s1 + $0xe4] sm:$0xf]
    %v147 = vld [vmem:[%s1 + $0xe8] sm:$0xf]
    %v148 = vld [vmem:[%s1 + $0xec] sm:$0xf]
    %v149 = vld [vmem:[%s1 + $0xf0] sm:$0xf]
    %v150 = vld [vmem:[%s1 + $0xf4] sm:$0xf]
    %v151 = vld [vmem:[%s1 + $0xf8] sm:$0xf]
    %v152 = vld [vmem:[%s1 + $0xfc] sm:$0xf]
    %v153 = vld [vmem:[%s1 + $0x100] sm:$0xf]
    %v154 = vld [vmem:[%s1 + $0x104] sm:$0xf]
    %v155 = vld [vmem:[%s1 + $0x108] sm:$0xf]
    %v156 = vld [vmem:[%s1 + $0x10c] sm:$0xf]
    %v157 = vld [vmem:[%s1 + $0x110] sm:$0xf]
    %v158 = vld [vmem:[%s1 + $0x114] sm:$0xf]
    %v159 = vld [vmem:[%s1 + $0x118] sm:$0xf]
    %v160 = vld [vmem:[%s1 + $0x11c] sm:$0xf]
    %v161 = vld [vmem:[%s1 + $0x120] sm:$0xf]
    %v162 = vld [vmem:[%s1 + $0x124] sm:$0xf]
    %v163 = vld [vmem:[%s1 + $0x128] sm:$0xf]
    %v164 = vld [vmem:[%s1 + $0x12c] sm:$0xf]
    %v165 = vld [vmem:[%s1 + $0x130] sm:$0xf]
    %v166 = vld [vmem:[%s1 + $0x134] sm:$0xf]
    %v167 = vld [vmem:[%s1 + $0x138] sm:$0xf]
    %v168 = vld [vmem:[%s1 + $0x13c] sm:$0xf]
    %v169 = vld [vmem:[%s1 + $0x140] sm:$0xf]
    %v170 = vld [vmem:[%s1 + $0x144] sm:$0xf]
    %v171 = vld [vmem:[%s1 + $0x148] sm:$0xf]
    %v172 = vld [vmem:[%s1 + $0x14c] sm:$0xf]
    %v173 = vld [vmem:[%s1 + $0x150] sm:$0xf]
    %v174 = vld [vmem:[%s1 + $0x154] sm:$0xf]
    %v175 = vld [vmem:[%s1 + $0x158] sm:$0xf]
    %v176 = vld [vmem:[%s1 + $0x15c] sm:$0xf]
    %v177 = vld [vmem:[%s1 + $0x160] sm:$0xf]
    %v178 = vld [vmem:[%s1 + $0x164] sm:$0xf]
    %v179 = vld [vmem:[%s1 + $0x168] sm:$0xf]
    %v180 = vld [vmem:[%s1 + $0x16c] sm:$0xf]
    %v181 = vld [vmem:[%s1 + $0x170] sm:$0xf]
    %v182 = vld [vmem:[%s1 + $0x174] sm:$0xf]
    %v183 = vld [vmem:[%s1 + $0x178] sm:$0xf]
    %v184 = vld [vmem:[%s1 + $0x17c] sm:$0xf]
    %v185 = vld [vmem:[%s1 + $0x180] sm:$0xf]
    %v186 = vld [vmem:[%s1 + $0x184] sm:$0xf]
    %v187 = vld [vmem:[%s1 + $0x188] sm:$0xf]
    %v188 = vld [vmem:[%s1 + $0x18c] sm:$0xf]
    %v189 = vld [vmem:[%s1 + $0x190] sm:$0xf]
    %v190 = vld [vmem:[%s1 + $0x194] sm:$0xf]
    %v191 = vld [vmem:[%s1 + $0x198] sm:$0xf]
    %v192 = vld [vmem:[%s1 + $0x19c] sm:$0xf]
    %v193 = vld [vmem:[%s1 + $0x1a0] sm:$0xf]
    %v194 = vld [vmem:[%s1 + $0x1a4] sm:$0xf]
    %v195 = vld [vmem:[%s1 + $0x1a8] sm:$0xf]
    %v196 = vld [vmem:[%s1 + $0x1ac] sm:$0xf]
    %v197 = vld [vmem:[%s1 + $0x1b0] sm:$0xf]
    %v198 = vld [vmem:[%s1 + $0x1b4] sm:$0xf]
    %v199 = vld [vmem:[%s1 + $0x1b8] sm:$0xf]
    %v200 = vld [vmem:[%s1 + $0x1bc] sm:$0xf]
    %v201 = vld [vmem:[%s1 + $0x1c0] sm:$0xf]
    %v202 = vld [vmem:[%s1 + $0x1c4] sm:$0xf]
    %v203 = vld [vmem:[%s1 + $0x1c8] sm:$0xf]
    %v204 = vld [vmem:[%s1 + $0x1cc] sm:$0xf]
    %v205 = vld [vmem:[%s1 + $0x1d0] sm:$0xf]
    %v206 = vld [vmem:[%s1 + $0x1d4] sm:$0xf]
    %v207 = vld [vmem:[%s1 + $0x1d8] sm:$0xf]
    %v208 = vld [vmem:[%s1 + $0x1dc] sm:$0xf]
    %v209 = vld [vmem:[%s1 + $0x1e0] sm:$0xf]
    %v210 = vld [vmem:[%s1 + $0x1e4] sm:$0xf]
    %v211 = vld [vmem:[%s1 + $0x1e8] sm:$0xf]
    %v212 = vld [vmem:[%s1 + $0x1ec] sm:$0xf]
    %v213 = vld [vmem:[%s1 + $0x1f0] sm:$0xf]
    %v214 = vld [vmem:[%s1 + $0x1f4] sm:$0xf]
    %v215 = vld [vmem:[%s1 + $0x1f8] sm:$0xf]
    %v216 = vld [vmem:[%s1 + $0x1fc] sm:$0xf]
    %v281 = vunpack.c.l.b16 %v25
    %v282 = vunpack.c.h.b16 %v25
    %v283 = vunpack.c.l.b16 %v26
    %v284 = vunpack.c.h.b16 %v26
    %v285 = vunpack.c.l.b16 %v27
    %v286 = vunpack.c.h.b16 %v27
    %v287 = vunpack.c.l.b16 %v28
    %v288 = vunpack.c.h.b16 %v28
    %v289 = vunpack.c.l.b16 %v29
    %v290 = vunpack.c.h.b16 %v29
    %v291 = vunpack.c.l.b16 %v30
    %v292 = vunpack.c.h.b16 %v30
    %v293 = vunpack.c.l.b16 %v31
    %v294 = vunpack.c.h.b16 %v31
    %v295 = vunpack.c.l.b16 %v32
    %v296 = vunpack.c.h.b16 %v32
    %v297 = vunpack.c.l.b16 %v33
    %v298 = vunpack.c.h.b16 %v33
    %v299 = vunpack.c.l.b16 %v34
    %v300 = vunpack.c.h.b16 %v34
    %v301 = vunpack.c.l.b16 %v35
    %v302 = vunpack.c.h.b16 %v35
    %v303 = vunpack.c.l.b16 %v36
    %v304 = vunpack.c.h.b16 %v36
    %v305 = vunpack.c.l.b16 %v37
    %v306 = vunpack.c.h.b16 %v37
    %v307 = vunpack.c.l.b16 %v38
    %v308 = vunpack.c.h.b16 %v38
    %v309 = vunpack.c.l.b16 %v39
    %v310 = vunpack.c.h.b16 %v39
    %v311 = vunpack.c.l.b16 %v40
    %v312 = vunpack.c.h.b16 %v40
    %v313 = vunpack.c.l.b16 %v41
    %v314 = vunpack.c.h.b16 %v41
    %v315 = vunpack.c.l.b16 %v42
    %v316 = vunpack.c.h.b16 %v42
    %v317 = vunpack.c.l.b16 %v43
    %v318 = vunpack.c.h.b16 %v43
    %v319 = vunpack.c.l.b16 %v44
    %v320 = vunpack.c.h.b16 %v44
    %v321 = vunpack.c.l.b16 %v45
    %v322 = vunpack.c.h.b16 %v45
    %v323 = vunpack.c.l.b16 %v46
    %v324 = vunpack.c.h.b16 %v46
    %v325 = vunpack.c.l.b16 %v47
    %v326 = vunpack.c.h.b16 %v47
    %v327 = vunpack.c.l.b16 %v48
    %v328 = vunpack.c.h.b16 %v48
    %v329 = vunpack.c.l.b16 %v49
    %v330 = vunpack.c.h.b16 %v49
    %v331 = vunpack.c.l.b16 %v50
    %v332 = vunpack.c.h.b16 %v50
    %v333 = vunpack.c.l.b16 %v51
    %v334 = vunpack.c.h.b16 %v51
    %v335 = vunpack.c.l.b16 %v52
    %v336 = vunpack.c.h.b16 %v52
    %v337 = vunpack.c.l.b16 %v53
    %v338 = vunpack.c.h.b16 %v53
    %v339 = vunpack.c.l.b16 %v54
    %v340 = vunpack.c.h.b16 %v54
    %v341 = vunpack.c.l.b16 %v55
    %v342 = vunpack.c.h.b16 %v55
    %v343 = vunpack.c.l.b16 %v56
    %v344 = vunpack.c.h.b16 %v56
    %v345 = vunpack.c.l.b16 %v57
    %v346 = vunpack.c.h.b16 %v57
    %v347 = vunpack.c.l.b16 %v58
    %v348 = vunpack.c.h.b16 %v58
    %v349 = vunpack.c.l.b16 %v59
    %v350 = vunpack.c.h.b16 %v59
    %v351 = vunpack.c.l.b16 %v60
    %v352 = vunpack.c.h.b16 %v60
    %v353 = vunpack.c.l.b16 %v61
    %v354 = vunpack.c.h.b16 %v61
    %v355 = vunpack.c.l.b16 %v62
    %v356 = vunpack.c.h.b16 %v62
    %v357 = vunpack.c.l.b16 %v63
    %v358 = vunpack.c.h.b16 %v63
    %v359 = vunpack.c.l.b16 %v64
    %v360 = vunpack.c.h.b16 %v64
    %v361 = vunpack.c.l.b16 %v65
    %v362 = vunpack.c.h.b16 %v65
    %v363 = vunpack.c.l.b16 %v66
    %v364 = vunpack.c.h.b16 %v66
    %v365 = vunpack.c.l.b16 %v67
    %v366 = vunpack.c.h.b16 %v67
    %v367 = vunpack.c.l.b16 %v68
    %v368 = vunpack.c.h.b16 %v68
    %v369 = vunpack.c.l.b16 %v69
    %v370 = vunpack.c.h.b16 %v69
    %v371 = vunpack.c.l.b16 %v70
    %v372 = vunpack.c.h.b16 %v70
    %v373 = vunpack.c.l.b16 %v71
    %v374 = vunpack.c.h.b16 %v71
    %v375 = vunpack.c.l.b16 %v72
    %v376 = vunpack.c.h.b16 %v72
    %v377 = vunpack.c.l.b16 %v73
    %v378 = vunpack.c.h.b16 %v73
    %v379 = vunpack.c.l.b16 %v74
    %v380 = vunpack.c.h.b16 %v74
    %v381 = vunpack.c.l.b16 %v75
    %v382 = vunpack.c.h.b16 %v75
    %v383 = vunpack.c.l.b16 %v76
    %v384 = vunpack.c.h.b16 %v76
    %v385 = vunpack.c.l.b16 %v77
    %v386 = vunpack.c.h.b16 %v77
    %v387 = vunpack.c.l.b16 %v78
    %v388 = vunpack.c.h.b16 %v78
    %v389 = vunpack.c.l.b16 %v79
    %v390 = vunpack.c.h.b16 %v79
    %v391 = vunpack.c.l.b16 %v80
    %v392 = vunpack.c.h.b16 %v80
    %v393 = vunpack.c.l.b16 %v81
    %v394 = vunpack.c.h.b16 %v81
    %v395 = vunpack.c.l.b16 %v82
    %v396 = vunpack.c.h.b16 %v82
    %v397 = vunpack.c.l.b16 %v83
    %v398 = vunpack.c.h.b16 %v83
    %v399 = vunpack.c.l.b16 %v84
    %v400 = vunpack.c.h.b16 %v84
    %v401 = vunpack.c.l.b16 %v85
    %v402 = vunpack.c.h.b16 %v85
    %v403 = vunpack.c.l.b16 %v86
    %v404 = vunpack.c.h.b16 %v86
    %v405 = vunpack.c.l.b16 %v87
    %v406 = vunpack.c.h.b16 %v87
    %v407 = vunpack.c.l.b16 %v88
    %v408 = vunpack.c.h.b16 %v88
    %v409 = vpack.c.b16 %v289, %v281
    %v410 = vpack.c.b16 %v290, %v282
    %v411 = vpack.c.b16 %v291, %v283
    %v412 = vpack.c.b16 %v292, %v284
    %v413 = vpack.c.b16 %v293, %v285
    %v414 = vpack.c.b16 %v294, %v286
    %v415 = vpack.c.b16 %v295, %v287
    %v416 = vpack.c.b16 %v296, %v288
    %v417 = vpack.c.b16 %v305, %v297
    %v418 = vpack.c.b16 %v306, %v298
    %v419 = vpack.c.b16 %v307, %v299
    %v420 = vpack.c.b16 %v308, %v300
    %v421 = vpack.c.b16 %v309, %v301
    %v422 = vpack.c.b16 %v310, %v302
    %v423 = vpack.c.b16 %v311, %v303
    %v424 = vpack.c.b16 %v312, %v304
    %v425 = vpack.c.b16 %v321, %v313
    %v426 = vpack.c.b16 %v322, %v314
    %v427 = vpack.c.b16 %v323, %v315
    %v428 = vpack.c.b16 %v324, %v316
    %v429 = vpack.c.b16 %v325, %v317
    %v430 = vpack.c.b16 %v326, %v318
    %v431 = vpack.c.b16 %v327, %v319
    %v432 = vpack.c.b16 %v328, %v320
    %v433 = vpack.c.b16 %v337, %v329
    %v434 = vpack.c.b16 %v338, %v330
    %v435 = vpack.c.b16 %v339, %v331
    %v436 = vpack.c.b16 %v340, %v332
    %v437 = vpack.c.b16 %v341, %v333
    %v438 = vpack.c.b16 %v342, %v334
    %v439 = vpack.c.b16 %v343, %v335
    %v440 = vpack.c.b16 %v344, %v336
    %v441 = vpack.c.b16 %v353, %v345
    %v442 = vpack.c.b16 %v354, %v346
    %v443 = vpack.c.b16 %v355, %v347
    %v444 = vpack.c.b16 %v356, %v348
    %v445 = vpack.c.b16 %v357, %v349
    %v446 = vpack.c.b16 %v358, %v350
    %v447 = vpack.c.b16 %v359, %v351
    %v448 = vpack.c.b16 %v360, %v352
    %v449 = vpack.c.b16 %v369, %v361
    %v450 = vpack.c.b16 %v370, %v362
    %v451 = vpack.c.b16 %v371, %v363
    %v452 = vpack.c.b16 %v372, %v364
    %v453 = vpack.c.b16 %v373, %v365
    %v454 = vpack.c.b16 %v374, %v366
    %v455 = vpack.c.b16 %v375, %v367
    %v456 = vpack.c.b16 %v376, %v368
    %v457 = vpack.c.b16 %v385, %v377
    %v458 = vpack.c.b16 %v386, %v378
    %v459 = vpack.c.b16 %v387, %v379
    %v460 = vpack.c.b16 %v388, %v380
    %v461 = vpack.c.b16 %v389, %v381
    %v462 = vpack.c.b16 %v390, %v382
    %v463 = vpack.c.b16 %v391, %v383
    %v464 = vpack.c.b16 %v392, %v384
    %v465 = vpack.c.b16 %v401, %v393
    %v466 = vpack.c.b16 %v402, %v394
    %v467 = vpack.c.b16 %v403, %v395
    %v468 = vpack.c.b16 %v404, %v396
    %v469 = vpack.c.b16 %v405, %v397
    %v470 = vpack.c.b16 %v406, %v398
    %v471 = vpack.c.b16 %v407, %v399
    %v472 = vpack.c.b16 %v408, %v400
    %v665 = vunpack.c.l.b16 %v89
    %v666 = vunpack.c.l.b16 %v90
    %v667 = vunpack.c.l.b16 %v91
    %v668 = vunpack.c.l.b16 %v92
    %v669 = vunpack.c.l.b16 %v93
    %v670 = vunpack.c.l.b16 %v94
    %v671 = vunpack.c.l.b16 %v95
    %v672 = vunpack.c.l.b16 %v96
    %v673 = vunpack.c.l.b16 %v97
    %v674 = vunpack.c.l.b16 %v98
    %v675 = vunpack.c.l.b16 %v99
    %v676 = vunpack.c.l.b16 %v100
    %v677 = vunpack.c.l.b16 %v101
    %v678 = vunpack.c.l.b16 %v102
    %v679 = vunpack.c.l.b16 %v103
    %v680 = vunpack.c.l.b16 %v104
    %v681 = vunpack.c.l.b16 %v105
    %v682 = vunpack.c.l.b16 %v106
    %v683 = vunpack.c.l.b16 %v107
    %v684 = vunpack.c.l.b16 %v108
    %v685 = vunpack.c.l.b16 %v109
    %v686 = vunpack.c.l.b16 %v110
    %v687 = vunpack.c.l.b16 %v111
    %v688 = vunpack.c.l.b16 %v112
    %v689 = vunpack.c.l.b16 %v113
    %v690 = vunpack.c.l.b16 %v114
    %v691 = vunpack.c.l.b16 %v115
    %v692 = vunpack.c.l.b16 %v116
    %v693 = vunpack.c.l.b16 %v117
    %v694 = vunpack.c.l.b16 %v118
    %v695 = vunpack.c.l.b16 %v119
    %v696 = vunpack.c.l.b16 %v120
    %v697 = vunpack.c.l.b16 %v121
    %v698 = vunpack.c.l.b16 %v122
    %v699 = vunpack.c.l.b16 %v123
    %v700 = vunpack.c.l.b16 %v124
    %v701 = vunpack.c.l.b16 %v125
    %v702 = vunpack.c.l.b16 %v126
    %v703 = vunpack.c.l.b16 %v127
    %v704 = vunpack.c.l.b16 %v128
    %v705 = vunpack.c.l.b16 %v129
    %v706 = vunpack.c.l.b16 %v130
    %v707 = vunpack.c.l.b16 %v131
    %v708 = vunpack.c.l.b16 %v132
    %v709 = vunpack.c.l.b16 %v133
    %v710 = vunpack.c.l.b16 %v134
    %v711 = vunpack.c.l.b16 %v135
    %v712 = vunpack.c.l.b16 %v136
    %v713 = vunpack.c.l.b16 %v137
    %v714 = vunpack.c.l.b16 %v138
    %v715 = vunpack.c.l.b16 %v139
    %v716 = vunpack.c.l.b16 %v140
    %v717 = vunpack.c.l.b16 %v141
    %v718 = vunpack.c.l.b16 %v142
    %v719 = vunpack.c.l.b16 %v143
    %v720 = vunpack.c.l.b16 %v144
    %v721 = vunpack.c.l.b16 %v145
    %v722 = vunpack.c.l.b16 %v146
    %v723 = vunpack.c.l.b16 %v147
    %v724 = vunpack.c.l.b16 %v148
    %v725 = vunpack.c.l.b16 %v149
    %v726 = vunpack.c.l.b16 %v150
    %v727 = vunpack.c.l.b16 %v151
    %v728 = vunpack.c.l.b16 %v152
    %v729 = vunpack.c.l.b16 %v153
    %v730 = vunpack.c.l.b16 %v154
    %v731 = vunpack.c.l.b16 %v155
    %v732 = vunpack.c.l.b16 %v156
    %v733 = vunpack.c.l.b16 %v157
    %v734 = vunpack.c.l.b16 %v158
    %v735 = vunpack.c.l.b16 %v159
    %v736 = vunpack.c.l.b16 %v160
    %v737 = vunpack.c.l.b16 %v161
    %v738 = vunpack.c.l.b16 %v162
    %v739 = vunpack.c.l.b16 %v163
    %v740 = vunpack.c.l.b16 %v164
    %v741 = vunpack.c.l.b16 %v165
    %v742 = vunpack.c.l.b16 %v166
    %v743 = vunpack.c.l.b16 %v167
    %v744 = vunpack.c.l.b16 %v168
    %v745 = vunpack.c.l.b16 %v169
    %v746 = vunpack.c.l.b16 %v170
    %v747 = vunpack.c.l.b16 %v171
    %v748 = vunpack.c.l.b16 %v172
    %v749 = vunpack.c.l.b16 %v173
    %v750 = vunpack.c.l.b16 %v174
    %v751 = vunpack.c.l.b16 %v175
    %v752 = vunpack.c.l.b16 %v176
    %v753 = vunpack.c.l.b16 %v177
    %v754 = vunpack.c.l.b16 %v178
    %v755 = vunpack.c.l.b16 %v179
    %v756 = vunpack.c.l.b16 %v180
    %v757 = vunpack.c.l.b16 %v181
    %v758 = vunpack.c.l.b16 %v182
    %v759 = vunpack.c.l.b16 %v183
    %v760 = vunpack.c.l.b16 %v184
    %v761 = vunpack.c.l.b16 %v185
    %v762 = vunpack.c.l.b16 %v186
    %v763 = vunpack.c.l.b16 %v187
    %v764 = vunpack.c.l.b16 %v188
    %v765 = vunpack.c.l.b16 %v189
    %v766 = vunpack.c.l.b16 %v190
    %v767 = vunpack.c.l.b16 %v191
    %v768 = vunpack.c.l.b16 %v192
    %v769 = vunpack.c.l.b16 %v193
    %v770 = vunpack.c.l.b16 %v194
    %v771 = vunpack.c.l.b16 %v195
    %v772 = vunpack.c.l.b16 %v196
    %v773 = vunpack.c.l.b16 %v197
    %v774 = vunpack.c.l.b16 %v198
    %v775 = vunpack.c.l.b16 %v199
    %v776 = vunpack.c.l.b16 %v200
    %v777 = vunpack.c.l.b16 %v201
    %v778 = vunpack.c.l.b16 %v202
    %v779 = vunpack.c.l.b16 %v203
    %v780 = vunpack.c.l.b16 %v204
    %v781 = vunpack.c.l.b16 %v205
    %v782 = vunpack.c.l.b16 %v206
    %v783 = vunpack.c.l.b16 %v207
    %v784 = vunpack.c.l.b16 %v208
    %v785 = vunpack.c.l.b16 %v209
    %v786 = vunpack.c.l.b16 %v210
    %v787 = vunpack.c.l.b16 %v211
    %v788 = vunpack.c.l.b16 %v212
    %v789 = vunpack.c.l.b16 %v213
    %v790 = vunpack.c.l.b16 %v214
    %v791 = vunpack.c.l.b16 %v215
    %v792 = vunpack.c.l.b16 %v216
    %v793 = vpack.c.b16 %v666, %v665
    %v794 = vpack.c.b16 %v668, %v667
    %v795 = vpack.c.b16 %v670, %v669
    %v796 = vpack.c.b16 %v672, %v671
    %v797 = vpack.c.b16 %v674, %v673
    %v798 = vpack.c.b16 %v676, %v675
    %v799 = vpack.c.b16 %v678, %v677
    %v800 = vpack.c.b16 %v680, %v679
    %v801 = vpack.c.b16 %v682, %v681
    %v802 = vpack.c.b16 %v684, %v683
    %v803 = vpack.c.b16 %v686, %v685
    %v804 = vpack.c.b16 %v688, %v687
    %v805 = vpack.c.b16 %v690, %v689
    %v806 = vpack.c.b16 %v692, %v691
    %v807 = vpack.c.b16 %v694, %v693
    %v808 = vpack.c.b16 %v696, %v695
    %v809 = vpack.c.b16 %v698, %v697
    %v810 = vpack.c.b16 %v700, %v699
    %v811 = vpack.c.b16 %v702, %v701
    %v812 = vpack.c.b16 %v704, %v703
    %v813 = vpack.c.b16 %v706, %v705
    %v814 = vpack.c.b16 %v708, %v707
    %v815 = vpack.c.b16 %v710, %v709
    %v816 = vpack.c.b16 %v712, %v711
    %v817 = vpack.c.b16 %v714, %v713
    %v818 = vpack.c.b16 %v716, %v715
    %v819 = vpack.c.b16 %v718, %v717
    %v820 = vpack.c.b16 %v720, %v719
    %v821 = vpack.c.b16 %v722, %v721
    %v822 = vpack.c.b16 %v724, %v723
    %v823 = vpack.c.b16 %v726, %v725
    %v824 = vpack.c.b16 %v728, %v727
    %v825 = vpack.c.b16 %v730, %v729
    %v826 = vpack.c.b16 %v732, %v731
    %v827 = vpack.c.b16 %v734, %v733
    %v828 = vpack.c.b16 %v736, %v735
    %v829 = vpack.c.b16 %v738, %v737
    %v830 = vpack.c.b16 %v740, %v739
    %v831 = vpack.c.b16 %v742, %v741
    %v832 = vpack.c.b16 %v744, %v743
    %v833 = vpack.c.b16 %v746, %v745
    %v834 = vpack.c.b16 %v748, %v747
    %v835 = vpack.c.b16 %v750, %v749
    %v836 = vpack.c.b16 %v752, %v751
    %v837 = vpack.c.b16 %v754, %v753
    %v838 = vpack.c.b16 %v756, %v755
    %v839 = vpack.c.b16 %v758, %v757
    %v840 = vpack.c.b16 %v760, %v759
    %v841 = vpack.c.b16 %v762, %v761
    %v842 = vpack.c.b16 %v764, %v763
    %v843 = vpack.c.b16 %v766, %v765
    %v844 = vpack.c.b16 %v768, %v767
    %v845 = vpack.c.b16 %v770, %v769
    %v846 = vpack.c.b16 %v772, %v771
    %v847 = vpack.c.b16 %v774, %v773
    %v848 = vpack.c.b16 %v776, %v775
    %v849 = vpack.c.b16 %v778, %v777
    %v850 = vpack.c.b16 %v780, %v779
    %v851 = vpack.c.b16 %v782, %v781
    %v852 = vpack.c.b16 %v784, %v783
    %v853 = vpack.c.b16 %v786, %v785
    %v854 = vpack.c.b16 %v788, %v787
    %v855 = vpack.c.b16 %v790, %v789
    %v856 = vpack.c.b16 %v792, %v791
    %921 = vmatprep.subr.bf16.mxu0 0
    %922 = vmatpush1.bf16.msra.mxu0 %v800
    %923 = vmatprep.subr.bf16.mxu0 0
    %924 = vmatpush1.bf16.msra.mxu0 %v799
    %925 = vmatprep.subr.bf16.mxu0 0
    %926 = vmatpush1.bf16.msra.mxu0 %v798
    %927 = vmatprep.subr.bf16.mxu0 0
    %928 = vmatpush1.bf16.msra.mxu0 %v797
    %929 = vmatprep.subr.bf16.mxu0 0
    %930 = vmatpush1.bf16.msra.mxu0 %v796
    %931 = vmatprep.subr.bf16.mxu0 0
    %932 = vmatpush1.bf16.msra.mxu0 %v795
    %933 = vmatprep.subr.bf16.mxu0 0
    %934 = vmatpush1.bf16.msra.mxu0 %v794
    %935 = vmatprep.subr.bf16.mxu0 0
    %936 = vmatpush1.bf16.msra.mxu0 %v793
    %937 = vmatprep.subr.bf16.mxu0 0
    %938 = vmatpush2.bf16.msra.mxu0 %v808
    %939 = vmatprep.subr.bf16.mxu0 0
    %940 = vmatpush2.bf16.msra.mxu0 %v807
    %941 = vmatprep.subr.bf16.mxu0 0
    %942 = vmatpush2.bf16.msra.mxu0 %v806
    %943 = vmatprep.subr.bf16.mxu0 0
    %944 = vmatpush2.bf16.msra.mxu0 %v805
    %945 = vmatprep.subr.bf16.mxu0 0
    %946 = vmatpush2.bf16.msra.mxu0 %v804
    %947 = vmatprep.subr.bf16.mxu0 0
    %948 = vmatpush2.bf16.msra.mxu0 %v803
    %949 = vmatprep.subr.bf16.mxu0 0
    %950 = vmatpush2.bf16.msra.mxu0 %v802
    %951 = vmatprep.subr.bf16.mxu0 0
    %952 = vmatpush2.bf16.msra.mxu0 %v801
    %953 = vmatprep.mubr.bf16.mxu0 %v410
    %954 = vmatmul.mubr.bf16.gmra.mxu0 %v409
    %v955 = vpop.f32.mrf.mxu0
    %v956 = vadd.f32 0.0, %v955
    %v957 = vpop.f32.mrf.mxu0
    %v958 = vpop.f32.mrf.mxu0
    %v959 = vadd.f32 0.0, %v958
    %v960 = vpop.f32.mrf.mxu0
    %961 = vmatprep.mubr.bf16.mxu0 %v418
    %962 = vmatmul.mubr.bf16.gmra.mxu0 %v417
    %v963 = vpop.f32.mrf.mxu0
    %v964 = vadd.f32 0.0, %v963
    %v965 = vpop.f32.mrf.mxu0
    %v966 = vpop.f32.mrf.mxu0
    %v967 = vadd.f32 0.0, %v966
    %v968 = vpop.f32.mrf.mxu0
    %969 = vmatprep.mubr.bf16.mxu0 %v426
    %970 = vmatmul.mubr.bf16.gmra.mxu0 %v425
    %v971 = vpop.f32.mrf.mxu0
    %v972 = vadd.f32 0.0, %v971
    %v973 = vpop.f32.mrf.mxu0
    %v974 = vpop.f32.mrf.mxu0
    %v975 = vadd.f32 0.0, %v974
    %v976 = vpop.f32.mrf.mxu0
    %977 = vmatprep.mubr.bf16.mxu0 %v434
    %978 = vmatmul.mubr.bf16.gmra.mxu0 %v433
    %v979 = vpop.f32.mrf.mxu0
    %v980 = vadd.f32 0.0, %v979
    %v981 = vpop.f32.mrf.mxu0
    %v982 = vpop.f32.mrf.mxu0
    %v983 = vadd.f32 0.0, %v982
    %v984 = vpop.f32.mrf.mxu0
    %985 = vmatprep.mubr.bf16.mxu0 %v442
    %986 = vmatmul.mubr.bf16.gmra.mxu0 %v441
    %v987 = vpop.f32.mrf.mxu0
    %v988 = vadd.f32 0.0, %v987
    %v989 = vpop.f32.mrf.mxu0
    %v990 = vpop.f32.mrf.mxu0
    %v991 = vadd.f32 0.0, %v990
    %v992 = vpop.f32.mrf.mxu0
    %993 = vmatprep.mubr.bf16.mxu0 %v450
    %994 = vmatmul.mubr.bf16.gmra.mxu0 %v449
    %v995 = vpop.f32.mrf.mxu0
    %v996 = vadd.f32 0.0, %v995
    %v997 = vpop.f32.mrf.mxu0
    %v998 = vpop.f32.mrf.mxu0
    %v999 = vadd.f32 0.0, %v998
    %v1000 = vpop.f32.mrf.mxu0
    %1001 = vmatprep.mubr.bf16.mxu0 %v458
    %1002 = vmatmul.mubr.bf16.gmra.mxu0 %v457
    %v1003 = vpop.f32.mrf.mxu0
    %v1004 = vadd.f32 0.0, %v1003
    %v1005 = vpop.f32.mrf.mxu0
    %v1006 = vpop.f32.mrf.mxu0
    %v1007 = vadd.f32 0.0, %v1006
    %v1008 = vpop.f32.mrf.mxu0
    %1009 = vmatprep.mubr.bf16.mxu0 %v466
    %1010 = vmatmul.mubr.bf16.gmra.mxu0 %v465
    %v1011 = vpop.f32.mrf.mxu0
    %v1012 = vadd.f32 0.0, %v1011
    %v1013 = vpop.f32.mrf.mxu0
    %v1014 = vpop.f32.mrf.mxu0
    %v1015 = vadd.f32 0.0, %v1014
    %v1016 = vpop.f32.mrf.mxu0
    %1017 = vdwg.mxu0
    %1018 = vmatprep.subr.bf16.mxu0 0
    %1019 = vmatpush1.bf16.msra.mxu0 %v816
    %1020 = vmatprep.subr.bf16.mxu0 0
    %1021 = vmatpush1.bf16.msra.mxu0 %v815
    %1022 = vmatprep.subr.bf16.mxu0 0
    %1023 = vmatpush1.bf16.msra.mxu0 %v814
    %1024 = vmatprep.subr.bf16.mxu0 0
    %1025 = vmatpush1.bf16.msra.mxu0 %v813
    %1026 = vmatprep.subr.bf16.mxu0 0
    %1027 = vmatpush1.bf16.msra.mxu0 %v812
    %1028 = vmatprep.subr.bf16.mxu0 0
    %1029 = vmatpush1.bf16.msra.mxu0 %v811
    %1030 = vmatprep.subr.bf16.mxu0 0
    %1031 = vmatpush1.bf16.msra.mxu0 %v810
    %1032 = vmatprep.subr.bf16.mxu0 0
    %1033 = vmatpush1.bf16.msra.mxu0 %v809
    %1034 = vmatprep.subr.bf16.mxu0 0
    %1035 = vmatpush2.bf16.msra.mxu0 %v824
    %1036 = vmatprep.subr.bf16.mxu0 0
    %1037 = vmatpush2.bf16.msra.mxu0 %v823
    %1038 = vmatprep.subr.bf16.mxu0 0
    %1039 = vmatpush2.bf16.msra.mxu0 %v822
    %1040 = vmatprep.subr.bf16.mxu0 0
    %1041 = vmatpush2.bf16.msra.mxu0 %v821
    %1042 = vmatprep.subr.bf16.mxu0 0
    %1043 = vmatpush2.bf16.msra.mxu0 %v820
    %1044 = vmatprep.subr.bf16.mxu0 0
    %1045 = vmatpush2.bf16.msra.mxu0 %v819
    %1046 = vmatprep.subr.bf16.mxu0 0
    %1047 = vmatpush2.bf16.msra.mxu0 %v818
    %1048 = vmatprep.subr.bf16.mxu0 0
    %1049 = vmatpush2.bf16.msra.mxu0 %v817
    %1050 = vmatprep.mubr.bf16.mxu0 %v412
    %1051 = vmatmul.mubr.bf16.gmra.mxu0 %v411
    %v1052 = vpop.f32.mrf.mxu0
    %v1053 = vadd.f32 %v956, %v1052
    %v1054 = vpop.f32.mrf.mxu0
    %v1055 = vpop.f32.mrf.mxu0
    %v1056 = vadd.f32 %v959, %v1055
    %v1057 = vpop.f32.mrf.mxu0
    %1058 = vmatprep.mubr.bf16.mxu0 %v420
    %1059 = vmatmul.mubr.bf16.gmra.mxu0 %v419
    %v1060 = vpop.f32.mrf.mxu0
    %v1061 = vadd.f32 %v964, %v1060
    %v1062 = vpop.f32.mrf.mxu0
    %v1063 = vpop.f32.mrf.mxu0
    %v1064 = vadd.f32 %v967, %v1063
    %v1065 = vpop.f32.mrf.mxu0
    %1066 = vmatprep.mubr.bf16.mxu0 %v428
    %1067 = vmatmul.mubr.bf16.gmra.mxu0 %v427
    %v1068 = vpop.f32.mrf.mxu0
    %v1069 = vadd.f32 %v972, %v1068
    %v1070 = vpop.f32.mrf.mxu0
    %v1071 = vpop.f32.mrf.mxu0
    %v1072 = vadd.f32 %v975, %v1071
    %v1073 = vpop.f32.mrf.mxu0
    %1074 = vmatprep.mubr.bf16.mxu0 %v436
    %1075 = vmatmul.mubr.bf16.gmra.mxu0 %v435
    %v1076 = vpop.f32.mrf.mxu0
    %v1077 = vadd.f32 %v980, %v1076
    %v1078 = vpop.f32.mrf.mxu0
    %v1079 = vpop.f32.mrf.mxu0
    %v1080 = vadd.f32 %v983, %v1079
    %v1081 = vpop.f32.mrf.mxu0
    %1082 = vmatprep.mubr.bf16.mxu0 %v444
    %1083 = vmatmul.mubr.bf16.gmra.mxu0 %v443
    %v1084 = vpop.f32.mrf.mxu0
    %v1085 = vadd.f32 %v988, %v1084
    %v1086 = vpop.f32.mrf.mxu0
    %v1087 = vpop.f32.mrf.mxu0
    %v1088 = vadd.f32 %v991, %v1087
    %v1089 = vpop.f32.mrf.mxu0
    %1090 = vmatprep.mubr.bf16.mxu0 %v452
    %1091 = vmatmul.mubr.bf16.gmra.mxu0 %v451
    %v1092 = vpop.f32.mrf.mxu0
    %v1093 = vadd.f32 %v996, %v1092
    %v1094 = vpop.f32.mrf.mxu0
    %v1095 = vpop.f32.mrf.mxu0
    %v1096 = vadd.f32 %v999, %v1095
    %v1097 = vpop.f32.mrf.mxu0
    %1098 = vmatprep.mubr.bf16.mxu0 %v460
    %1099 = vmatmul.mubr.bf16.gmra.mxu0 %v459
    %v1100 = vpop.f32.mrf.mxu0
    %v1101 = vadd.f32 %v1004, %v1100
    %v1102 = vpop.f32.mrf.mxu0
    %v1103 = vpop.f32.mrf.mxu0
    %v1104 = vadd.f32 %v1007, %v1103
    %v1105 = vpop.f32.mrf.mxu0
    %1106 = vmatprep.mubr.bf16.mxu0 %v468
    %1107 = vmatmul.mubr.bf16.gmra.mxu0 %v467
    %v1108 = vpop.f32.mrf.mxu0
    %v1109 = vadd.f32 %v1012, %v1108
    %v1110 = vpop.f32.mrf.mxu0
    %v1111 = vpop.f32.mrf.mxu0
    %v1112 = vadd.f32 %v1015, %v1111
    %v1113 = vpop.f32.mrf.mxu0
    %1114 = vdwg.mxu0
    %1115 = vmatprep.subr.bf16.mxu0 0
    %1116 = vmatpush1.bf16.msra.mxu0 %v832
    %1117 = vmatprep.subr.bf16.mxu0 0
    %1118 = vmatpush1.bf16.msra.mxu0 %v831
    %1119 = vmatprep.subr.bf16.mxu0 0
    %1120 = vmatpush1.bf16.msra.mxu0 %v830
    %1121 = vmatprep.subr.bf16.mxu0 0
    %1122 = vmatpush1.bf16.msra.mxu0 %v829
    %1123 = vmatprep.subr.bf16.mxu0 0
    %1124 = vmatpush1.bf16.msra.mxu0 %v828
    %1125 = vmatprep.subr.bf16.mxu0 0
    %1126 = vmatpush1.bf16.msra.mxu0 %v827
    %1127 = vmatprep.subr.bf16.mxu0 0
    %1128 = vmatpush1.bf16.msra.mxu0 %v826
    %1129 = vmatprep.subr.bf16.mxu0 0
    %1130 = vmatpush1.bf16.msra.mxu0 %v825
    %1131 = vmatprep.subr.bf16.mxu0 0
    %1132 = vmatpush2.bf16.msra.mxu0 %v840
    %1133 = vmatprep.subr.bf16.mxu0 0
    %1134 = vmatpush2.bf16.msra.mxu0 %v839
    %1135 = vmatprep.subr.bf16.mxu0 0
    %1136 = vmatpush2.bf16.msra.mxu0 %v838
    %1137 = vmatprep.subr.bf16.mxu0 0
    %1138 = vmatpush2.bf16.msra.mxu0 %v837
    %1139 = vmatprep.subr.bf16.mxu0 0
    %1140 = vmatpush2.bf16.msra.mxu0 %v836
    %1141 = vmatprep.subr.bf16.mxu0 0
    %1142 = vmatpush2.bf16.msra.mxu0 %v835
    %1143 = vmatprep.subr.bf16.mxu0 0
    %1144 = vmatpush2.bf16.msra.mxu0 %v834
    %1145 = vmatprep.subr.bf16.mxu0 0
    %1146 = vmatpush2.bf16.msra.mxu0 %v833
    %1147 = vmatprep.mubr.bf16.mxu0 %v414
    %1148 = vmatmul.mubr.bf16.gmra.mxu0 %v413
    %v1149 = vpop.f32.mrf.mxu0
    %v1150 = vadd.f32 %v1053, %v1149
    %v1151 = vpop.f32.mrf.mxu0
    %v1152 = vpop.f32.mrf.mxu0
    %v1153 = vadd.f32 %v1056, %v1152
    %v1154 = vpop.f32.mrf.mxu0
    %1155 = vmatprep.mubr.bf16.mxu0 %v422
    %1156 = vmatmul.mubr.bf16.gmra.mxu0 %v421
    %v1157 = vpop.f32.mrf.mxu0
    %v1158 = vadd.f32 %v1061, %v1157
    %v1159 = vpop.f32.mrf.mxu0
    %v1160 = vpop.f32.mrf.mxu0
    %v1161 = vadd.f32 %v1064, %v1160
    %v1162 = vpop.f32.mrf.mxu0
    %1163 = vmatprep.mubr.bf16.mxu0 %v430
    %1164 = vmatmul.mubr.bf16.gmra.mxu0 %v429
    %v1165 = vpop.f32.mrf.mxu0
    %v1166 = vadd.f32 %v1069, %v1165
    %v1167 = vpop.f32.mrf.mxu0
    %v1168 = vpop.f32.mrf.mxu0
    %v1169 = vadd.f32 %v1072, %v1168
    %v1170 = vpop.f32.mrf.mxu0
    %1171 = vmatprep.mubr.bf16.mxu0 %v438
    %1172 = vmatmul.mubr.bf16.gmra.mxu0 %v437
    %v1173 = vpop.f32.mrf.mxu0
    %v1174 = vadd.f32 %v1077, %v1173
    %v1175 = vpop.f32.mrf.mxu0
    %v1176 = vpop.f32.mrf.mxu0
    %v1177 = vadd.f32 %v1080, %v1176
    %v1178 = vpop.f32.mrf.mxu0
    %1179 = vmatprep.mubr.bf16.mxu0 %v446
    %1180 = vmatmul.mubr.bf16.gmra.mxu0 %v445
    %v1181 = vpop.f32.mrf.mxu0
    %v1182 = vadd.f32 %v1085, %v1181
    %v1183 = vpop.f32.mrf.mxu0
    %v1184 = vpop.f32.mrf.mxu0
    %v1185 = vadd.f32 %v1088, %v1184
    %v1186 = vpop.f32.mrf.mxu0
    %1187 = vmatprep.mubr.bf16.mxu0 %v454
    %1188 = vmatmul.mubr.bf16.gmra.mxu0 %v453
    %v1189 = vpop.f32.mrf.mxu0
    %v1190 = vadd.f32 %v1093, %v1189
    %v1191 = vpop.f32.mrf.mxu0
    %v1192 = vpop.f32.mrf.mxu0
    %v1193 = vadd.f32 %v1096, %v1192
    %v1194 = vpop.f32.mrf.mxu0
    %1195 = vmatprep.mubr.bf16.mxu0 %v462
    %1196 = vmatmul.mubr.bf16.gmra.mxu0 %v461
    %v1197 = vpop.f32.mrf.mxu0
    %v1198 = vadd.f32 %v1101, %v1197
    %v1199 = vpop.f32.mrf.mxu0
    %v1200 = vpop.f32.mrf.mxu0
    %v1201 = vadd.f32 %v1104, %v1200
    %v1202 = vpop.f32.mrf.mxu0
    %1203 = vmatprep.mubr.bf16.mxu0 %v470
    %1204 = vmatmul.mubr.bf16.gmra.mxu0 %v469
    %v1205 = vpop.f32.mrf.mxu0
    %v1206 = vadd.f32 %v1109, %v1205
    %v1207 = vpop.f32.mrf.mxu0
    %v1208 = vpop.f32.mrf.mxu0
    %v1209 = vadd.f32 %v1112, %v1208
    %v1210 = vpop.f32.mrf.mxu0
    %1211 = vdwg.mxu0
    %1212 = vmatprep.subr.bf16.mxu0 0
    %1213 = vmatpush1.bf16.msra.mxu0 %v848
    %1214 = vmatprep.subr.bf16.mxu0 0
    %1215 = vmatpush1.bf16.msra.mxu0 %v847
    %1216 = vmatprep.subr.bf16.mxu0 0
    %1217 = vmatpush1.bf16.msra.mxu0 %v846
    %1218 = vmatprep.subr.bf16.mxu0 0
    %1219 = vmatpush1.bf16.msra.mxu0 %v845
    %1220 = vmatprep.subr.bf16.mxu0 0
    %1221 = vmatpush1.bf16.msra.mxu0 %v844
    %1222 = vmatprep.subr.bf16.mxu0 0
    %1223 = vmatpush1.bf16.msra.mxu0 %v843
    %1224 = vmatprep.subr.bf16.mxu0 0
    %1225 = vmatpush1.bf16.msra.mxu0 %v842
    %1226 = vmatprep.subr.bf16.mxu0 0
    %1227 = vmatpush1.bf16.msra.mxu0 %v841
    %1228 = vmatprep.subr.bf16.mxu0 0
    %1229 = vmatpush2.bf16.msra.mxu0 %v856
    %1230 = vmatprep.subr.bf16.mxu0 0
    %1231 = vmatpush2.bf16.msra.mxu0 %v855
    %1232 = vmatprep.subr.bf16.mxu0 0
    %1233 = vmatpush2.bf16.msra.mxu0 %v854
    %1234 = vmatprep.subr.bf16.mxu0 0
    %1235 = vmatpush2.bf16.msra.mxu0 %v853
    %1236 = vmatprep.subr.bf16.mxu0 0
    %1237 = vmatpush2.bf16.msra.mxu0 %v852
    %1238 = vmatprep.subr.bf16.mxu0 0
    %1239 = vmatpush2.bf16.msra.mxu0 %v851
    %1240 = vmatprep.subr.bf16.mxu0 0
    %1241 = vmatpush2.bf16.msra.mxu0 %v850
    %1242 = vmatprep.subr.bf16.mxu0 0
    %1243 = vmatpush2.bf16.msra.mxu0 %v849
    %1244 = vmatprep.mubr.bf16.mxu0 %v416
    %1245 = vmatmul.mubr.bf16.gmra.mxu0 %v415
    %v1246 = vpop.f32.mrf.mxu0
    %v1247 = vadd.f32 %v1150, %v1246
    %v1248 = vpop.f32.mrf.mxu0
    %v1249 = vpop.f32.mrf.mxu0
    %v1250 = vadd.f32 %v1153, %v1249
    %v1251 = vpop.f32.mrf.mxu0
    %1252 = vmatprep.mubr.bf16.mxu0 %v424
    %1253 = vmatmul.mubr.bf16.gmra.mxu0 %v423
    %v1254 = vpop.f32.mrf.mxu0
    %v1255 = vadd.f32 %v1158, %v1254
    %v1256 = vpop.f32.mrf.mxu0
    %v1257 = vpop.f32.mrf.mxu0
    %v1258 = vadd.f32 %v1161, %v1257
    %v1259 = vpop.f32.mrf.mxu0
    %1260 = vmatprep.mubr.bf16.mxu0 %v432
    %1261 = vmatmul.mubr.bf16.gmra.mxu0 %v431
    %v1262 = vpop.f32.mrf.mxu0
    %v1263 = vadd.f32 %v1166, %v1262
    %v1264 = vpop.f32.mrf.mxu0
    %v1265 = vpop.f32.mrf.mxu0
    %v1266 = vadd.f32 %v1169, %v1265
    %v1267 = vpop.f32.mrf.mxu0
    %1268 = vmatprep.mubr.bf16.mxu0 %v440
    %1269 = vmatmul.mubr.bf16.gmra.mxu0 %v439
    %v1270 = vpop.f32.mrf.mxu0
    %v1271 = vadd.f32 %v1174, %v1270
    %v1272 = vpop.f32.mrf.mxu0
    %v1273 = vpop.f32.mrf.mxu0
    %v1274 = vadd.f32 %v1177, %v1273
    %v1275 = vpop.f32.mrf.mxu0
    %1276 = vmatprep.mubr.bf16.mxu0 %v448
    %1277 = vmatmul.mubr.bf16.gmra.mxu0 %v447
    %v1278 = vpop.f32.mrf.mxu0
    %v1279 = vadd.f32 %v1182, %v1278
    %v1280 = vpop.f32.mrf.mxu0
    %v1281 = vpop.f32.mrf.mxu0
    %v1282 = vadd.f32 %v1185, %v1281
    %v1283 = vpop.f32.mrf.mxu0
    %1284 = vmatprep.mubr.bf16.mxu0 %v456
    %1285 = vmatmul.mubr.bf16.gmra.mxu0 %v455
    %v1286 = vpop.f32.mrf.mxu0
    %v1287 = vadd.f32 %v1190, %v1286
    %v1288 = vpop.f32.mrf.mxu0
    %v1289 = vpop.f32.mrf.mxu0
    %v1290 = vadd.f32 %v1193, %v1289
    %v1291 = vpop.f32.mrf.mxu0
    %1292 = vmatprep.mubr.bf16.mxu0 %v464
    %1293 = vmatmul.mubr.bf16.gmra.mxu0 %v463
    %v1294 = vpop.f32.mrf.mxu0
    %v1295 = vadd.f32 %v1198, %v1294
    %v1296 = vpop.f32.mrf.mxu0
    %v1297 = vpop.f32.mrf.mxu0
    %v1298 = vadd.f32 %v1201, %v1297
    %v1299 = vpop.f32.mrf.mxu0
    %1300 = vmatprep.mubr.bf16.mxu0 %v472
    %1301 = vmatmul.mubr.bf16.gmra.mxu0 %v471
    %v1302 = vpop.f32.mrf.mxu0
    %v1303 = vadd.f32 %v1206, %v1302
    %v1304 = vpop.f32.mrf.mxu0
    %v1305 = vpop.f32.mrf.mxu0
    %v1306 = vadd.f32 %v1209, %v1305
    %v1307 = vpop.f32.mrf.mxu0
    %1308 = vdwg.mxu0
    %vm1309 = vcmask 261120
    %v1310 = vsel %vm1309, %v1247, 0.0
    %1311 = vadd.xlane.f32.xlu0 %v1310
    %v1312 = vpop.xlane.xlu0 %1311
    %v1313 = vsel %vm1309, %v1250, 0.0
    %1314 = vadd.xlane.f32.xlu0 %v1313
    %v1315 = vpop.xlane.xlu0 %1314
    %v1316 = vsel %vm1309, %v1255, 0.0
    %1317 = vadd.xlane.f32.xlu0 %v1316
    %v1318 = vpop.xlane.xlu0 %1317
    %v1319 = vsel %vm1309, %v1258, 0.0
    %1320 = vadd.xlane.f32.xlu0 %v1319
    %v1321 = vpop.xlane.xlu0 %1320
    %v1322 = vsel %vm1309, %v1263, 0.0
    %1323 = vadd.xlane.f32.xlu0 %v1322
    %v1324 = vpop.xlane.xlu0 %1323
    %v1325 = vsel %vm1309, %v1266, 0.0
    %1326 = vadd.xlane.f32.xlu0 %v1325
    %v1327 = vpop.xlane.xlu0 %1326
    %v1328 = vsel %vm1309, %v1271, 0.0
    %1329 = vadd.xlane.f32.xlu0 %v1328
    %v1330 = vpop.xlane.xlu0 %1329
    %v1331 = vsel %vm1309, %v1274, 0.0
    %1332 = vadd.xlane.f32.xlu0 %v1331
    %v1333 = vpop.xlane.xlu0 %1332
    %v1334 = vsel %vm1309, %v1279, 0.0
    %1335 = vadd.xlane.f32.xlu0 %v1334
    %v1336 = vpop.xlane.xlu0 %1335
    %v1337 = vsel %vm1309, %v1282, 0.0
    %1338 = vadd.xlane.f32.xlu0 %v1337
    %v1339 = vpop.xlane.xlu0 %1338
    %v1340 = vsel %vm1309, %v1287, 0.0
    %1341 = vadd.xlane.f32.xlu0 %v1340
    %v1342 = vpop.xlane.xlu0 %1341
    %v1343 = vsel %vm1309, %v1290, 0.0
    %1344 = vadd.xlane.f32.xlu0 %v1343
    %v1345 = vpop.xlane.xlu0 %1344
    %v1346 = vsel %vm1309, %v1295, 0.0
    %1347 = vadd.xlane.f32.xlu0 %v1346
    %v1348 = vpop.xlane.xlu0 %1347
    %v1349 = vsel %vm1309, %v1298, 0.0
    %1350 = vadd.xlane.f32.xlu0 %v1349
    %v1351 = vpop.xlane.xlu0 %1350
    %v1352 = vsel %vm1309, %v1303, 0.0
    %1353 = vadd.xlane.f32.xlu0 %v1352
    %v1354 = vpop.xlane.xlu0 %1353
    %v1355 = vsel %vm1309, %v1306, 0.0
    %1356 = vadd.xlane.f32.xlu0 %v1355
    %v1357 = vpop.xlane.xlu0 %1356
    %v1358 = vmul.f32 %v1312, 0.03125
    %v1359 = vmul.f32 %v1315, 0.03125
    %v1360 = vmul.f32 %v1318, 0.03125
    %v1361 = vmul.f32 %v1321, 0.03125
    %v1362 = vmul.f32 %v1324, 0.03125
    %v1363 = vmul.f32 %v1327, 0.03125
    %v1364 = vmul.f32 %v1330, 0.03125
    %v1365 = vmul.f32 %v1333, 0.03125
    %v1366 = vmul.f32 %v1336, 0.03125
    %v1367 = vmul.f32 %v1339, 0.03125
    %v1368 = vmul.f32 %v1342, 0.03125
    %v1369 = vmul.f32 %v1345, 0.03125
    %v1370 = vmul.f32 %v1348, 0.03125
    %v1371 = vmul.f32 %v1351, 0.03125
    %v1372 = vmul.f32 %v1354, 0.03125
    %v1373 = vmul.f32 %v1357, 0.03125
    %v1374 = vsub.f32 %v1247, %v1358
    %v1375 = vsub.f32 %v1250, %v1359
    %v1376 = vsub.f32 %v1255, %v1360
    %v1377 = vsub.f32 %v1258, %v1361
    %v1378 = vsub.f32 %v1263, %v1362
    %v1379 = vsub.f32 %v1266, %v1363
    %v1380 = vsub.f32 %v1271, %v1364
    %v1381 = vsub.f32 %v1274, %v1365
    %v1382 = vsub.f32 %v1279, %v1366
    %v1383 = vsub.f32 %v1282, %v1367
    %v1384 = vsub.f32 %v1287, %v1368
    %v1385 = vsub.f32 %v1290, %v1369
    %v1386 = vsub.f32 %v1295, %v1370
    %v1387 = vsub.f32 %v1298, %v1371
    %v1388 = vsub.f32 %v1303, %v1372
    %v1389 = vsub.f32 %v1306, %v1373
    %v1390 = vmul.f32 %v1374, %v1374
    %v1391 = vmul.f32 %v1375, %v1375
    %v1392 = vmul.f32 %v1376, %v1376
    %v1393 = vmul.f32 %v1377, %v1377
    %v1394 = vmul.f32 %v1378, %v1378
    %v1395 = vmul.f32 %v1379, %v1379
    %v1396 = vmul.f32 %v1380, %v1380
    %v1397 = vmul.f32 %v1381, %v1381
    %v1398 = vmul.f32 %v1382, %v1382
    %v1399 = vmul.f32 %v1383, %v1383
    %v1400 = vmul.f32 %v1384, %v1384
    %v1401 = vmul.f32 %v1385, %v1385
    %v1402 = vmul.f32 %v1386, %v1386
    %v1403 = vmul.f32 %v1387, %v1387
    %v1404 = vmul.f32 %v1388, %v1388
    %v1405 = vmul.f32 %v1389, %v1389
    %v1406 = vsel %vm1309, %v1390, 0.0
    %1407 = vadd.xlane.f32.xlu0 %v1406
    %v1408 = vpop.xlane.xlu0 %1407
    %v1409 = vsel %vm1309, %v1391, 0.0
    %1410 = vadd.xlane.f32.xlu0 %v1409
    %v1411 = vpop.xlane.xlu0 %1410
    %v1412 = vsel %vm1309, %v1392, 0.0
    %1413 = vadd.xlane.f32.xlu0 %v1412
    %v1414 = vpop.xlane.xlu0 %1413
    %v1415 = vsel %vm1309, %v1393, 0.0
    %1416 = vadd.xlane.f32.xlu0 %v1415
    %v1417 = vpop.xlane.xlu0 %1416
    %v1418 = vsel %vm1309, %v1394, 0.0
    %1419 = vadd.xlane.f32.xlu0 %v1418
    %v1420 = vpop.xlane.xlu0 %1419
    %v1421 = vsel %vm1309, %v1395, 0.0
    %1422 = vadd.xlane.f32.xlu0 %v1421
    %v1423 = vpop.xlane.xlu0 %1422
    %v1424 = vsel %vm1309, %v1396, 0.0
    %1425 = vadd.xlane.f32.xlu0 %v1424
    %v1426 = vpop.xlane.xlu0 %1425
    %v1427 = vsel %vm1309, %v1397, 0.0
    %1428 = vadd.xlane.f32.xlu0 %v1427
    %v1429 = vpop.xlane.xlu0 %1428
    %v1430 = vsel %vm1309, %v1398, 0.0
    %1431 = vadd.xlane.f32.xlu0 %v1430
    %v1432 = vpop.xlane.xlu0 %1431
    %v1433 = vsel %vm1309, %v1399, 0.0
    %1434 = vadd.xlane.f32.xlu0 %v1433
    %v1435 = vpop.xlane.xlu0 %1434
    %v1436 = vsel %vm1309, %v1400, 0.0
    %1437 = vadd.xlane.f32.xlu0 %v1436
    %v1438 = vpop.xlane.xlu0 %1437
    %v1439 = vsel %vm1309, %v1401, 0.0
    %1440 = vadd.xlane.f32.xlu0 %v1439
    %v1441 = vpop.xlane.xlu0 %1440
    %v1442 = vsel %vm1309, %v1402, 0.0
    %1443 = vadd.xlane.f32.xlu0 %v1442
    %v1444 = vpop.xlane.xlu0 %1443
    %v1445 = vsel %vm1309, %v1403, 0.0
    %1446 = vadd.xlane.f32.xlu0 %v1445
    %v1447 = vpop.xlane.xlu0 %1446
    %v1448 = vsel %vm1309, %v1404, 0.0
    %1449 = vadd.xlane.f32.xlu0 %v1448
    %v1450 = vpop.xlane.xlu0 %1449
    %v1451 = vsel %vm1309, %v1405, 0.0
    %1452 = vadd.xlane.f32.xlu0 %v1451
    %v1453 = vpop.xlane.xlu0 %1452
    %v1454 = vmul.f32 %v1408, 0.03125
    %v1455 = vmul.f32 %v1411, 0.03125
    %v1456 = vmul.f32 %v1414, 0.03125
    %v1457 = vmul.f32 %v1417, 0.03125
    %v1458 = vmul.f32 %v1420, 0.03125
    %v1459 = vmul.f32 %v1423, 0.03125
    %v1460 = vmul.f32 %v1426, 0.03125
    %v1461 = vmul.f32 %v1429, 0.03125
    %v1462 = vmul.f32 %v1432, 0.03125
    %v1463 = vmul.f32 %v1435, 0.03125
    %v1464 = vmul.f32 %v1438, 0.03125
    %v1465 = vmul.f32 %v1441, 0.03125
    %v1466 = vmul.f32 %v1444, 0.03125
    %v1467 = vmul.f32 %v1447, 0.03125
    %v1468 = vmul.f32 %v1450, 0.03125
    %v1469 = vmul.f32 %v1453, 0.03125
    %v1470 = vld [vmem:[%s2] sm:$0xff]
    %v1471 = vld [vmem:[%s2 + $0x8] sm:$0xff]
    %v1472 = vld [vmem:[%s2 + $0x10] sm:$0xff]
    %v1473 = vld [vmem:[%s2 + $0x18] sm:$0xff]
    %v1474 = vld [vmem:[%s2 + $0x20] sm:$0xff]
    %v1475 = vld [vmem:[%s2 + $0x28] sm:$0xff]
    %v1476 = vld [vmem:[%s2 + $0x30] sm:$0xff]
    %v1477 = vld [vmem:[%s2 + $0x38] sm:$0xff]
    %v1478 = vld [vmem:[%s2 + $0x40] sm:$0xff]
    %v1479 = vld [vmem:[%s2 + $0x48] sm:$0xff]
    %v1480 = vld [vmem:[%s2 + $0x50] sm:$0xff]
    %v1481 = vld [vmem:[%s2 + $0x58] sm:$0xff]
    %v1482 = vld [vmem:[%s2 + $0x60] sm:$0xff]
    %v1483 = vld [vmem:[%s2 + $0x68] sm:$0xff]
    %v1484 = vld [vmem:[%s2 + $0x70] sm:$0xff]
    %v1485 = vld [vmem:[%s2 + $0x78] sm:$0xff]
    %v1486 = vadd.f32 %v1454, 1e-05
    %v1487 = vadd.f32 %v1455, 1e-05
    %v1488 = vadd.f32 %v1456, 1e-05
    %v1489 = vadd.f32 %v1457, 1e-05
    %v1490 = vadd.f32 %v1458, 1e-05
    %v1491 = vadd.f32 %v1459, 1e-05
    %v1492 = vadd.f32 %v1460, 1e-05
    %v1493 = vadd.f32 %v1461, 1e-05
    %v1494 = vadd.f32 %v1462, 1e-05
    %v1495 = vadd.f32 %v1463, 1e-05
    %v1496 = vadd.f32 %v1464, 1e-05
    %v1497 = vadd.f32 %v1465, 1e-05
    %v1498 = vadd.f32 %v1466, 1e-05
    %v1499 = vadd.f32 %v1467, 1e-05
    %v1500 = vadd.f32 %v1468, 1e-05
    %v1501 = vadd.f32 %v1469, 1e-05
    %v1502 = vrsqrt.pop %v1486
    %v1503 = vrsqrt.pop %v1487
    %v1504 = vrsqrt.pop %v1488
    %v1505 = vrsqrt.pop %v1489
    %v1506 = vrsqrt.pop %v1490
    %v1507 = vrsqrt.pop %v1491
    %v1508 = vrsqrt.pop %v1492
    %v1509 = vrsqrt.pop %v1493
    %v1510 = vrsqrt.pop %v1494
    %v1511 = vrsqrt.pop %v1495
    %v1512 = vrsqrt.pop %v1496
    %v1513 = vrsqrt.pop %v1497
    %v1514 = vrsqrt.pop %v1498
    %v1515 = vrsqrt.pop %v1499
    %v1516 = vrsqrt.pop %v1500
    %v1517 = vrsqrt.pop %v1501
    %v1518 = vmul.f32 %v1470, %v1502
    %v1519 = vmul.f32 %v1471, %v1503
    %v1520 = vmul.f32 %v1472, %v1504
    %v1521 = vmul.f32 %v1473, %v1505
    %v1522 = vmul.f32 %v1474, %v1506
    %v1523 = vmul.f32 %v1475, %v1507
    %v1524 = vmul.f32 %v1476, %v1508
    %v1525 = vmul.f32 %v1477, %v1509
    %v1526 = vmul.f32 %v1478, %v1510
    %v1527 = vmul.f32 %v1479, %v1511
    %v1528 = vmul.f32 %v1480, %v1512
    %v1529 = vmul.f32 %v1481, %v1513
    %v1530 = vmul.f32 %v1482, %v1514
    %v1531 = vmul.f32 %v1483, %v1515
    %v1532 = vmul.f32 %v1484, %v1516
    %v1533 = vmul.f32 %v1485, %v1517
    %1535 = vset.pattern.permute.xlu0 0
    %1536 = vperm.xlu0 %1535, %v1518
    %v1537 = vpop.permute.xlu0 %1536
    %1540 = vset.pattern.permute.xlu0 0
    %1541 = vperm.xlu0 %1540, %v1519
    %v1542 = vpop.permute.xlu0 %1541
    %1545 = vset.pattern.permute.xlu0 0
    %1546 = vperm.xlu0 %1545, %v1520
    %v1547 = vpop.permute.xlu0 %1546
    %1550 = vset.pattern.permute.xlu0 0
    %1551 = vperm.xlu0 %1550, %v1521
    %v1552 = vpop.permute.xlu0 %1551
    %1555 = vset.pattern.permute.xlu0 0
    %1556 = vperm.xlu0 %1555, %v1522
    %v1557 = vpop.permute.xlu0 %1556
    %1560 = vset.pattern.permute.xlu0 0
    %1561 = vperm.xlu0 %1560, %v1523
    %v1562 = vpop.permute.xlu0 %1561
    %1565 = vset.pattern.permute.xlu0 0
    %1566 = vperm.xlu0 %1565, %v1524
    %v1567 = vpop.permute.xlu0 %1566
    %1570 = vset.pattern.permute.xlu0 0
    %1571 = vperm.xlu0 %1570, %v1525
    %v1572 = vpop.permute.xlu0 %1571
    %1575 = vset.pattern.permute.xlu0 0
    %1576 = vperm.xlu0 %1575, %v1526
    %v1577 = vpop.permute.xlu0 %1576
    %1580 = vset.pattern.permute.xlu0 0
    %1581 = vperm.xlu0 %1580, %v1527
    %v1582 = vpop.permute.xlu0 %1581
    %1585 = vset.pattern.permute.xlu0 0
    %1586 = vperm.xlu0 %1585, %v1528
    %v1587 = vpop.permute.xlu0 %1586
    %1590 = vset.pattern.permute.xlu0 0
    %1591 = vperm.xlu0 %1590, %v1529
    %v1592 = vpop.permute.xlu0 %1591
    %1595 = vset.pattern.permute.xlu0 0
    %1596 = vperm.xlu0 %1595, %v1530
    %v1597 = vpop.permute.xlu0 %1596
    %1600 = vset.pattern.permute.xlu0 0
    %1601 = vperm.xlu0 %1600, %v1531
    %v1602 = vpop.permute.xlu0 %1601
    %1605 = vset.pattern.permute.xlu0 0
    %1606 = vperm.xlu0 %1605, %v1532
    %v1607 = vpop.permute.xlu0 %1606
    %1610 = vset.pattern.permute.xlu0 0
    %1611 = vperm.xlu0 %1610, %v1533
    %v1612 = vpop.permute.xlu0 %1611
    %v1614 = vmul.f32 %v1374, %v1537
    %v1615 = vmul.f32 %v1375, %v1542
    %v1616 = vmul.f32 %v1376, %v1547
    %v1617 = vmul.f32 %v1377, %v1552
    %v1618 = vmul.f32 %v1378, %v1557
    %v1619 = vmul.f32 %v1379, %v1562
    %v1620 = vmul.f32 %v1380, %v1567
    %v1621 = vmul.f32 %v1381, %v1572
    %v1622 = vmul.f32 %v1382, %v1577
    %v1623 = vmul.f32 %v1383, %v1582
    %v1624 = vmul.f32 %v1384, %v1587
    %v1625 = vmul.f32 %v1385, %v1592
    %v1626 = vmul.f32 %v1386, %v1597
    %v1627 = vmul.f32 %v1387, %v1602
    %v1628 = vmul.f32 %v1388, %v1607
    %v1629 = vmul.f32 %v1389, %v1612
    %v1630 = vld [vmem:[%s3] sm:$0xff]
    %v1631 = vld [vmem:[%s3 + $0x8] sm:$0xff]
    %v1632 = vld [vmem:[%s3 + $0x10] sm:$0xff]
    %v1633 = vld [vmem:[%s3 + $0x18] sm:$0xff]
    %v1634 = vld [vmem:[%s3 + $0x20] sm:$0xff]
    %v1635 = vld [vmem:[%s3 + $0x28] sm:$0xff]
    %v1636 = vld [vmem:[%s3 + $0x30] sm:$0xff]
    %v1637 = vld [vmem:[%s3 + $0x38] sm:$0xff]
    %v1638 = vld [vmem:[%s3 + $0x40] sm:$0xff]
    %v1639 = vld [vmem:[%s3 + $0x48] sm:$0xff]
    %v1640 = vld [vmem:[%s3 + $0x50] sm:$0xff]
    %v1641 = vld [vmem:[%s3 + $0x58] sm:$0xff]
    %v1642 = vld [vmem:[%s3 + $0x60] sm:$0xff]
    %v1643 = vld [vmem:[%s3 + $0x68] sm:$0xff]
    %v1644 = vld [vmem:[%s3 + $0x70] sm:$0xff]
    %v1645 = vld [vmem:[%s3 + $0x78] sm:$0xff]
    %1647 = vset.pattern.permute.xlu0 0
    %1648 = vperm.xlu0 %1647, %v1630
    %v1649 = vpop.permute.xlu0 %1648
    %1652 = vset.pattern.permute.xlu0 0
    %1653 = vperm.xlu0 %1652, %v1631
    %v1654 = vpop.permute.xlu0 %1653
    %1657 = vset.pattern.permute.xlu0 0
    %1658 = vperm.xlu0 %1657, %v1632
    %v1659 = vpop.permute.xlu0 %1658
    %1662 = vset.pattern.permute.xlu0 0
    %1663 = vperm.xlu0 %1662, %v1633
    %v1664 = vpop.permute.xlu0 %1663
    %1667 = vset.pattern.permute.xlu0 0
    %1668 = vperm.xlu0 %1667, %v1634
    %v1669 = vpop.permute.xlu0 %1668
    %1672 = vset.pattern.permute.xlu0 0
    %1673 = vperm.xlu0 %1672, %v1635
    %v1674 = vpop.permute.xlu0 %1673
    %1677 = vset.pattern.permute.xlu0 0
    %1678 = vperm.xlu0 %1677, %v1636
    %v1679 = vpop.permute.xlu0 %1678
    %1682 = vset.pattern.permute.xlu0 0
    %1683 = vperm.xlu0 %1682, %v1637
    %v1684 = vpop.permute.xlu0 %1683
    %1687 = vset.pattern.permute.xlu0 0
    %1688 = vperm.xlu0 %1687, %v1638
    %v1689 = vpop.permute.xlu0 %1688
    %1692 = vset.pattern.permute.xlu0 0
    %1693 = vperm.xlu0 %1692, %v1639
    %v1694 = vpop.permute.xlu0 %1693
    %1697 = vset.pattern.permute.xlu0 0
    %1698 = vperm.xlu0 %1697, %v1640
    %v1699 = vpop.permute.xlu0 %1698
    %1702 = vset.pattern.permute.xlu0 0
    %1703 = vperm.xlu0 %1702, %v1641
    %v1704 = vpop.permute.xlu0 %1703
    %1707 = vset.pattern.permute.xlu0 0
    %1708 = vperm.xlu0 %1707, %v1642
    %v1709 = vpop.permute.xlu0 %1708
    %1712 = vset.pattern.permute.xlu0 0
    %1713 = vperm.xlu0 %1712, %v1643
    %v1714 = vpop.permute.xlu0 %1713
    %1717 = vset.pattern.permute.xlu0 0
    %1718 = vperm.xlu0 %1717, %v1644
    %v1719 = vpop.permute.xlu0 %1718
    %1722 = vset.pattern.permute.xlu0 0
    %1723 = vperm.xlu0 %1722, %v1645
    %v1724 = vpop.permute.xlu0 %1723
    %v1726 = vadd.f32 %v1614, %v1649
    %v1727 = vadd.f32 %v1615, %v1654
    %v1728 = vadd.f32 %v1616, %v1659
    %v1729 = vadd.f32 %v1617, %v1664
    %v1730 = vadd.f32 %v1618, %v1669
    %v1731 = vadd.f32 %v1619, %v1674
    %v1732 = vadd.f32 %v1620, %v1679
    %v1733 = vadd.f32 %v1621, %v1684
    %v1734 = vadd.f32 %v1622, %v1689
    %v1735 = vadd.f32 %v1623, %v1694
    %v1736 = vadd.f32 %v1624, %v1699
    %v1737 = vadd.f32 %v1625, %v1704
    %v1738 = vadd.f32 %v1626, %v1709
    %v1739 = vadd.f32 %v1627, %v1714
    %v1740 = vadd.f32 %v1628, %v1719
    %v1741 = vadd.f32 %v1629, %v1724
    %vm1742 = vcmp.ge.f32.partialorder %v1726, 0.0
    %vm1743 = vcmp.ge.f32.partialorder %v1727, 0.0
    %vm1744 = vcmp.ge.f32.partialorder %v1728, 0.0
    %vm1745 = vcmp.ge.f32.partialorder %v1729, 0.0
    %vm1746 = vcmp.ge.f32.partialorder %v1730, 0.0
    %vm1747 = vcmp.ge.f32.partialorder %v1731, 0.0
    %vm1748 = vcmp.ge.f32.partialorder %v1732, 0.0
    %vm1749 = vcmp.ge.f32.partialorder %v1733, 0.0
    %vm1750 = vcmp.ge.f32.partialorder %v1734, 0.0
    %vm1751 = vcmp.ge.f32.partialorder %v1735, 0.0
    %vm1752 = vcmp.ge.f32.partialorder %v1736, 0.0
    %vm1753 = vcmp.ge.f32.partialorder %v1737, 0.0
    %vm1754 = vcmp.ge.f32.partialorder %v1738, 0.0
    %vm1755 = vcmp.ge.f32.partialorder %v1739, 0.0
    %vm1756 = vcmp.ge.f32.partialorder %v1740, 0.0
    %vm1757 = vcmp.ge.f32.partialorder %v1741, 0.0
    %v1758 = vmul.f32 %v1726, 0.2
    %v1759 = vmul.f32 %v1727, 0.2
    %v1760 = vmul.f32 %v1728, 0.2
    %v1761 = vmul.f32 %v1729, 0.2
    %v1762 = vmul.f32 %v1730, 0.2
    %v1763 = vmul.f32 %v1731, 0.2
    %v1764 = vmul.f32 %v1732, 0.2
    %v1765 = vmul.f32 %v1733, 0.2
    %v1766 = vmul.f32 %v1734, 0.2
    %v1767 = vmul.f32 %v1735, 0.2
    %v1768 = vmul.f32 %v1736, 0.2
    %v1769 = vmul.f32 %v1737, 0.2
    %v1770 = vmul.f32 %v1738, 0.2
    %v1771 = vmul.f32 %v1739, 0.2
    %v1772 = vmul.f32 %v1740, 0.2
    %v1773 = vmul.f32 %v1741, 0.2
    %v1774 = vsel %vm1742, %v1726, %v1758
    %v1775 = vsel %vm1743, %v1727, %v1759
    %v1776 = vsel %vm1744, %v1728, %v1760
    %v1777 = vsel %vm1745, %v1729, %v1761
    %v1778 = vsel %vm1746, %v1730, %v1762
    %v1779 = vsel %vm1747, %v1731, %v1763
    %v1780 = vsel %vm1748, %v1732, %v1764
    %v1781 = vsel %vm1749, %v1733, %v1765
    %v1782 = vsel %vm1750, %v1734, %v1766
    %v1783 = vsel %vm1751, %v1735, %v1767
    %v1784 = vsel %vm1752, %v1736, %v1768
    %v1785 = vsel %vm1753, %v1737, %v1769
    %v1786 = vsel %vm1754, %v1738, %v1770
    %v1787 = vsel %vm1755, %v1739, %v1771
    %v1788 = vsel %vm1756, %v1740, %v1772
    %v1789 = vsel %vm1757, %v1741, %v1773
    %v1790 = vld [vmem:[%s4] sm:$0xff]
    %v1791 = vld [vmem:[%s4 + $0x8] sm:$0xff]
    %v1792 = vld [vmem:[%s4 + $0x10] sm:$0xff]
    %v1793 = vld [vmem:[%s4 + $0x18] sm:$0xff]
    %v1794 = vld [vmem:[%s4 + $0x20] sm:$0xff]
    %v1795 = vld [vmem:[%s4 + $0x28] sm:$0xff]
    %v1796 = vld [vmem:[%s4 + $0x30] sm:$0xff]
    %v1797 = vld [vmem:[%s4 + $0x38] sm:$0xff]
    %v1798 = vld [vmem:[%s4 + $0x40] sm:$0xff]
    %v1799 = vld [vmem:[%s4 + $0x48] sm:$0xff]
    %v1800 = vld [vmem:[%s4 + $0x50] sm:$0xff]
    %v1801 = vld [vmem:[%s4 + $0x58] sm:$0xff]
    %v1802 = vld [vmem:[%s4 + $0x60] sm:$0xff]
    %v1803 = vld [vmem:[%s4 + $0x68] sm:$0xff]
    %v1804 = vld [vmem:[%s4 + $0x70] sm:$0xff]
    %v1805 = vld [vmem:[%s4 + $0x78] sm:$0xff]
    %v1806 = vmul.f32 %v1774, %v1790
    %v1807 = vmul.f32 %v1775, %v1791
    %v1808 = vmul.f32 %v1776, %v1792
    %v1809 = vmul.f32 %v1777, %v1793
    %v1810 = vmul.f32 %v1778, %v1794
    %v1811 = vmul.f32 %v1779, %v1795
    %v1812 = vmul.f32 %v1780, %v1796
    %v1813 = vmul.f32 %v1781, %v1797
    %v1814 = vmul.f32 %v1782, %v1798
    %v1815 = vmul.f32 %v1783, %v1799
    %v1816 = vmul.f32 %v1784, %v1800
    %v1817 = vmul.f32 %v1785, %v1801
    %v1818 = vmul.f32 %v1786, %v1802
    %v1819 = vmul.f32 %v1787, %v1803
    %v1820 = vmul.f32 %v1788, %v1804
    %v1821 = vmul.f32 %v1789, %v1805
    %v1822 = vld [vmem:[%s5] sm:$0xff]
    %v1823 = vld [vmem:[%s5 + $0x8] sm:$0xff]
    %v1824 = vld [vmem:[%s5 + $0x10] sm:$0xff]
    %v1825 = vld [vmem:[%s5 + $0x18] sm:$0xff]
    %v1827 = vsel %vm1309, %v1806, 0
    %v1830 = vsel %vm1309, %v1807, 0
    %v1833 = vsel %vm1309, %v1808, 0
    %v1836 = vsel %vm1309, %v1809, 0
    %v1839 = vsel %vm1309, %v1810, 0
    %v1842 = vsel %vm1309, %v1811, 0
    %v1845 = vsel %vm1309, %v1812, 0
    %v1848 = vsel %vm1309, %v1813, 0
    %v1851 = vsel %vm1309, %v1814, 0
    %v1854 = vsel %vm1309, %v1815, 0
    %v1857 = vsel %vm1309, %v1816, 0
    %v1860 = vsel %vm1309, %v1817, 0
    %v1863 = vsel %vm1309, %v1818, 0
    %v1866 = vsel %vm1309, %v1819, 0
    %v1869 = vsel %vm1309, %v1820, 0
    %v1872 = vsel %vm1309, %v1821, 0
    %1874 = vmatprep.subr.mxu0 0.0
    %1875 = vmatpush1.msra.mxu0 0.0
    %1876 = vmatprep.subr.mxu0 0.0
    %1877 = vmatpush1.msra.mxu0 0.0
    %1878 = vmatprep.subr.mxu0 0.0
    %1879 = vmatpush1.msra.mxu0 0.0
    %1880 = vmatprep.subr.mxu0 0.0
    %1881 = vmatpush1.msra.mxu0 0.0
    %1882 = vmatprep.subr.mxu0 0.0
    %1883 = vmatpush1.msra.mxu0 0.0
    %1884 = vmatprep.subr.mxu0 0.0
    %1885 = vmatpush1.msra.mxu0 0.0
    %1886 = vmatprep.subr.mxu0 0.0
    %1887 = vmatpush1.msra.mxu0 0.0
    %1888 = vmatprep.subr.mxu0 0.0
    %1889 = vmatpush1.msra.mxu0 0.0
    %1890 = vmatprep.subr.mxu0 0.0
    %1891 = vmatpush1.msra.mxu0 0.0
    %1892 = vmatprep.subr.mxu0 0.0
    %1893 = vmatpush1.msra.mxu0 0.0
    %1894 = vmatprep.subr.mxu0 0.0
    %1895 = vmatpush1.msra.mxu0 0.0
    %1896 = vmatprep.subr.mxu0 0.0
    %1897 = vmatpush1.msra.mxu0 0.0
    %1898 = vmatprep.subr.mxu0 0.0
    %1899 = vmatpush1.msra.mxu0 %v1825
    %1900 = vmatprep.subr.mxu0 0.0
    %1901 = vmatpush1.msra.mxu0 %v1824
    %1902 = vmatprep.subr.mxu0 0.0
    %1903 = vmatpush1.msra.mxu0 %v1823
    %1904 = vmatprep.subr.mxu0 0.0
    %1905 = vmatpush1.msra.mxu0 %v1822
    %1906 = vmatprep.subr.mxu0 0.0
    %1907 = vmatpush2.msra.mxu0 0.0
    %1908 = vmatprep.subr.mxu0 0.0
    %1909 = vmatpush2.msra.mxu0 0.0
    %1910 = vmatprep.subr.mxu0 0.0
    %1911 = vmatpush2.msra.mxu0 0.0
    %1912 = vmatprep.subr.mxu0 0.0
    %1913 = vmatpush2.msra.mxu0 0.0
    %1914 = vmatprep.subr.mxu0 0.0
    %1915 = vmatpush2.msra.mxu0 0.0
    %1916 = vmatprep.subr.mxu0 0.0
    %1917 = vmatpush2.msra.mxu0 0.0
    %1918 = vmatprep.subr.mxu0 0.0
    %1919 = vmatpush2.msra.mxu0 0.0
    %1920 = vmatprep.subr.mxu0 0.0
    %1921 = vmatpush2.msra.mxu0 0.0
    %1922 = vmatprep.subr.mxu0 0.0
    %1923 = vmatpush2.msra.mxu0 0.0
    %1924 = vmatprep.subr.mxu0 0.0
    %1925 = vmatpush2.msra.mxu0 0.0
    %1926 = vmatprep.subr.mxu0 0.0
    %1927 = vmatpush2.msra.mxu0 0.0
    %1928 = vmatprep.subr.mxu0 0.0
    %1929 = vmatpush2.msra.mxu0 0.0
    %1930 = vmatprep.subr.mxu0 0.0
    %1931 = vmatpush2.msra.mxu0 0.0
    %1932 = vmatprep.subr.mxu0 0.0
    %1933 = vmatpush2.msra.mxu0 0.0
    %1934 = vmatprep.subr.mxu0 0.0
    %1935 = vmatpush2.msra.mxu0 0.0
    %1936 = vmatprep.subr.mxu0 0.0
    %1937 = vmatpush2.msra.mxu0 0.0
    %1938 = vmatprep.mubr.f32.mxu0 0.0
    %1939 = vmatmul.mubr.f32.gmra.mxu0 %v1827
    %v1940 = vpop.f32.mrf.mxu0
    %v1941 = vadd.f32 0.0, %v1940
    %v1942 = vpop.f32.mrf.mxu0
    %1943 = vmatprep.mubr.f32.mxu0 0.0
    %1944 = vmatmul.mubr.f32.gmra.mxu0 %v1830
    %v1945 = vpop.f32.mrf.mxu0
    %v1946 = vadd.f32 0.0, %v1945
    %v1947 = vpop.f32.mrf.mxu0
    %1948 = vmatprep.mubr.f32.mxu0 0.0
    %1949 = vmatmul.mubr.f32.gmra.mxu0 %v1833
    %v1950 = vpop.f32.mrf.mxu0
    %v1951 = vadd.f32 0.0, %v1950
    %v1952 = vpop.f32.mrf.mxu0
    %1953 = vmatprep.mubr.f32.mxu0 0.0
    %1954 = vmatmul.mubr.f32.gmra.mxu0 %v1836
    %v1955 = vpop.f32.mrf.mxu0
    %v1956 = vadd.f32 0.0, %v1955
    %v1957 = vpop.f32.mrf.mxu0
    %1958 = vmatprep.mubr.f32.mxu0 0.0
    %1959 = vmatmul.mubr.f32.gmra.mxu0 %v1839
    %v1960 = vpop.f32.mrf.mxu0
    %v1961 = vadd.f32 0.0, %v1960
    %v1962 = vpop.f32.mrf.mxu0
    %1963 = vmatprep.mubr.f32.mxu0 0.0
    %1964 = vmatmul.mubr.f32.gmra.mxu0 %v1842
    %v1965 = vpop.f32.mrf.mxu0
    %v1966 = vadd.f32 0.0, %v1965
    %v1967 = vpop.f32.mrf.mxu0
    %1968 = vmatprep.mubr.f32.mxu0 0.0
    %1969 = vmatmul.mubr.f32.gmra.mxu0 %v1845
    %v1970 = vpop.f32.mrf.mxu0
    %v1971 = vadd.f32 0.0, %v1970
    %v1972 = vpop.f32.mrf.mxu0
    %1973 = vmatprep.mubr.f32.mxu0 0.0
    %1974 = vmatmul.mubr.f32.gmra.mxu0 %v1848
    %v1975 = vpop.f32.mrf.mxu0
    %v1976 = vadd.f32 0.0, %v1975
    %v1977 = vpop.f32.mrf.mxu0
    %1978 = vmatprep.mubr.f32.mxu0 0.0
    %1979 = vmatmul.mubr.f32.gmra.mxu0 %v1851
    %v1980 = vpop.f32.mrf.mxu0
    %v1981 = vadd.f32 0.0, %v1980
    %v1982 = vpop.f32.mrf.mxu0
    %1983 = vmatprep.mubr.f32.mxu0 0.0
    %1984 = vmatmul.mubr.f32.gmra.mxu0 %v1854
    %v1985 = vpop.f32.mrf.mxu0
    %v1986 = vadd.f32 0.0, %v1985
    %v1987 = vpop.f32.mrf.mxu0
    %1988 = vmatprep.mubr.f32.mxu0 0.0
    %1989 = vmatmul.mubr.f32.gmra.mxu0 %v1857
    %v1990 = vpop.f32.mrf.mxu0
    %v1991 = vadd.f32 0.0, %v1990
    %v1992 = vpop.f32.mrf.mxu0
    %1993 = vmatprep.mubr.f32.mxu0 0.0
    %1994 = vmatmul.mubr.f32.gmra.mxu0 %v1860
    %v1995 = vpop.f32.mrf.mxu0
    %v1996 = vadd.f32 0.0, %v1995
    %v1997 = vpop.f32.mrf.mxu0
    %1998 = vmatprep.mubr.f32.mxu0 0.0
    %1999 = vmatmul.mubr.f32.gmra.mxu0 %v1863
    %v2000 = vpop.f32.mrf.mxu0
    %v2001 = vadd.f32 0.0, %v2000
    %v2002 = vpop.f32.mrf.mxu0
    %2003 = vmatprep.mubr.f32.mxu0 0.0
    %2004 = vmatmul.mubr.f32.gmra.mxu0 %v1866
    %v2005 = vpop.f32.mrf.mxu0
    %v2006 = vadd.f32 0.0, %v2005
    %v2007 = vpop.f32.mrf.mxu0
    %2008 = vmatprep.mubr.f32.mxu0 0.0
    %2009 = vmatmul.mubr.f32.gmra.mxu0 %v1869
    %v2010 = vpop.f32.mrf.mxu0
    %v2011 = vadd.f32 0.0, %v2010
    %v2012 = vpop.f32.mrf.mxu0
    %2013 = vmatprep.mubr.f32.mxu0 0.0
    %2014 = vmatmul.mubr.f32.gmra.mxu0 %v1872
    %v2015 = vpop.f32.mrf.mxu0
    %v2016 = vadd.f32 0.0, %v2015
    %v2017 = vpop.f32.mrf.mxu0
    %2018 = vdwg.mxu0
    %vm2019 = vcmask 15360
    %v2020 = vsel %vm2019, %v1941, 0.0
    %v2021 = vsel %vm2019, %v1946, 0.0
    %v2022 = vadd.f32 %v2020, %v2021
    %v2023 = vsel %vm2019, %v1951, 0.0
    %v2024 = vadd.f32 %v2022, %v2023
    %v2025 = vsel %vm2019, %v1956, 0.0
    %v2026 = vadd.f32 %v2024, %v2025
    %v2027 = vsel %vm2019, %v1961, 0.0
    %v2028 = vadd.f32 %v2026, %v2027
    %v2029 = vsel %vm2019, %v1966, 0.0
    %v2030 = vadd.f32 %v2028, %v2029
    %v2031 = vsel %vm2019, %v1971, 0.0
    %v2032 = vadd.f32 %v2030, %v2031
    %v2033 = vsel %vm2019, %v1976, 0.0
    %v2034 = vadd.f32 %v2032, %v2033
    %v2035 = vsel %vm2019, %v1981, 0.0
    %v2036 = vadd.f32 %v2034, %v2035
    %v2037 = vsel %vm2019, %v1986, 0.0
    %v2038 = vadd.f32 %v2036, %v2037
    %v2039 = vsel %vm2019, %v1991, 0.0
    %v2040 = vadd.f32 %v2038, %v2039
    %v2041 = vsel %vm2019, %v1996, 0.0
    %v2042 = vadd.f32 %v2040, %v2041
    %v2043 = vsel %vm2019, %v2001, 0.0
    %v2044 = vadd.f32 %v2042, %v2043
    %v2045 = vsel %vm2019, %v2006, 0.0
    %v2046 = vadd.f32 %v2044, %v2045
    %v2047 = vsel %vm2019, %v2011, 0.0
    %v2048 = vadd.f32 %v2046, %v2047
    %v2049 = vsel %vm2019, %v2016, 0.0
    %v2050 = vadd.f32 %v2048, %v2049
    %v2051 = vrot.slane %v2050, 4
    %v2052 = vadd.f32 %v2050, %v2051
    %v2053 = vrot.slane %v2052, 2
    %v2054 = vadd.f32 %v2052, %v2053
    %v2055 = vrot.slane %v2054, 1
    %v2056 = vadd.f32 %v2054, %v2055
    %v2057 = vand.u32 2147483647, %v2056
    %v2058 = vsub.f32 0.0, %v2057
    %v2059 = vmul.f32 %v2058, 1.442695
    %v2060 = vpow.pop %v2059
    %vm2061 = vcmp.ge.f32.partialorder %v2056, 0.0
    %v2062 = vadd.f32 %v2060, 1.0
    %v2063 = vrcp.pop %v2062
    %v2064 = vmul.f32 1.0, %v2063
    %v2065 = vmul.f32 %v2060, %v2063
    %v2066 = vsel %vm2061, %v2064, %v2065
    %vm2067 = vcmask 8192
    %2068 = vst.msk [vmem:[#allocation2] sm:$0x1] %vm2067, %v2066
    // Predicated region
    $region26: #{discriminator_forward.7} parent=1 // pred_check
      _
    $region27: #{discriminator_forward.7} parent=1 // pred_check_branch
      %2070 = sbr.rel (0) target = $region29
    $region28: #{discriminator_forward.7} parent=1 // pred_region
      %s2072 = ssub.s32 16, 16
      %2073 = vsyncadd [#allocation3], %s2072
      %s2075 = sshll.u32 [#allocation2], 4
      %s2076 = int_to_ptr.vmem [resolvable:$true] %s2075
      %2078 = dma.vmem_to_hbm [thread:$0]  %s2076, 16, %s6, [#allocation3]
    $region29: #{discriminator_forward.7} parent=1 // pred_fallthru
      _
    // Predicated region
    $region30: #{discriminator_forward.7} parent=1 // pred_check
      _
    $region31: #{discriminator_forward.7} parent=1 // pred_check_branch
      %2080 = sbr.rel (0) target = $region33
    $region32: #{discriminator_forward.7} parent=1 // pred_region
      %2081 = dma.done [#allocation3], 16
    $region33: #{discriminator_forward.7} parent=1 // pred_fallthru
      _
    %2082 = vsyncpa [#allocation3], 1

</llo_original>
